<compile_context>
chip_gen: v5e
topology: v5e:2x2
jax: 0.10.0
libtpu: 0.0.40
codegen_flags: <defaults>
</compile_context>

<pallas_src>
import math

import jax
import jax.numpy as jnp
from jax.experimental import pallas as pl
from jax.experimental.pallas import tpu as pltpu

_COMPUTE_DTYPE = jnp.bfloat16   # MXU inputs; accumulation stays f32
_EPS = 1e-8                     # matches nn.InstanceNorm2d(..., eps=1e-08)
_NEG_SLOPE = 0.2                # LeakyReLU slope


# ----------------------------- fused Pallas kernel ---------------------------

def _make_layer_kernel(num_phases, batch, do_norm):
    """Fused (sub-pixel) ConvTranspose2d-as-matmul [+ InstanceNorm + LeakyReLU].

    Refs:
      w_ref: (P, Cout, K)      bf16  per-phase weight matrices
      x_ref: (P, N, K, HW)     bf16  per-phase im2col patches (lane dim = HW)
      b_ref: (Cout, 1)         f32   bias
      o_ref: (N, P, Cout, HW)  f32   per-phase outputs (lane dim = HW)
    """
    def kernel(w_ref, x_ref, b_ref, o_ref):
        bias = b_ref[...]                                     # (Cout, 1) f32
        inv_cnt = 1.0 / (num_phases * o_ref.shape[-1])
        for n in range(batch):                                # static unroll (N=2)
            outs = []
            for p in range(num_phases):                       # static unroll (P<=4)
                o = jnp.dot(w_ref[p], x_ref[p, n],
                            preferred_element_type=jnp.float32) + bias
                outs.append(o)                                # (Cout, HW) f32
            if do_norm:
                # InstanceNorm2d(affine=False, eps=1e-8): biased variance over
                # the full spatial extent (all phases), then LeakyReLU(0.2).
                s = outs[0].sum(axis=1, keepdims=True)
                for p in range(1, num_phases):
                    s = s + outs[p].sum(axis=1, keepdims=True)
                mean = s * inv_cnt                            # (Cout, 1)
                v = ((outs[0] - mean) ** 2).sum(axis=1, keepdims=True)
                for p in range(1, num_phases):
                    v = v + ((outs[p] - mean) ** 2).sum(axis=1, keepdims=True)
                inv_std = jax.lax.rsqrt(v * inv_cnt + _EPS)   # (Cout, 1)
                for p in range(num_phases):
                    y = (outs[p] - mean) * inv_std
                    o_ref[n, p] = jnp.where(y >= 0, y, _NEG_SLOPE * y)
            else:
                for p in range(num_phases):
                    o_ref[n, p] = outs[p]
    return kernel


def _fused_layer_call(wmats, patches, bias, do_norm):
    p, n, _, hw = patches.shape
    cout = wmats.shape[1]
    return pl.pallas_call(
        _make_layer_kernel(p, n, do_norm),
        out_shape=jax.ShapeDtypeStruct((n, p, cout, hw), jnp.float32),
        compiler_params=pltpu.CompilerParams(vmem_limit_bytes=32 * 1024 * 1024),
    )(wmats.astype(_COMPUTE_DTYPE), patches.astype(_COMPUTE_DTYPE),
      bias.reshape(cout, 1).astype(jnp.float32))


# ------------------------ ConvTranspose2d -> matmul glue ---------------------

def _patches_stride1(x, w, padding):
    """Full im2col for the stride-1 ConvTranspose2d (the tiny 1x1 -> 4x4 stem)."""
    n, cin, h, wd = x.shape
    _, cout, k, _ = w.shape
    pad = k - 1 - padding
    oh = h - 1 + k - 2 * padding
    ow = wd - 1 + k - 2 * padding
    xp = jnp.pad(x, ((0, 0), (0, 0), (pad, pad), (pad, pad)))
    taps = [xp[:, :, kh:kh + oh, kw:kw + ow] for kh in range(k) for kw in range(k)]
    patches = jnp.stack(taps, axis=2).reshape(n, cin * k * k, oh * ow)[None]
    wm = jnp.stack([w[:, :, k - 1 - kh, k - 1 - kw]
                    for kh in range(k) for kw in range(k)], axis=1)   # (Cin, K*K, Cout)
    wmats = wm.transpose(2, 0, 1).reshape(cout, cin * k * k)[None]
    return patches, wmats, (oh, ow)


def _patches_stride2(x, w):
    """Sub-pixel decomposition of ConvTranspose2d(k=4, s=2, p=1): 4 output
    phases, each an exact 2x2 correlation on the 1-padded input (no structural
    zeros are multiplied)."""
    n, cin, h, wd = x.shape
    _, cout, _, _ = w.shape
    xp = jnp.pad(x, ((0, 0), (0, 0), (1, 1), (1, 1)))
    pats, wms = [], []
    for ry in range(2):
        for rx in range(2):
            taps = [xp[:, :, ry + dy:ry + dy + h, rx + dx:rx + dx + wd]
                    for dy in range(2) for dx in range(2)]
            pats.append(jnp.stack(taps, axis=2).reshape(n, cin * 4, h * wd))
            wsub = jnp.stack([w[:, :, 3 - ry - 2 * dy, 3 - rx - 2 * dx]
                              for dy in range(2) for dx in range(2)], axis=1)
            wms.append(wsub.transpose(2, 0, 1).reshape(cout, cin * 4))
    return jnp.stack(pats, axis=0), jnp.stack(wms, axis=0)  # (4,N,Cin*4,HW), (4,Cout,Cin*4)


def _deinterleave_phases(y, oh, ow):
    """(N, 4, Cout, H*W) with phase p = ry*2 + rx  ->  (N, Cout, 2H, 2W)."""
    n, _, c, _ = y.shape
    h, w = oh // 2, ow // 2
    y = y.reshape(n, 2, 2, c, h, w)          # (N, ry, rx, C, qy, qx)
    y = y.transpose(0, 3, 4, 1, 5, 2)        # (N, C, qy, ry, qx, rx)
    return y.reshape(n, c, oh, ow)


def conv_transpose_block(x, w, b, stride, padding, do_norm):
    """ConvTranspose2d(4x4) [+ InstanceNorm2d(eps=1e-8) + LeakyReLU(0.2)].
    x: (N, Cin, H, W); w: (Cin, Cout, 4, 4) (PyTorch layout); b: (Cout,)."""
    n, _, h, wd = x.shape
    _, cout, k, _ = w.shape
    if stride == 1:
        patches, wmats, (oh, ow) = _patches_stride1(x, w, padding)
        out = _fused_layer_call(wmats, patches, b, do_norm)   # (N, 1, Cout, OH*OW)
        return out.reshape(n, cout, oh, ow)
    assert stride == 2 and k == 4 and padding == 1
    patches, wmats = _patches_stride2(x, w)
    out = _fused_layer_call(wmats, patches, b, do_norm)       # (N, 4, Cout, H*W)
    return _deinterleave_phases(out, 2 * h, 2 * wd)


# ------------------------------ Generator -----------------------------------

def build_generator_params(key, input_dim=16, output_channels=3, image_size=32,
                           first_hidden_dim_=32, last_hidden_dim_=16,
                           another_times=0):
    """Replicates the layer-construction logic of Generator.__init__ (small config)."""
    up_times = math.log(image_size, 2) - 3 - another_times
    cfg = [(input_dim, first_hidden_dim_, 1, 0)]   # (cin, cout, stride, padding)
    hidden = first_hidden_dim_
    while up_times > 0:
        if up_times < math.log(first_hidden_dim_, 2) - math.log(last_hidden_dim_, 2) + 1:
            cfg.append((hidden, hidden // 2, 2, 1))
            hidden = hidden // 2
        else:
            cfg.append((hidden, hidden, 2, 1))
        up_times -= 1
    cfg.append((hidden, output_channels, 2, 1))

    params = []
    for (cin, cout, s, p) in cfg:
        key, k1, k2 = jax.random.split(key, 3)
        bound = 1.0 / math.sqrt(cout * 4 * 4)
        w = jax.random.uniform(k1, (cin, cout, 4, 4), jnp.float32, -bound, bound)
        bias = jax.random.uniform(k2, (cout,), jnp.float32, -bound, bound)
        params.append((w, bias, s, p))
    return params


def generator_forward(params, z):
    x = z
    last = len(params) - 1
    for i, (w, b, s, p) in enumerate(params):
        x = conv_transpose_block(x, w, b, s, p, do_norm=(i < last))
    return x


# -------------------------------- main --------------------------------------

if __name__ == "__main__":
    key = jax.random.PRNGKey(0)
    kp, kz = jax.random.split(key)

    # Small configuration consistent with the module:
    # input_dim=16, image_size=32, first_hidden=32, last_hidden=16, out_channels=3
    params = build_generator_params(kp)

    # z: (N, input_dim, 1, 1) as in a DCGAN-style generator
    z = jax.random.normal(kz, (2, 16, 1, 1), jnp.float32)

    fwd = jax.jit(lambda zz: generator_forward(params, zz))
    out = jax.block_until_ready(fwd(z))

    assert out.shape == (2, 3, 32, 32), out.shape
    assert bool(jnp.all(jnp.isfinite(out)))
    print("KERNEL_OK")
</pallas_src>

<mosaic_0001>
module attributes {stable_mosaic.version = 11 : i64} {
  func.func @kernel(%arg0: memref<1x32x256xbf16, #tpu.memory_space<vmem>>, %arg1: memref<1x2x256x16xbf16, #tpu.memory_space<vmem>>, %arg2: memref<32x1xf32, #tpu.memory_space<vmem>>, %arg3: memref<2x1x32x16xf32, #tpu.memory_space<vmem>>) attributes {dimension_semantics = [], scalar_prefetch = 0 : i64, scratch_operands = 0 : i64, tpu.core_type = #tpu.core_type<tc>} {
    %c0 = arith.constant 0 : index
    %c0_0 = arith.constant 0 : index
    %0 = vector.load %arg2[%c0, %c0_0] : memref<32x1xf32, #tpu.memory_space<vmem>>, vector<32x1xf32>
    %c0_1 = arith.constant 0 : index
    %c0_2 = arith.constant 0 : index
    %c0_3 = arith.constant 0 : index
    %1 = vector.load %arg0[%c0_1, %c0_2, %c0_3] : memref<1x32x256xbf16, #tpu.memory_space<vmem>>, vector<1x32x256xbf16>
    %2 = vector.shape_cast %1 : vector<1x32x256xbf16> to vector<32x256xbf16>
    %c0_4 = arith.constant 0 : index
    %c0_5 = arith.constant 0 : index
    %c0_6 = arith.constant 0 : index
    %c0_7 = arith.constant 0 : index
    %3 = vector.load %arg1[%c0_4, %c0_5, %c0_6, %c0_7] : memref<1x2x256x16xbf16, #tpu.memory_space<vmem>>, vector<1x1x256x16xbf16>
    %4 = vector.shape_cast %3 : vector<1x1x256x16xbf16> to vector<256x16xbf16>
    %cst = arith.constant dense<0.000000e+00> : vector<32x16xf32>
    %5 = tpu.matmul %2, %4, %cst {dimension_numbers = #tpu.dot_dimension_numbers<[1], [0], [0], [1], [0, 0, 1, 1], [], []>} : vector<32x256xbf16>, vector<256x16xbf16>, vector<32x16xf32> -> vector<32x16xf32>
    %6 = vector.broadcast %0 : vector<32x1xf32> to vector<32x16xf32>
    %7 = arith.addf %5, %6 : vector<32x16xf32>
    %cst_8 = arith.constant dense<0.000000e+00> : vector<32xf32>
    %8 = vector.multi_reduction <add>, %7, %cst_8 [1] : vector<32x16xf32> to vector<32xf32>
    %9 = vector.shape_cast %8 : vector<32xf32> to vector<32x1xf32>
    %cst_9 = arith.constant 6.250000e-02 : f32
    %10 = vector.broadcast %cst_9 : f32 to vector<32x1xf32>
    %11 = arith.mulf %9, %10 : vector<32x1xf32>
    %12 = vector.broadcast %11 : vector<32x1xf32> to vector<32x16xf32>
    %13 = arith.subf %7, %12 : vector<32x16xf32>
    %14 = arith.mulf %13, %13 : vector<32x16xf32>
    %cst_10 = arith.constant dense<0.000000e+00> : vector<32xf32>
    %15 = vector.multi_reduction <add>, %14, %cst_10 [1] : vector<32x16xf32> to vector<32xf32>
    %16 = vector.shape_cast %15 : vector<32xf32> to vector<32x1xf32>
    %cst_11 = arith.constant 6.250000e-02 : f32
    %17 = vector.broadcast %cst_11 : f32 to vector<32x1xf32>
    %18 = arith.mulf %16, %17 : vector<32x1xf32>
    %cst_12 = arith.constant 9.99999993E-9 : f32
    %19 = vector.broadcast %cst_12 : f32 to vector<32x1xf32>
    %20 = arith.addf %18, %19 : vector<32x1xf32>
    %21 = math.rsqrt %20 : vector<32x1xf32>
    %22 = vector.broadcast %11 : vector<32x1xf32> to vector<32x16xf32>
    %23 = arith.subf %7, %22 : vector<32x16xf32>
    %24 = vector.broadcast %21 : vector<32x1xf32> to vector<32x16xf32>
    %25 = arith.mulf %23, %24 : vector<32x16xf32>
    %cst_13 = arith.constant 0.000000e+00 : f32
    %26 = vector.broadcast %cst_13 : f32 to vector<32x16xf32>
    %27 = arith.cmpf oge, %25, %26 : vector<32x16xf32>
    %cst_14 = arith.constant 2.000000e-01 : f32
    %28 = vector.broadcast %cst_14 : f32 to vector<32x16xf32>
    %29 = arith.mulf %28, %25 : vector<32x16xf32>
    %30 = arith.select %27, %25, %29 : vector<32x16xi1>, vector<32x16xf32>
    %c0_15 = arith.constant 0 : index
    %c0_16 = arith.constant 0 : index
    %c0_17 = arith.constant 0 : index
    %c0_18 = arith.constant 0 : index
    %31 = vector.load %arg3[%c0_15, %c0_16, %c0_17, %c0_18] : memref<2x1x32x16xf32, #tpu.memory_space<vmem>>, vector<1x1x32x16xf32>
    %32 = vector.shape_cast %31 : vector<1x1x32x16xf32> to vector<32x16xf32>
    %33 = vector.shape_cast %30 : vector<32x16xf32> to vector<1x1x32x16xf32>
    tpu.vector_store %arg3[%c0_15, %c0_16, %c0_17, %c0_18], %33 {strides = array<i32>} : memref<2x1x32x16xf32, #tpu.memory_space<vmem>>, vector<1x1x32x16xf32>,
    %c0_19 = arith.constant 0 : index
    %c0_20 = arith.constant 0 : index
    %c0_21 = arith.constant 0 : index
    %34 = vector.load %arg0[%c0_19, %c0_20, %c0_21] : memref<1x32x256xbf16, #tpu.memory_space<vmem>>, vector<1x32x256xbf16>
    %35 = vector.shape_cast %34 : vector<1x32x256xbf16> to vector<32x256xbf16>
    %c0_22 = arith.constant 0 : index
    %c1 = arith.constant 1 : index
    %c0_23 = arith.constant 0 : index
    %c0_24 = arith.constant 0 : index
    %36 = vector.load %arg1[%c0_22, %c1, %c0_23, %c0_24] : memref<1x2x256x16xbf16, #tpu.memory_space<vmem>>, vector<1x1x256x16xbf16>
    %37 = vector.shape_cast %36 : vector<1x1x256x16xbf16> to vector<256x16xbf16>
    %cst_25 = arith.constant dense<0.000000e+00> : vector<32x16xf32>
    %38 = tpu.matmul %35, %37, %cst_25 {dimension_numbers = #tpu.dot_dimension_numbers<[1], [0], [0], [1], [0, 0, 1, 1], [], []>} : vector<32x256xbf16>, vector<256x16xbf16>, vector<32x16xf32> -> vector<32x16xf32>
    %39 = vector.broadcast %0 : vector<32x1xf32> to vector<32x16xf32>
    %40 = arith.addf %38, %39 : vector<32x16xf32>
    %cst_26 = arith.constant dense<0.000000e+00> : vector<32xf32>
    %41 = vector.multi_reduction <add>, %40, %cst_26 [1] : vector<32x16xf32> to vector<32xf32>
    %42 = vector.shape_cast %41 : vector<32xf32> to vector<32x1xf32>
    %cst_27 = arith.constant 6.250000e-02 : f32
    %43 = vector.broadcast %cst_27 : f32 to vector<32x1xf32>
    %44 = arith.mulf %42, %43 : vector<32x1xf32>
    %45 = vector.broadcast %44 : vector<32x1xf32> to vector<32x16xf32>
    %46 = arith.subf %40, %45 : vector<32x16xf32>
    %47 = arith.mulf %46, %46 : vector<32x16xf32>
    %cst_28 = arith.constant dense<0.000000e+00> : vector<32xf32>
    %48 = vector.multi_reduction <add>, %47, %cst_28 [1] : vector<32x16xf32> to vector<32xf32>
    %49 = vector.shape_cast %48 : vector<32xf32> to vector<32x1xf32>
    %cst_29 = arith.constant 6.250000e-02 : f32
    %50 = vector.broadcast %cst_29 : f32 to vector<32x1xf32>
    %51 = arith.mulf %49, %50 : vector<32x1xf32>
    %cst_30 = arith.constant 9.99999993E-9 : f32
    %52 = vector.broadcast %cst_30 : f32 to vector<32x1xf32>
    %53 = arith.addf %51, %52 : vector<32x1xf32>
    %54 = math.rsqrt %53 : vector<32x1xf32>
    %55 = vector.broadcast %44 : vector<32x1xf32> to vector<32x16xf32>
    %56 = arith.subf %40, %55 : vector<32x16xf32>
    %57 = vector.broadcast %54 : vector<32x1xf32> to vector<32x16xf32>
    %58 = arith.mulf %56, %57 : vector<32x16xf32>
    %cst_31 = arith.constant 0.000000e+00 : f32
    %59 = vector.broadcast %cst_31 : f32 to vector<32x16xf32>
    %60 = arith.cmpf oge, %58, %59 : vector<32x16xf32>
    %cst_32 = arith.constant 2.000000e-01 : f32
    %61 = vector.broadcast %cst_32 : f32 to vector<32x16xf32>
    %62 = arith.mulf %61, %58 : vector<32x16xf32>
    %63 = arith.select %60, %58, %62 : vector<32x16xi1>, vector<32x16xf32>
    %c1_33 = arith.constant 1 : index
    %c0_34 = arith.constant 0 : index
    %c0_35 = arith.constant 0 : index
    %c0_36 = arith.constant 0 : index
    %64 = vector.load %arg3[%c1_33, %c0_34, %c0_35, %c0_36] : memref<2x1x32x16xf32, #tpu.memory_space<vmem>>, vector<1x1x32x16xf32>
    %65 = vector.shape_cast %64 : vector<1x1x32x16xf32> to vector<32x16xf32>
    %66 = vector.shape_cast %63 : vector<32x16xf32> to vector<1x1x32x16xf32>
    tpu.vector_store %arg3[%c1_33, %c0_34, %c0_35, %c0_36], %66 {strides = array<i32>} : memref<2x1x32x16xf32, #tpu.memory_space<vmem>>, vector<1x1x32x16xf32>,
    return
  }
}

module attributes {stable_mosaic.version = 11 : i64} {
  func.func @kernel(%arg0: memref<4x32x128xbf16, #tpu.memory_space<vmem>>, %arg1: memref<4x2x128x16xbf16, #tpu.memory_space<vmem>>, %arg2: memref<32x1xf32, #tpu.memory_space<vmem>>, %arg3: memref<2x4x32x16xf32, #tpu.memory_space<vmem>>) attributes {dimension_semantics = [], scalar_prefetch = 0 : i64, scratch_operands = 0 : i64, tpu.core_type = #tpu.core_type<tc>} {
    %c0 = arith.constant 0 : index
    %c0_0 = arith.constant 0 : index
    %0 = vector.load %arg2[%c0, %c0_0] : memref<32x1xf32, #tpu.memory_space<vmem>>, vector<32x1xf32>
    %c0_1 = arith.constant 0 : index
    %c0_2 = arith.constant 0 : index
    %c0_3 = arith.constant 0 : index
    %1 = vector.load %arg0[%c0_1, %c0_2, %c0_3] : memref<4x32x128xbf16, #tpu.memory_space<vmem>>, vector<1x32x128xbf16>
    %2 = vector.shape_cast %1 : vector<1x32x128xbf16> to vector<32x128xbf16>
    %c0_4 = arith.constant 0 : index
    %c0_5 = arith.constant 0 : index
    %c0_6 = arith.constant 0 : index
    %c0_7 = arith.constant 0 : index
    %3 = vector.load %arg1[%c0_4, %c0_5, %c0_6, %c0_7] : memref<4x2x128x16xbf16, #tpu.memory_space<vmem>>, vector<1x1x128x16xbf16>
    %4 = vector.shape_cast %3 : vector<1x1x128x16xbf16> to vector<128x16xbf16>
    %cst = arith.constant dense<0.000000e+00> : vector<32x16xf32>
    %5 = tpu.matmul %2, %4, %cst {dimension_numbers = #tpu.dot_dimension_numbers<[1], [0], [0], [1], [0, 0, 1, 1], [], []>} : vector<32x128xbf16>, vector<128x16xbf16>, vector<32x16xf32> -> vector<32x16xf32>
    %6 = vector.broadcast %0 : vector<32x1xf32> to vector<32x16xf32>
    %7 = arith.addf %5, %6 : vector<32x16xf32>
    %c1 = arith.constant 1 : index
    %c0_8 = arith.constant 0 : index
    %c0_9 = arith.constant 0 : index
    %8 = vector.load %arg0[%c1, %c0_8, %c0_9] : memref<4x32x128xbf16, #tpu.memory_space<vmem>>, vector<1x32x128xbf16>
    %9 = vector.shape_cast %8 : vector<1x32x128xbf16> to vector<32x128xbf16>
    %c1_10 = arith.constant 1 : index
    %c0_11 = arith.constant 0 : index
    %c0_12 = arith.constant 0 : index
    %c0_13 = arith.constant 0 : index
    %10 = vector.load %arg1[%c1_10, %c0_11, %c0_12, %c0_13] : memref<4x2x128x16xbf16, #tpu.memory_space<vmem>>, vector<1x1x128x16xbf16>
    %11 = vector.shape_cast %10 : vector<1x1x128x16xbf16> to vector<128x16xbf16>
    %cst_14 = arith.constant dense<0.000000e+00> : vector<32x16xf32>
    %12 = tpu.matmul %9, %11, %cst_14 {dimension_numbers = #tpu.dot_dimension_numbers<[1], [0], [0], [1], [0, 0, 1, 1], [], []>} : vector<32x128xbf16>, vector<128x16xbf16>, vector<32x16xf32> -> vector<32x16xf32>
    %13 = vector.broadcast %0 : vector<32x1xf32> to vector<32x16xf32>
    %14 = arith.addf %12, %13 : vector<32x16xf32>
    %c2 = arith.constant 2 : index
    %c0_15 = arith.constant 0 : index
    %c0_16 = arith.constant 0 : index
    %15 = vector.load %arg0[%c2, %c0_15, %c0_16] : memref<4x32x128xbf16, #tpu.memory_space<vmem>>, vector<1x32x128xbf16>
    %16 = vector.shape_cast %15 : vector<1x32x128xbf16> to vector<32x128xbf16>
    %c2_17 = arith.constant 2 : index
    %c0_18 = arith.constant 0 : index
    %c0_19 = arith.constant 0 : index
    %c0_20 = arith.constant 0 : index
    %17 = vector.load %arg1[%c2_17, %c0_18, %c0_19, %c0_20] : memref<4x2x128x16xbf16, #tpu.memory_space<vmem>>, vector<1x1x128x16xbf16>
    %18 = vector.shape_cast %17 : vector<1x1x128x16xbf16> to vector<128x16xbf16>
    %cst_21 = arith.constant dense<0.000000e+00> : vector<32x16xf32>
    %19 = tpu.matmul %16, %18, %cst_21 {dimension_numbers = #tpu.dot_dimension_numbers<[1], [0], [0], [1], [0, 0, 1, 1], [], []>} : vector<32x128xbf16>, vector<128x16xbf16>, vector<32x16xf32> -> vector<32x16xf32>
    %20 = vector.broadcast %0 : vector<32x1xf32> to vector<32x16xf32>
    %21 = arith.addf %19, %20 : vector<32x16xf32>
    %c3 = arith.constant 3 : index
    %c0_22 = arith.constant 0 : index
    %c0_23 = arith.constant 0 : index
    %22 = vector.load %arg0[%c3, %c0_22, %c0_23] : memref<4x32x128xbf16, #tpu.memory_space<vmem>>, vector<1x32x128xbf16>
    %23 = vector.shape_cast %22 : vector<1x32x128xbf16> to vector<32x128xbf16>
    %c3_24 = arith.constant 3 : index
    %c0_25 = arith.constant 0 : index
    %c0_26 = arith.constant 0 : index
    %c0_27 = arith.constant 0 : index
    %24 = vector.load %arg1[%c3_24, %c0_25, %c0_26, %c0_27] : memref<4x2x128x16xbf16, #tpu.memory_space<vmem>>, vector<1x1x128x16xbf16>
    %25 = vector.shape_cast %24 : vector<1x1x128x16xbf16> to vector<128x16xbf16>
    %cst_28 = arith.constant dense<0.000000e+00> : vector<32x16xf32>
    %26 = tpu.matmul %23, %25, %cst_28 {dimension_numbers = #tpu.dot_dimension_numbers<[1], [0], [0], [1], [0, 0, 1, 1], [], []>} : vector<32x128xbf16>, vector<128x16xbf16>, vector<32x16xf32> -> vector<32x16xf32>
    %27 = vector.broadcast %0 : vector<32x1xf32> to vector<32x16xf32>
    %28 = arith.addf %26, %27 : vector<32x16xf32>
    %cst_29 = arith.constant dense<0.000000e+00> : vector<32xf32>
    %29 = vector.multi_reduction <add>, %7, %cst_29 [1] : vector<32x16xf32> to vector<32xf32>
    %30 = vector.shape_cast %29 : vector<32xf32> to vector<32x1xf32>
    %cst_30 = arith.constant dense<0.000000e+00> : vector<32xf32>
    %31 = vector.multi_reduction <add>, %14, %cst_30 [1] : vector<32x16xf32> to vector<32xf32>
    %32 = vector.shape_cast %31 : vector<32xf32> to vector<32x1xf32>
    %33 = arith.addf %30, %32 : vector<32x1xf32>
    %cst_31 = arith.constant dense<0.000000e+00> : vector<32xf32>
    %34 = vector.multi_reduction <add>, %21, %cst_31 [1] : vector<32x16xf32> to vector<32xf32>
    %35 = vector.shape_cast %34 : vector<32xf32> to vector<32x1xf32>
    %36 = arith.addf %33, %35 : vector<32x1xf32>
    %cst_32 = arith.constant dense<0.000000e+00> : vector<32xf32>
    %37 = vector.multi_reduction <add>, %28, %cst_32 [1] : vector<32x16xf32> to vector<32xf32>
    %38 = vector.shape_cast %37 : vector<32xf32> to vector<32x1xf32>
    %39 = arith.addf %36, %38 : vector<32x1xf32>
    %cst_33 = arith.constant 1.562500e-02 : f32
    %40 = vector.broadcast %cst_33 : f32 to vector<32x1xf32>
    %41 = arith.mulf %39, %40 : vector<32x1xf32>
    %42 = vector.broadcast %41 : vector<32x1xf32> to vector<32x16xf32>
    %43 = arith.subf %7, %42 : vector<32x16xf32>
    %44 = arith.mulf %43, %43 : vector<32x16xf32>
    %cst_34 = arith.constant dense<0.000000e+00> : vector<32xf32>
    %45 = vector.multi_reduction <add>, %44, %cst_34 [1] : vector<32x16xf32> to vector<32xf32>
    %46 = vector.shape_cast %45 : vector<32xf32> to vector<32x1xf32>
    %47 = vector.broadcast %41 : vector<32x1xf32> to vector<32x16xf32>
    %48 = arith.subf %14, %47 : vector<32x16xf32>
    %49 = arith.mulf %48, %48 : vector<32x16xf32>
    %cst_35 = arith.constant dense<0.000000e+00> : vector<32xf32>
    %50 = vector.multi_reduction <add>, %49, %cst_35 [1] : vector<32x16xf32> to vector<32xf32>
    %51 = vector.shape_cast %50 : vector<32xf32> to vector<32x1xf32>
    %52 = arith.addf %46, %51 : vector<32x1xf32>
    %53 = vector.broadcast %41 : vector<32x1xf32> to vector<32x16xf32>
    %54 = arith.subf %21, %53 : vector<32x16xf32>
    %55 = arith.mulf %54, %54 : vector<32x16xf32>
    %cst_36 = arith.constant dense<0.000000e+00> : vector<32xf32>
    %56 = vector.multi_reduction <add>, %55, %cst_36 [1] : vector<32x16xf32> to vector<32xf32>
    %57 = vector.shape_cast %56 : vector<32xf32> to vector<32x1xf32>
    %58 = arith.addf %52, %57 : vector<32x1xf32>
    %59 = vector.broadcast %41 : vector<32x1xf32> to vector<32x16xf32>
    %60 = arith.subf %28, %59 : vector<32x16xf32>
    %61 = arith.mulf %60, %60 : vector<32x16xf32>
    %cst_37 = arith.constant dense<0.000000e+00> : vector<32xf32>
    %62 = vector.multi_reduction <add>, %61, %cst_37 [1] : vector<32x16xf32> to vector<32xf32>
    %63 = vector.shape_cast %62 : vector<32xf32> to vector<32x1xf32>
    %64 = arith.addf %58, %63 : vector<32x1xf32>
    %cst_38 = arith.constant 1.562500e-02 : f32
    %65 = vector.broadcast %cst_38 : f32 to vector<32x1xf32>
    %66 = arith.mulf %64, %65 : vector<32x1xf32>
    %cst_39 = arith.constant 9.99999993E-9 : f32
    %67 = vector.broadcast %cst_39 : f32 to vector<32x1xf32>
    %68 = arith.addf %66, %67 : vector<32x1xf32>
    %69 = math.rsqrt %68 : vector<32x1xf32>
    %70 = vector.broadcast %41 : vector<32x1xf32> to vector<32x16xf32>
    %71 = arith.subf %7, %70 : vector<32x16xf32>
    %72 = vector.broadcast %69 : vector<32x1xf32> to vector<32x16xf32>
    %73 = arith.mulf %71, %72 : vector<32x16xf32>
    %cst_40 = arith.constant 0.000000e+00 : f32
    %74 = vector.broadcast %cst_40 : f32 to vector<32x16xf32>
    %75 = arith.cmpf oge, %73, %74 : vector<32x16xf32>
    %cst_41 = arith.constant 2.000000e-01 : f32
    %76 = vector.broadcast %cst_41 : f32 to vector<32x16xf32>
    %77 = arith.mulf %76, %73 : vector<32x16xf32>
    %78 = arith.select %75, %73, %77 : vector<32x16xi1>, vector<32x16xf32>
    %c0_42 = arith.constant 0 : index
    %c0_43 = arith.constant 0 : index
    %c0_44 = arith.constant 0 : index
    %c0_45 = arith.constant 0 : index
    %79 = vector.load %arg3[%c0_42, %c0_43, %c0_44, %c0_45] : memref<2x4x32x16xf32, #tpu.memory_space<vmem>>, vector<1x1x32x16xf32>
    %80 = vector.shape_cast %79 : vector<1x1x32x16xf32> to vector<32x16xf32>
    %81 = vector.shape_cast %78 : vector<32x16xf32> to vector<1x1x32x16xf32>
    tpu.vector_store %arg3[%c0_42, %c0_43, %c0_44, %c0_45], %81 {strides = array<i32>} : memref<2x4x32x16xf32, #tpu.memory_space<vmem>>, vector<1x1x32x16xf32>,
    %82 = vector.broadcast %41 : vector<32x1xf32> to vector<32x16xf32>
    %83 = arith.subf %14, %82 : vector<32x16xf32>
    %84 = vector.broadcast %69 : vector<32x1xf32> to vector<32x16xf32>
    %85 = arith.mulf %83, %84 : vector<32x16xf32>
    %cst_46 = arith.constant 0.000000e+00 : f32
    %86 = vector.broadcast %cst_46 : f32 to vector<32x16xf32>
    %87 = arith.cmpf oge, %85, %86 : vector<32x16xf32>
    %cst_47 = arith.constant 2.000000e-01 : f32
    %88 = vector.broadcast %cst_47 : f32 to vector<32x16xf32>
    %89 = arith.mulf %88, %85 : vector<32x16xf32>
    %90 = arith.select %87, %85, %89 : vector<32x16xi1>, vector<32x16xf32>
    %c0_48 = arith.constant 0 : index
    %c1_49 = arith.constant 1 : index
    %c0_50 = arith.constant 0 : index
    %c0_51 = arith.constant 0 : index
    %91 = vector.load %arg3[%c0_48, %c1_49, %c0_50, %c0_51] : memref<2x4x32x16xf32, #tpu.memory_space<vmem>>, vector<1x1x32x16xf32>
    %92 = vector.shape_cast %91 : vector<1x1x32x16xf32> to vector<32x16xf32>
    %93 = vector.shape_cast %90 : vector<32x16xf32> to vector<1x1x32x16xf32>
    tpu.vector_store %arg3[%c0_48, %c1_49, %c0_50, %c0_51], %93 {strides = array<i32>} : memref<2x4x32x16xf32, #tpu.memory_space<vmem>>, vector<1x1x32x16xf32>,
    %94 = vector.broadcast %41 : vector<32x1xf32> to vector<32x16xf32>
    %95 = arith.subf %21, %94 : vector<32x16xf32>
    %96 = vector.broadcast %69 : vector<32x1xf32> to vector<32x16xf32>
    %97 = arith.mulf %95, %96 : vector<32x16xf32>
    %cst_52 = arith.constant 0.000000e+00 : f32
    %98 = vector.broadcast %cst_52 : f32 to vector<32x16xf32>
    %99 = arith.cmpf oge, %97, %98 : vector<32x16xf32>
    %cst_53 = arith.constant 2.000000e-01 : f32
    %100 = vector.broadcast %cst_53 : f32 to vector<32x16xf32>
    %101 = arith.mulf %100, %97 : vector<32x16xf32>
    %102 = arith.select %99, %97, %101 : vector<32x16xi1>, vector<32x16xf32>
    %c0_54 = arith.constant 0 : index
    %c2_55 = arith.constant 2 : index
    %c0_56 = arith.constant 0 : index
    %c0_57 = arith.constant 0 : index
    %103 = vector.load %arg3[%c0_54, %c2_55, %c0_56, %c0_57] : memref<2x4x32x16xf32, #tpu.memory_space<vmem>>, vector<1x1x32x16xf32>
    %104 = vector.shape_cast %103 : vector<1x1x32x16xf32> to vector<32x16xf32>
    %105 = vector.shape_cast %102 : vector<32x16xf32> to vector<1x1x32x16xf32>
    tpu.vector_store %arg3[%c0_54, %c2_55, %c0_56, %c0_57], %105 {strides = array<i32>} : memref<2x4x32x16xf32, #tpu.memory_space<vmem>>, vector<1x1x32x16xf32>,
    %106 = vector.broadcast %41 : vector<32x1xf32> to vector<32x16xf32>
    %107 = arith.subf %28, %106 : vector<32x16xf32>
    %108 = vector.broadcast %69 : vector<32x1xf32> to vector<32x16xf32>
    %109 = arith.mulf %107, %108 : vector<32x16xf32>
    %cst_58 = arith.constant 0.000000e+00 : f32
    %110 = vector.broadcast %cst_58 : f32 to vector<32x16xf32>
    %111 = arith.cmpf oge, %109, %110 : vector<32x16xf32>
    %cst_59 = arith.constant 2.000000e-01 : f32
    %112 = vector.broadcast %cst_59 : f32 to vector<32x16xf32>
    %113 = arith.mulf %112, %109 : vector<32x16xf32>
    %114 = arith.select %111, %109, %113 : vector<32x16xi1>, vector<32x16xf32>
    %c0_60 = arith.constant 0 : index
    %c3_61 = arith.constant 3 : index
    %c0_62 = arith.constant 0 : index
    %c0_63 = arith.constant 0 : index
    %115 = vector.load %arg3[%c0_60, %c3_61, %c0_62, %c0_63] : memref<2x4x32x16xf32, #tpu.memory_space<vmem>>, vector<1x1x32x16xf32>
    %116 = vector.shape_cast %115 : vector<1x1x32x16xf32> to vector<32x16xf32>
    %117 = vector.shape_cast %114 : vector<32x16xf32> to vector<1x1x32x16xf32>
    tpu.vector_store %arg3[%c0_60, %c3_61, %c0_62, %c0_63], %117 {strides = array<i32>} : memref<2x4x32x16xf32, #tpu.memory_space<vmem>>, vector<1x1x32x16xf32>,
    %c0_64 = arith.constant 0 : index
    %c0_65 = arith.constant 0 : index
    %c0_66 = arith.constant 0 : index
    %118 = vector.load %arg0[%c0_64, %c0_65, %c0_66] : memref<4x32x128xbf16, #tpu.memory_space<vmem>>, vector<1x32x128xbf16>
    %119 = vector.shape_cast %118 : vector<1x32x128xbf16> to vector<32x128xbf16>
    %c0_67 = arith.constant 0 : index
    %c1_68 = arith.constant 1 : index
    %c0_69 = arith.constant 0 : index
    %c0_70 = arith.constant 0 : index
    %120 = vector.load %arg1[%c0_67, %c1_68, %c0_69, %c0_70] : memref<4x2x128x16xbf16, #tpu.memory_space<vmem>>, vector<1x1x128x16xbf16>
    %121 = vector.shape_cast %120 : vector<1x1x128x16xbf16> to vector<128x16xbf16>
    %cst_71 = arith.constant dense<0.000000e+00> : vector<32x16xf32>
    %122 = tpu.matmul %119, %121, %cst_71 {dimension_numbers = #tpu.dot_dimension_numbers<[1], [0], [0], [1], [0, 0, 1, 1], [], []>} : vector<32x128xbf16>, vector<128x16xbf16>, vector<32x16xf32> -> vector<32x16xf32>
    %123 = vector.broadcast %0 : vector<32x1xf32> to vector<32x16xf32>
    %124 = arith.addf %122, %123 : vector<32x16xf32>
    %c1_72 = arith.constant 1 : index
    %c0_73 = arith.constant 0 : index
    %c0_74 = arith.constant 0 : index
    %125 = vector.load %arg0[%c1_72, %c0_73, %c0_74] : memref<4x32x128xbf16, #tpu.memory_space<vmem>>, vector<1x32x128xbf16>
    %126 = vector.shape_cast %125 : vector<1x32x128xbf16> to vector<32x128xbf16>
    %c1_75 = arith.constant 1 : index
    %c1_76 = arith.constant 1 : index
    %c0_77 = arith.constant 0 : index
    %c0_78 = arith.constant 0 : index
    %127 = vector.load %arg1[%c1_75, %c1_76, %c0_77, %c0_78] : memref<4x2x128x16xbf16, #tpu.memory_space<vmem>>, vector<1x1x128x16xbf16>
    %128 = vector.shape_cast %127 : vector<1x1x128x16xbf16> to vector<128x16xbf16>
    %cst_79 = arith.constant dense<0.000000e+00> : vector<32x16xf32>
    %129 = tpu.matmul %126, %128, %cst_79 {dimension_numbers = #tpu.dot_dimension_numbers<[1], [0], [0], [1], [0, 0, 1, 1], [], []>} : vector<32x128xbf16>, vector<128x16xbf16>, vector<32x16xf32> -> vector<32x16xf32>
    %130 = vector.broadcast %0 : vector<32x1xf32> to vector<32x16xf32>
    %131 = arith.addf %129, %130 : vector<32x16xf32>
    %c2_80 = arith.constant 2 : index
    %c0_81 = arith.constant 0 : index
    %c0_82 = arith.constant 0 : index
    %132 = vector.load %arg0[%c2_80, %c0_81, %c0_82] : memref<4x32x128xbf16, #tpu.memory_space<vmem>>, vector<1x32x128xbf16>
    %133 = vector.shape_cast %132 : vector<1x32x128xbf16> to vector<32x128xbf16>
    %c2_83 = arith.constant 2 : index
    %c1_84 = arith.constant 1 : index
    %c0_85 = arith.constant 0 : index
    %c0_86 = arith.constant 0 : index
    %134 = vector.load %arg1[%c2_83, %c1_84, %c0_85, %c0_86] : memref<4x2x128x16xbf16, #tpu.memory_space<vmem>>, vector<1x1x128x16xbf16>
    %135 = vector.shape_cast %134 : vector<1x1x128x16xbf16> to vector<128x16xbf16>
    %cst_87 = arith.constant dense<0.000000e+00> : vector<32x16xf32>
    %136 = tpu.matmul %133, %135, %cst_87 {dimension_numbers = #tpu.dot_dimension_numbers<[1], [0], [0], [1], [0, 0, 1, 1], [], []>} : vector<32x128xbf16>, vector<128x16xbf16>, vector<32x16xf32> -> vector<32x16xf32>
    %137 = vector.broadcast %0 : vector<32x1xf32> to vector<32x16xf32>
    %138 = arith.addf %136, %137 : vector<32x16xf32>
    %c3_88 = arith.constant 3 : index
    %c0_89 = arith.constant 0 : index
    %c0_90 = arith.constant 0 : index
    %139 = vector.load %arg0[%c3_88, %c0_89, %c0_90] : memref<4x32x128xbf16, #tpu.memory_space<vmem>>, vector<1x32x128xbf16>
    %140 = vector.shape_cast %139 : vector<1x32x128xbf16> to vector<32x128xbf16>
    %c3_91 = arith.constant 3 : index
    %c1_92 = arith.constant 1 : index
    %c0_93 = arith.constant 0 : index
    %c0_94 = arith.constant 0 : index
    %141 = vector.load %arg1[%c3_91, %c1_92, %c0_93, %c0_94] : memref<4x2x128x16xbf16, #tpu.memory_space<vmem>>, vector<1x1x128x16xbf16>
    %142 = vector.shape_cast %141 : vector<1x1x128x16xbf16> to vector<128x16xbf16>
    %cst_95 = arith.constant dense<0.000000e+00> : vector<32x16xf32>
    %143 = tpu.matmul %140, %142, %cst_95 {dimension_numbers = #tpu.dot_dimension_numbers<[1], [0], [0], [1], [0, 0, 1, 1], [], []>} : vector<32x128xbf16>, vector<128x16xbf16>, vector<32x16xf32> -> vector<32x16xf32>
    %144 = vector.broadcast %0 : vector<32x1xf32> to vector<32x16xf32>
    %145 = arith.addf %143, %144 : vector<32x16xf32>
    %cst_96 = arith.constant dense<0.000000e+00> : vector<32xf32>
    %146 = vector.multi_reduction <add>, %124, %cst_96 [1] : vector<32x16xf32> to vector<32xf32>
    %147 = vector.shape_cast %146 : vector<32xf32> to vector<32x1xf32>
    %cst_97 = arith.constant dense<0.000000e+00> : vector<32xf32>
    %148 = vector.multi_reduction <add>, %131, %cst_97 [1] : vector<32x16xf32> to vector<32xf32>
    %149 = vector.shape_cast %148 : vector<32xf32> to vector<32x1xf32>
    %150 = arith.addf %147, %149 : vector<32x1xf32>
    %cst_98 = arith.constant dense<0.000000e+00> : vector<32xf32>
    %151 = vector.multi_reduction <add>, %138, %cst_98 [1] : vector<32x16xf32> to vector<32xf32>
    %152 = vector.shape_cast %151 : vector<32xf32> to vector<32x1xf32>
    %153 = arith.addf %150, %152 : vector<32x1xf32>
    %cst_99 = arith.constant dense<0.000000e+00> : vector<32xf32>
    %154 = vector.multi_reduction <add>, %145, %cst_99 [1] : vector<32x16xf32> to vector<32xf32>
    %155 = vector.shape_cast %154 : vector<32xf32> to vector<32x1xf32>
    %156 = arith.addf %153, %155 : vector<32x1xf32>
    %cst_100 = arith.constant 1.562500e-02 : f32
    %157 = vector.broadcast %cst_100 : f32 to vector<32x1xf32>
    %158 = arith.mulf %156, %157 : vector<32x1xf32>
    %159 = vector.broadcast %158 : vector<32x1xf32> to vector<32x16xf32>
    %160 = arith.subf %124, %159 : vector<32x16xf32>
    %161 = arith.mulf %160, %160 : vector<32x16xf32>
    %cst_101 = arith.constant dense<0.000000e+00> : vector<32xf32>
    %162 = vector.multi_reduction <add>, %161, %cst_101 [1] : vector<32x16xf32> to vector<32xf32>
    %163 = vector.shape_cast %162 : vector<32xf32> to vector<32x1xf32>
    %164 = vector.broadcast %158 : vector<32x1xf32> to vector<32x16xf32>
    %165 = arith.subf %131, %164 : vector<32x16xf32>
    %166 = arith.mulf %165, %165 : vector<32x16xf32>
    %cst_102 = arith.constant dense<0.000000e+00> : vector<32xf32>
    %167 = vector.multi_reduction <add>, %166, %cst_102 [1] : vector<32x16xf32> to vector<32xf32>
    %168 = vector.shape_cast %167 : vector<32xf32> to vector<32x1xf32>
    %169 = arith.addf %163, %168 : vector<32x1xf32>
    %170 = vector.broadcast %158 : vector<32x1xf32> to vector<32x16xf32>
    %171 = arith.subf %138, %170 : vector<32x16xf32>
    %172 = arith.mulf %171, %171 : vector<32x16xf32>
    %cst_103 = arith.constant dense<0.000000e+00> : vector<32xf32>
    %173 = vector.multi_reduction <add>, %172, %cst_103 [1] : vector<32x16xf32> to vector<32xf32>
    %174 = vector.shape_cast %173 : vector<32xf32> to vector<32x1xf32>
    %175 = arith.addf %169, %174 : vector<32x1xf32>
    %176 = vector.broadcast %158 : vector<32x1xf32> to vector<32x16xf32>
    %177 = arith.subf %145, %176 : vector<32x16xf32>
    %178 = arith.mulf %177, %177 : vector<32x16xf32>
    %cst_104 = arith.constant dense<0.000000e+00> : vector<32xf32>
    %179 = vector.multi_reduction <add>, %178, %cst_104 [1] : vector<32x16xf32> to vector<32xf32>
    %180 = vector.shape_cast %179 : vector<32xf32> to vector<32x1xf32>
    %181 = arith.addf %175, %180 : vector<32x1xf32>
    %cst_105 = arith.constant 1.562500e-02 : f32
    %182 = vector.broadcast %cst_105 : f32 to vector<32x1xf32>
    %183 = arith.mulf %181, %182 : vector<32x1xf32>
    %cst_106 = arith.constant 9.99999993E-9 : f32
    %184 = vector.broadcast %cst_106 : f32 to vector<32x1xf32>
    %185 = arith.addf %183, %184 : vector<32x1xf32>
    %186 = math.rsqrt %185 : vector<32x1xf32>
    %187 = vector.broadcast %158 : vector<32x1xf32> to vector<32x16xf32>
    %188 = arith.subf %124, %187 : vector<32x16xf32>
    %189 = vector.broadcast %186 : vector<32x1xf32> to vector<32x16xf32>
    %190 = arith.mulf %188, %189 : vector<32x16xf32>
    %cst_107 = arith.constant 0.000000e+00 : f32
    %191 = vector.broadcast %cst_107 : f32 to vector<32x16xf32>
    %192 = arith.cmpf oge, %190, %191 : vector<32x16xf32>
    %cst_108 = arith.constant 2.000000e-01 : f32
    %193 = vector.broadcast %cst_108 : f32 to vector<32x16xf32>
    %194 = arith.mulf %193, %190 : vector<32x16xf32>
    %195 = arith.select %192, %190, %194 : vector<32x16xi1>, vector<32x16xf32>
    %c1_109 = arith.constant 1 : index
    %c0_110 = arith.constant 0 : index
    %c0_111 = arith.constant 0 : index
    %c0_112 = arith.constant 0 : index
    %196 = vector.load %arg3[%c1_109, %c0_110, %c0_111, %c0_112] : memref<2x4x32x16xf32, #tpu.memory_space<vmem>>, vector<1x1x32x16xf32>
    %197 = vector.shape_cast %196 : vector<1x1x32x16xf32> to vector<32x16xf32>
    %198 = vector.shape_cast %195 : vector<32x16xf32> to vector<1x1x32x16xf32>
    tpu.vector_store %arg3[%c1_109, %c0_110, %c0_111, %c0_112], %198 {strides = array<i32>} : memref<2x4x32x16xf32, #tpu.memory_space<vmem>>, vector<1x1x32x16xf32>,
    %199 = vector.broadcast %158 : vector<32x1xf32> to vector<32x16xf32>
    %200 = arith.subf %131, %199 : vector<32x16xf32>
    %201 = vector.broadcast %186 : vector<32x1xf32> to vector<32x16xf32>
    %202 = arith.mulf %200, %201 : vector<32x16xf32>
    %cst_113 = arith.constant 0.000000e+00 : f32
    %203 = vector.broadcast %cst_113 : f32 to vector<32x16xf32>
    %204 = arith.cmpf oge, %202, %203 : vector<32x16xf32>
    %cst_114 = arith.constant 2.000000e-01 : f32
    %205 = vector.broadcast %cst_114 : f32 to vector<32x16xf32>
    %206 = arith.mulf %205, %202 : vector<32x16xf32>
    %207 = arith.select %204, %202, %206 : vector<32x16xi1>, vector<32x16xf32>
    %c1_115 = arith.constant 1 : index
    %c1_116 = arith.constant 1 : index
    %c0_117 = arith.constant 0 : index
    %c0_118 = arith.constant 0 : index
    %208 = vector.load %arg3[%c1_115, %c1_116, %c0_117, %c0_118] : memref<2x4x32x16xf32, #tpu.memory_space<vmem>>, vector<1x1x32x16xf32>
    %209 = vector.shape_cast %208 : vector<1x1x32x16xf32> to vector<32x16xf32>
    %210 = vector.shape_cast %207 : vector<32x16xf32> to vector<1x1x32x16xf32>
    tpu.vector_store %arg3[%c1_115, %c1_116, %c0_117, %c0_118], %210 {strides = array<i32>} : memref<2x4x32x16xf32, #tpu.memory_space<vmem>>, vector<1x1x32x16xf32>,
    %211 = vector.broadcast %158 : vector<32x1xf32> to vector<32x16xf32>
    %212 = arith.subf %138, %211 : vector<32x16xf32>
    %213 = vector.broadcast %186 : vector<32x1xf32> to vector<32x16xf32>
    %214 = arith.mulf %212, %213 : vector<32x16xf32>
    %cst_119 = arith.constant 0.000000e+00 : f32
    %215 = vector.broadcast %cst_119 : f32 to vector<32x16xf32>
    %216 = arith.cmpf oge, %214, %215 : vector<32x16xf32>
    %cst_120 = arith.constant 2.000000e-01 : f32
    %217 = vector.broadcast %cst_120 : f32 to vector<32x16xf32>
    %218 = arith.mulf %217, %214 : vector<32x16xf32>
    %219 = arith.select %216, %214, %218 : vector<32x16xi1>, vector<32x16xf32>
    %c1_121 = arith.constant 1 : index
    %c2_122 = arith.constant 2 : index
    %c0_123 = arith.constant 0 : index
    %c0_124 = arith.constant 0 : index
    %220 = vector.load %arg3[%c1_121, %c2_122, %c0_123, %c0_124] : memref<2x4x32x16xf32, #tpu.memory_space<vmem>>, vector<1x1x32x16xf32>
    %221 = vector.shape_cast %220 : vector<1x1x32x16xf32> to vector<32x16xf32>
    %222 = vector.shape_cast %219 : vector<32x16xf32> to vector<1x1x32x16xf32>
    tpu.vector_store %arg3[%c1_121, %c2_122, %c0_123, %c0_124], %222 {strides = array<i32>} : memref<2x4x32x16xf32, #tpu.memory_space<vmem>>, vector<1x1x32x16xf32>,
    %223 = vector.broadcast %158 : vector<32x1xf32> to vector<32x16xf32>
    %224 = arith.subf %145, %223 : vector<32x16xf32>
    %225 = vector.broadcast %186 : vector<32x1xf32> to vector<32x16xf32>
    %226 = arith.mulf %224, %225 : vector<32x16xf32>
    %cst_125 = arith.constant 0.000000e+00 : f32
    %227 = vector.broadcast %cst_125 : f32 to vector<32x16xf32>
    %228 = arith.cmpf oge, %226, %227 : vector<32x16xf32>
    %cst_126 = arith.constant 2.000000e-01 : f32
    %229 = vector.broadcast %cst_126 : f32 to vector<32x16xf32>
    %230 = arith.mulf %229, %226 : vector<32x16xf32>
    %231 = arith.select %228, %226, %230 : vector<32x16xi1>, vector<32x16xf32>
    %c1_127 = arith.constant 1 : index
    %c3_128 = arith.constant 3 : index
    %c0_129 = arith.constant 0 : index
    %c0_130 = arith.constant 0 : index
    %232 = vector.load %arg3[%c1_127, %c3_128, %c0_129, %c0_130] : memref<2x4x32x16xf32, #tpu.memory_space<vmem>>, vector<1x1x32x16xf32>
    %233 = vector.shape_cast %232 : vector<1x1x32x16xf32> to vector<32x16xf32>
    %234 = vector.shape_cast %231 : vector<32x16xf32> to vector<1x1x32x16xf32>
    tpu.vector_store %arg3[%c1_127, %c3_128, %c0_129, %c0_130], %234 {strides = array<i32>} : memref<2x4x32x16xf32, #tpu.memory_space<vmem>>, vector<1x1x32x16xf32>,
    return
  }
}

module attributes {stable_mosaic.version = 11 : i64} {
  func.func @kernel(%arg0: memref<4x16x128xbf16, #tpu.memory_space<vmem>>, %arg1: memref<4x2x128x64xbf16, #tpu.memory_space<vmem>>, %arg2: memref<16x1xf32, #tpu.memory_space<vmem>>, %arg3: memref<2x4x16x64xf32, #tpu.memory_space<vmem>>) attributes {dimension_semantics = [], scalar_prefetch = 0 : i64, scratch_operands = 0 : i64, tpu.core_type = #tpu.core_type<tc>} {
    %c0 = arith.constant 0 : index
    %c0_0 = arith.constant 0 : index
    %0 = vector.load %arg2[%c0, %c0_0] : memref<16x1xf32, #tpu.memory_space<vmem>>, vector<16x1xf32>
    %c0_1 = arith.constant 0 : index
    %c0_2 = arith.constant 0 : index
    %c0_3 = arith.constant 0 : index
    %1 = vector.load %arg0[%c0_1, %c0_2, %c0_3] : memref<4x16x128xbf16, #tpu.memory_space<vmem>>, vector<1x16x128xbf16>
    %2 = vector.shape_cast %1 : vector<1x16x128xbf16> to vector<16x128xbf16>
    %c0_4 = arith.constant 0 : index
    %c0_5 = arith.constant 0 : index
    %c0_6 = arith.constant 0 : index
    %c0_7 = arith.constant 0 : index
    %3 = vector.load %arg1[%c0_4, %c0_5, %c0_6, %c0_7] : memref<4x2x128x64xbf16, #tpu.memory_space<vmem>>, vector<1x1x128x64xbf16>
    %4 = vector.shape_cast %3 : vector<1x1x128x64xbf16> to vector<128x64xbf16>
    %cst = arith.constant dense<0.000000e+00> : vector<16x64xf32>
    %5 = tpu.matmul %2, %4, %cst {dimension_numbers = #tpu.dot_dimension_numbers<[1], [0], [0], [1], [0, 0, 1, 1], [], []>} : vector<16x128xbf16>, vector<128x64xbf16>, vector<16x64xf32> -> vector<16x64xf32>
    %6 = vector.broadcast %0 : vector<16x1xf32> to vector<16x64xf32>
    %7 = arith.addf %5, %6 : vector<16x64xf32>
    %c1 = arith.constant 1 : index
    %c0_8 = arith.constant 0 : index
    %c0_9 = arith.constant 0 : index
    %8 = vector.load %arg0[%c1, %c0_8, %c0_9] : memref<4x16x128xbf16, #tpu.memory_space<vmem>>, vector<1x16x128xbf16>
    %9 = vector.shape_cast %8 : vector<1x16x128xbf16> to vector<16x128xbf16>
    %c1_10 = arith.constant 1 : index
    %c0_11 = arith.constant 0 : index
    %c0_12 = arith.constant 0 : index
    %c0_13 = arith.constant 0 : index
    %10 = vector.load %arg1[%c1_10, %c0_11, %c0_12, %c0_13] : memref<4x2x128x64xbf16, #tpu.memory_space<vmem>>, vector<1x1x128x64xbf16>
    %11 = vector.shape_cast %10 : vector<1x1x128x64xbf16> to vector<128x64xbf16>
    %cst_14 = arith.constant dense<0.000000e+00> : vector<16x64xf32>
    %12 = tpu.matmul %9, %11, %cst_14 {dimension_numbers = #tpu.dot_dimension_numbers<[1], [0], [0], [1], [0, 0, 1, 1], [], []>} : vector<16x128xbf16>, vector<128x64xbf16>, vector<16x64xf32> -> vector<16x64xf32>
    %13 = vector.broadcast %0 : vector<16x1xf32> to vector<16x64xf32>
    %14 = arith.addf %12, %13 : vector<16x64xf32>
    %c2 = arith.constant 2 : index
    %c0_15 = arith.constant 0 : index
    %c0_16 = arith.constant 0 : index
    %15 = vector.load %arg0[%c2, %c0_15, %c0_16] : memref<4x16x128xbf16, #tpu.memory_space<vmem>>, vector<1x16x128xbf16>
    %16 = vector.shape_cast %15 : vector<1x16x128xbf16> to vector<16x128xbf16>
    %c2_17 = arith.constant 2 : index
    %c0_18 = arith.constant 0 : index
    %c0_19 = arith.constant 0 : index
    %c0_20 = arith.constant 0 : index
    %17 = vector.load %arg1[%c2_17, %c0_18, %c0_19, %c0_20] : memref<4x2x128x64xbf16, #tpu.memory_space<vmem>>, vector<1x1x128x64xbf16>
    %18 = vector.shape_cast %17 : vector<1x1x128x64xbf16> to vector<128x64xbf16>
    %cst_21 = arith.constant dense<0.000000e+00> : vector<16x64xf32>
    %19 = tpu.matmul %16, %18, %cst_21 {dimension_numbers = #tpu.dot_dimension_numbers<[1], [0], [0], [1], [0, 0, 1, 1], [], []>} : vector<16x128xbf16>, vector<128x64xbf16>, vector<16x64xf32> -> vector<16x64xf32>
    %20 = vector.broadcast %0 : vector<16x1xf32> to vector<16x64xf32>
    %21 = arith.addf %19, %20 : vector<16x64xf32>
    %c3 = arith.constant 3 : index
    %c0_22 = arith.constant 0 : index
    %c0_23 = arith.constant 0 : index
    %22 = vector.load %arg0[%c3, %c0_22, %c0_23] : memref<4x16x128xbf16, #tpu.memory_space<vmem>>, vector<1x16x128xbf16>
    %23 = vector.shape_cast %22 : vector<1x16x128xbf16> to vector<16x128xbf16>
    %c3_24 = arith.constant 3 : index
    %c0_25 = arith.constant 0 : index
    %c0_26 = arith.constant 0 : index
    %c0_27 = arith.constant 0 : index
    %24 = vector.load %arg1[%c3_24, %c0_25, %c0_26, %c0_27] : memref<4x2x128x64xbf16, #tpu.memory_space<vmem>>, vector<1x1x128x64xbf16>
    %25 = vector.shape_cast %24 : vector<1x1x128x64xbf16> to vector<128x64xbf16>
    %cst_28 = arith.constant dense<0.000000e+00> : vector<16x64xf32>
    %26 = tpu.matmul %23, %25, %cst_28 {dimension_numbers = #tpu.dot_dimension_numbers<[1], [0], [0], [1], [0, 0, 1, 1], [], []>} : vector<16x128xbf16>, vector<128x64xbf16>, vector<16x64xf32> -> vector<16x64xf32>
    %27 = vector.broadcast %0 : vector<16x1xf32> to vector<16x64xf32>
    %28 = arith.addf %26, %27 : vector<16x64xf32>
    %cst_29 = arith.constant dense<0.000000e+00> : vector<16xf32>
    %29 = vector.multi_reduction <add>, %7, %cst_29 [1] : vector<16x64xf32> to vector<16xf32>
    %30 = vector.shape_cast %29 : vector<16xf32> to vector<16x1xf32>
    %cst_30 = arith.constant dense<0.000000e+00> : vector<16xf32>
    %31 = vector.multi_reduction <add>, %14, %cst_30 [1] : vector<16x64xf32> to vector<16xf32>
    %32 = vector.shape_cast %31 : vector<16xf32> to vector<16x1xf32>
    %33 = arith.addf %30, %32 : vector<16x1xf32>
    %cst_31 = arith.constant dense<0.000000e+00> : vector<16xf32>
    %34 = vector.multi_reduction <add>, %21, %cst_31 [1] : vector<16x64xf32> to vector<16xf32>
    %35 = vector.shape_cast %34 : vector<16xf32> to vector<16x1xf32>
    %36 = arith.addf %33, %35 : vector<16x1xf32>
    %cst_32 = arith.constant dense<0.000000e+00> : vector<16xf32>
    %37 = vector.multi_reduction <add>, %28, %cst_32 [1] : vector<16x64xf32> to vector<16xf32>
    %38 = vector.shape_cast %37 : vector<16xf32> to vector<16x1xf32>
    %39 = arith.addf %36, %38 : vector<16x1xf32>
    %cst_33 = arith.constant 3.906250e-03 : f32
    %40 = vector.broadcast %cst_33 : f32 to vector<16x1xf32>
    %41 = arith.mulf %39, %40 : vector<16x1xf32>
    %42 = vector.broadcast %41 : vector<16x1xf32> to vector<16x64xf32>
    %43 = arith.subf %7, %42 : vector<16x64xf32>
    %44 = arith.mulf %43, %43 : vector<16x64xf32>
    %cst_34 = arith.constant dense<0.000000e+00> : vector<16xf32>
    %45 = vector.multi_reduction <add>, %44, %cst_34 [1] : vector<16x64xf32> to vector<16xf32>
    %46 = vector.shape_cast %45 : vector<16xf32> to vector<16x1xf32>
    %47 = vector.broadcast %41 : vector<16x1xf32> to vector<16x64xf32>
    %48 = arith.subf %14, %47 : vector<16x64xf32>
    %49 = arith.mulf %48, %48 : vector<16x64xf32>
    %cst_35 = arith.constant dense<0.000000e+00> : vector<16xf32>
    %50 = vector.multi_reduction <add>, %49, %cst_35 [1] : vector<16x64xf32> to vector<16xf32>
    %51 = vector.shape_cast %50 : vector<16xf32> to vector<16x1xf32>
    %52 = arith.addf %46, %51 : vector<16x1xf32>
    %53 = vector.broadcast %41 : vector<16x1xf32> to vector<16x64xf32>
    %54 = arith.subf %21, %53 : vector<16x64xf32>
    %55 = arith.mulf %54, %54 : vector<16x64xf32>
    %cst_36 = arith.constant dense<0.000000e+00> : vector<16xf32>
    %56 = vector.multi_reduction <add>, %55, %cst_36 [1] : vector<16x64xf32> to vector<16xf32>
    %57 = vector.shape_cast %56 : vector<16xf32> to vector<16x1xf32>
    %58 = arith.addf %52, %57 : vector<16x1xf32>
    %59 = vector.broadcast %41 : vector<16x1xf32> to vector<16x64xf32>
    %60 = arith.subf %28, %59 : vector<16x64xf32>
    %61 = arith.mulf %60, %60 : vector<16x64xf32>
    %cst_37 = arith.constant dense<0.000000e+00> : vector<16xf32>
    %62 = vector.multi_reduction <add>, %61, %cst_37 [1] : vector<16x64xf32> to vector<16xf32>
    %63 = vector.shape_cast %62 : vector<16xf32> to vector<16x1xf32>
    %64 = arith.addf %58, %63 : vector<16x1xf32>
    %cst_38 = arith.constant 3.906250e-03 : f32
    %65 = vector.broadcast %cst_38 : f32 to vector<16x1xf32>
    %66 = arith.mulf %64, %65 : vector<16x1xf32>
    %cst_39 = arith.constant 9.99999993E-9 : f32
    %67 = vector.broadcast %cst_39 : f32 to vector<16x1xf32>
    %68 = arith.addf %66, %67 : vector<16x1xf32>
    %69 = math.rsqrt %68 : vector<16x1xf32>
    %70 = vector.broadcast %41 : vector<16x1xf32> to vector<16x64xf32>
    %71 = arith.subf %7, %70 : vector<16x64xf32>
    %72 = vector.broadcast %69 : vector<16x1xf32> to vector<16x64xf32>
    %73 = arith.mulf %71, %72 : vector<16x64xf32>
    %cst_40 = arith.constant 0.000000e+00 : f32
    %74 = vector.broadcast %cst_40 : f32 to vector<16x64xf32>
    %75 = arith.cmpf oge, %73, %74 : vector<16x64xf32>
    %cst_41 = arith.constant 2.000000e-01 : f32
    %76 = vector.broadcast %cst_41 : f32 to vector<16x64xf32>
    %77 = arith.mulf %76, %73 : vector<16x64xf32>
    %78 = arith.select %75, %73, %77 : vector<16x64xi1>, vector<16x64xf32>
    %c0_42 = arith.constant 0 : index
    %c0_43 = arith.constant 0 : index
    %c0_44 = arith.constant 0 : index
    %c0_45 = arith.constant 0 : index
    %79 = vector.load %arg3[%c0_42, %c0_43, %c0_44, %c0_45] : memref<2x4x16x64xf32, #tpu.memory_space<vmem>>, vector<1x1x16x64xf32>
    %80 = vector.shape_cast %79 : vector<1x1x16x64xf32> to vector<16x64xf32>
    %81 = vector.shape_cast %78 : vector<16x64xf32> to vector<1x1x16x64xf32>
    tpu.vector_store %arg3[%c0_42, %c0_43, %c0_44, %c0_45], %81 {strides = array<i32>} : memref<2x4x16x64xf32, #tpu.memory_space<vmem>>, vector<1x1x16x64xf32>,
    %82 = vector.broadcast %41 : vector<16x1xf32> to vector<16x64xf32>
    %83 = arith.subf %14, %82 : vector<16x64xf32>
    %84 = vector.broadcast %69 : vector<16x1xf32> to vector<16x64xf32>
    %85 = arith.mulf %83, %84 : vector<16x64xf32>
    %cst_46 = arith.constant 0.000000e+00 : f32
    %86 = vector.broadcast %cst_46 : f32 to vector<16x64xf32>
    %87 = arith.cmpf oge, %85, %86 : vector<16x64xf32>
    %cst_47 = arith.constant 2.000000e-01 : f32
    %88 = vector.broadcast %cst_47 : f32 to vector<16x64xf32>
    %89 = arith.mulf %88, %85 : vector<16x64xf32>
    %90 = arith.select %87, %85, %89 : vector<16x64xi1>, vector<16x64xf32>
    %c0_48 = arith.constant 0 : index
    %c1_49 = arith.constant 1 : index
    %c0_50 = arith.constant 0 : index
    %c0_51 = arith.constant 0 : index
    %91 = vector.load %arg3[%c0_48, %c1_49, %c0_50, %c0_51] : memref<2x4x16x64xf32, #tpu.memory_space<vmem>>, vector<1x1x16x64xf32>
    %92 = vector.shape_cast %91 : vector<1x1x16x64xf32> to vector<16x64xf32>
    %93 = vector.shape_cast %90 : vector<16x64xf32> to vector<1x1x16x64xf32>
    tpu.vector_store %arg3[%c0_48, %c1_49, %c0_50, %c0_51], %93 {strides = array<i32>} : memref<2x4x16x64xf32, #tpu.memory_space<vmem>>, vector<1x1x16x64xf32>,
    %94 = vector.broadcast %41 : vector<16x1xf32> to vector<16x64xf32>
    %95 = arith.subf %21, %94 : vector<16x64xf32>
    %96 = vector.broadcast %69 : vector<16x1xf32> to vector<16x64xf32>
    %97 = arith.mulf %95, %96 : vector<16x64xf32>
    %cst_52 = arith.constant 0.000000e+00 : f32
    %98 = vector.broadcast %cst_52 : f32 to vector<16x64xf32>
    %99 = arith.cmpf oge, %97, %98 : vector<16x64xf32>
    %cst_53 = arith.constant 2.000000e-01 : f32
    %100 = vector.broadcast %cst_53 : f32 to vector<16x64xf32>
    %101 = arith.mulf %100, %97 : vector<16x64xf32>
    %102 = arith.select %99, %97, %101 : vector<16x64xi1>, vector<16x64xf32>
    %c0_54 = arith.constant 0 : index
    %c2_55 = arith.constant 2 : index
    %c0_56 = arith.constant 0 : index
    %c0_57 = arith.constant 0 : index
    %103 = vector.load %arg3[%c0_54, %c2_55, %c0_56, %c0_57] : memref<2x4x16x64xf32, #tpu.memory_space<vmem>>, vector<1x1x16x64xf32>
    %104 = vector.shape_cast %103 : vector<1x1x16x64xf32> to vector<16x64xf32>
    %105 = vector.shape_cast %102 : vector<16x64xf32> to vector<1x1x16x64xf32>
    tpu.vector_store %arg3[%c0_54, %c2_55, %c0_56, %c0_57], %105 {strides = array<i32>} : memref<2x4x16x64xf32, #tpu.memory_space<vmem>>, vector<1x1x16x64xf32>,
    %106 = vector.broadcast %41 : vector<16x1xf32> to vector<16x64xf32>
    %107 = arith.subf %28, %106 : vector<16x64xf32>
    %108 = vector.broadcast %69 : vector<16x1xf32> to vector<16x64xf32>
    %109 = arith.mulf %107, %108 : vector<16x64xf32>
    %cst_58 = arith.constant 0.000000e+00 : f32
    %110 = vector.broadcast %cst_58 : f32 to vector<16x64xf32>
    %111 = arith.cmpf oge, %109, %110 : vector<16x64xf32>
    %cst_59 = arith.constant 2.000000e-01 : f32
    %112 = vector.broadcast %cst_59 : f32 to vector<16x64xf32>
    %113 = arith.mulf %112, %109 : vector<16x64xf32>
    %114 = arith.select %111, %109, %113 : vector<16x64xi1>, vector<16x64xf32>
    %c0_60 = arith.constant 0 : index
    %c3_61 = arith.constant 3 : index
    %c0_62 = arith.constant 0 : index
    %c0_63 = arith.constant 0 : index
    %115 = vector.load %arg3[%c0_60, %c3_61, %c0_62, %c0_63] : memref<2x4x16x64xf32, #tpu.memory_space<vmem>>, vector<1x1x16x64xf32>
    %116 = vector.shape_cast %115 : vector<1x1x16x64xf32> to vector<16x64xf32>
    %117 = vector.shape_cast %114 : vector<16x64xf32> to vector<1x1x16x64xf32>
    tpu.vector_store %arg3[%c0_60, %c3_61, %c0_62, %c0_63], %117 {strides = array<i32>} : memref<2x4x16x64xf32, #tpu.memory_space<vmem>>, vector<1x1x16x64xf32>,
    %c0_64 = arith.constant 0 : index
    %c0_65 = arith.constant 0 : index
    %c0_66 = arith.constant 0 : index
    %118 = vector.load %arg0[%c0_64, %c0_65, %c0_66] : memref<4x16x128xbf16, #tpu.memory_space<vmem>>, vector<1x16x128xbf16>
    %119 = vector.shape_cast %118 : vector<1x16x128xbf16> to vector<16x128xbf16>
    %c0_67 = arith.constant 0 : index
    %c1_68 = arith.constant 1 : index
    %c0_69 = arith.constant 0 : index
    %c0_70 = arith.constant 0 : index
    %120 = vector.load %arg1[%c0_67, %c1_68, %c0_69, %c0_70] : memref<4x2x128x64xbf16, #tpu.memory_space<vmem>>, vector<1x1x128x64xbf16>
    %121 = vector.shape_cast %120 : vector<1x1x128x64xbf16> to vector<128x64xbf16>
    %cst_71 = arith.constant dense<0.000000e+00> : vector<16x64xf32>
    %122 = tpu.matmul %119, %121, %cst_71 {dimension_numbers = #tpu.dot_dimension_numbers<[1], [0], [0], [1], [0, 0, 1, 1], [], []>} : vector<16x128xbf16>, vector<128x64xbf16>, vector<16x64xf32> -> vector<16x64xf32>
    %123 = vector.broadcast %0 : vector<16x1xf32> to vector<16x64xf32>
    %124 = arith.addf %122, %123 : vector<16x64xf32>
    %c1_72 = arith.constant 1 : index
    %c0_73 = arith.constant 0 : index
    %c0_74 = arith.constant 0 : index
    %125 = vector.load %arg0[%c1_72, %c0_73, %c0_74] : memref<4x16x128xbf16, #tpu.memory_space<vmem>>, vector<1x16x128xbf16>
    %126 = vector.shape_cast %125 : vector<1x16x128xbf16> to vector<16x128xbf16>
    %c1_75 = arith.constant 1 : index
    %c1_76 = arith.constant 1 : index
    %c0_77 = arith.constant 0 : index
    %c0_78 = arith.constant 0 : index
    %127 = vector.load %arg1[%c1_75, %c1_76, %c0_77, %c0_78] : memref<4x2x128x64xbf16, #tpu.memory_space<vmem>>, vector<1x1x128x64xbf16>
    %128 = vector.shape_cast %127 : vector<1x1x128x64xbf16> to vector<128x64xbf16>
    %cst_79 = arith.constant dense<0.000000e+00> : vector<16x64xf32>
    %129 = tpu.matmul %126, %128, %cst_79 {dimension_numbers = #tpu.dot_dimension_numbers<[1], [0], [0], [1], [0, 0, 1, 1], [], []>} : vector<16x128xbf16>, vector<128x64xbf16>, vector<16x64xf32> -> vector<16x64xf32>
    %130 = vector.broadcast %0 : vector<16x1xf32> to vector<16x64xf32>
    %131 = arith.addf %129, %130 : vector<16x64xf32>
    %c2_80 = arith.constant 2 : index
    %c0_81 = arith.constant 0 : index
    %c0_82 = arith.constant 0 : index
    %132 = vector.load %arg0[%c2_80, %c0_81, %c0_82] : memref<4x16x128xbf16, #tpu.memory_space<vmem>>, vector<1x16x128xbf16>
    %133 = vector.shape_cast %132 : vector<1x16x128xbf16> to vector<16x128xbf16>
    %c2_83 = arith.constant 2 : index
    %c1_84 = arith.constant 1 : index
    %c0_85 = arith.constant 0 : index
    %c0_86 = arith.constant 0 : index
    %134 = vector.load %arg1[%c2_83, %c1_84, %c0_85, %c0_86] : memref<4x2x128x64xbf16, #tpu.memory_space<vmem>>, vector<1x1x128x64xbf16>
    %135 = vector.shape_cast %134 : vector<1x1x128x64xbf16> to vector<128x64xbf16>
    %cst_87 = arith.constant dense<0.000000e+00> : vector<16x64xf32>
    %136 = tpu.matmul %133, %135, %cst_87 {dimension_numbers = #tpu.dot_dimension_numbers<[1], [0], [0], [1], [0, 0, 1, 1], [], []>} : vector<16x128xbf16>, vector<128x64xbf16>, vector<16x64xf32> -> vector<16x64xf32>
    %137 = vector.broadcast %0 : vector<16x1xf32> to vector<16x64xf32>
    %138 = arith.addf %136, %137 : vector<16x64xf32>
    %c3_88 = arith.constant 3 : index
    %c0_89 = arith.constant 0 : index
    %c0_90 = arith.constant 0 : index
    %139 = vector.load %arg0[%c3_88, %c0_89, %c0_90] : memref<4x16x128xbf16, #tpu.memory_space<vmem>>, vector<1x16x128xbf16>
    %140 = vector.shape_cast %139 : vector<1x16x128xbf16> to vector<16x128xbf16>
    %c3_91 = arith.constant 3 : index
    %c1_92 = arith.constant 1 : index
    %c0_93 = arith.constant 0 : index
    %c0_94 = arith.constant 0 : index
    %141 = vector.load %arg1[%c3_91, %c1_92, %c0_93, %c0_94] : memref<4x2x128x64xbf16, #tpu.memory_space<vmem>>, vector<1x1x128x64xbf16>
    %142 = vector.shape_cast %141 : vector<1x1x128x64xbf16> to vector<128x64xbf16>
    %cst_95 = arith.constant dense<0.000000e+00> : vector<16x64xf32>
    %143 = tpu.matmul %140, %142, %cst_95 {dimension_numbers = #tpu.dot_dimension_numbers<[1], [0], [0], [1], [0, 0, 1, 1], [], []>} : vector<16x128xbf16>, vector<128x64xbf16>, vector<16x64xf32> -> vector<16x64xf32>
    %144 = vector.broadcast %0 : vector<16x1xf32> to vector<16x64xf32>
    %145 = arith.addf %143, %144 : vector<16x64xf32>
    %cst_96 = arith.constant dense<0.000000e+00> : vector<16xf32>
    %146 = vector.multi_reduction <add>, %124, %cst_96 [1] : vector<16x64xf32> to vector<16xf32>
    %147 = vector.shape_cast %146 : vector<16xf32> to vector<16x1xf32>
    %cst_97 = arith.constant dense<0.000000e+00> : vector<16xf32>
    %148 = vector.multi_reduction <add>, %131, %cst_97 [1] : vector<16x64xf32> to vector<16xf32>
    %149 = vector.shape_cast %148 : vector<16xf32> to vector<16x1xf32>
    %150 = arith.addf %147, %149 : vector<16x1xf32>
    %cst_98 = arith.constant dense<0.000000e+00> : vector<16xf32>
    %151 = vector.multi_reduction <add>, %138, %cst_98 [1] : vector<16x64xf32> to vector<16xf32>
    %152 = vector.shape_cast %151 : vector<16xf32> to vector<16x1xf32>
    %153 = arith.addf %150, %152 : vector<16x1xf32>
    %cst_99 = arith.constant dense<0.000000e+00> : vector<16xf32>
    %154 = vector.multi_reduction <add>, %145, %cst_99 [1] : vector<16x64xf32> to vector<16xf32>
    %155 = vector.shape_cast %154 : vector<16xf32> to vector<16x1xf32>
    %156 = arith.addf %153, %155 : vector<16x1xf32>
    %cst_100 = arith.constant 3.906250e-03 : f32
    %157 = vector.broadcast %cst_100 : f32 to vector<16x1xf32>
    %158 = arith.mulf %156, %157 : vector<16x1xf32>
    %159 = vector.broadcast %158 : vector<16x1xf32> to vector<16x64xf32>
    %160 = arith.subf %124, %159 : vector<16x64xf32>
    %161 = arith.mulf %160, %160 : vector<16x64xf32>
    %cst_101 = arith.constant dense<0.000000e+00> : vector<16xf32>
    %162 = vector.multi_reduction <add>, %161, %cst_101 [1] : vector<16x64xf32> to vector<16xf32>
    %163 = vector.shape_cast %162 : vector<16xf32> to vector<16x1xf32>
    %164 = vector.broadcast %158 : vector<16x1xf32> to vector<16x64xf32>
    %165 = arith.subf %131, %164 : vector<16x64xf32>
    %166 = arith.mulf %165, %165 : vector<16x64xf32>
    %cst_102 = arith.constant dense<0.000000e+00> : vector<16xf32>
    %167 = vector.multi_reduction <add>, %166, %cst_102 [1] : vector<16x64xf32> to vector<16xf32>
    %168 = vector.shape_cast %167 : vector<16xf32> to vector<16x1xf32>
    %169 = arith.addf %163, %168 : vector<16x1xf32>
    %170 = vector.broadcast %158 : vector<16x1xf32> to vector<16x64xf32>
    %171 = arith.subf %138, %170 : vector<16x64xf32>
    %172 = arith.mulf %171, %171 : vector<16x64xf32>
    %cst_103 = arith.constant dense<0.000000e+00> : vector<16xf32>
    %173 = vector.multi_reduction <add>, %172, %cst_103 [1] : vector<16x64xf32> to vector<16xf32>
    %174 = vector.shape_cast %173 : vector<16xf32> to vector<16x1xf32>
    %175 = arith.addf %169, %174 : vector<16x1xf32>
    %176 = vector.broadcast %158 : vector<16x1xf32> to vector<16x64xf32>
    %177 = arith.subf %145, %176 : vector<16x64xf32>
    %178 = arith.mulf %177, %177 : vector<16x64xf32>
    %cst_104 = arith.constant dense<0.000000e+00> : vector<16xf32>
    %179 = vector.multi_reduction <add>, %178, %cst_104 [1] : vector<16x64xf32> to vector<16xf32>
    %180 = vector.shape_cast %179 : vector<16xf32> to vector<16x1xf32>
    %181 = arith.addf %175, %180 : vector<16x1xf32>
    %cst_105 = arith.constant 3.906250e-03 : f32
    %182 = vector.broadcast %cst_105 : f32 to vector<16x1xf32>
    %183 = arith.mulf %181, %182 : vector<16x1xf32>
    %cst_106 = arith.constant 9.99999993E-9 : f32
    %184 = vector.broadcast %cst_106 : f32 to vector<16x1xf32>
    %185 = arith.addf %183, %184 : vector<16x1xf32>
    %186 = math.rsqrt %185 : vector<16x1xf32>
    %187 = vector.broadcast %158 : vector<16x1xf32> to vector<16x64xf32>
    %188 = arith.subf %124, %187 : vector<16x64xf32>
    %189 = vector.broadcast %186 : vector<16x1xf32> to vector<16x64xf32>
    %190 = arith.mulf %188, %189 : vector<16x64xf32>
    %cst_107 = arith.constant 0.000000e+00 : f32
    %191 = vector.broadcast %cst_107 : f32 to vector<16x64xf32>
    %192 = arith.cmpf oge, %190, %191 : vector<16x64xf32>
    %cst_108 = arith.constant 2.000000e-01 : f32
    %193 = vector.broadcast %cst_108 : f32 to vector<16x64xf32>
    %194 = arith.mulf %193, %190 : vector<16x64xf32>
    %195 = arith.select %192, %190, %194 : vector<16x64xi1>, vector<16x64xf32>
    %c1_109 = arith.constant 1 : index
    %c0_110 = arith.constant 0 : index
    %c0_111 = arith.constant 0 : index
    %c0_112 = arith.constant 0 : index
    %196 = vector.load %arg3[%c1_109, %c0_110, %c0_111, %c0_112] : memref<2x4x16x64xf32, #tpu.memory_space<vmem>>, vector<1x1x16x64xf32>
    %197 = vector.shape_cast %196 : vector<1x1x16x64xf32> to vector<16x64xf32>
    %198 = vector.shape_cast %195 : vector<16x64xf32> to vector<1x1x16x64xf32>
    tpu.vector_store %arg3[%c1_109, %c0_110, %c0_111, %c0_112], %198 {strides = array<i32>} : memref<2x4x16x64xf32, #tpu.memory_space<vmem>>, vector<1x1x16x64xf32>,
    %199 = vector.broadcast %158 : vector<16x1xf32> to vector<16x64xf32>
    %200 = arith.subf %131, %199 : vector<16x64xf32>
    %201 = vector.broadcast %186 : vector<16x1xf32> to vector<16x64xf32>
    %202 = arith.mulf %200, %201 : vector<16x64xf32>
    %cst_113 = arith.constant 0.000000e+00 : f32
    %203 = vector.broadcast %cst_113 : f32 to vector<16x64xf32>
    %204 = arith.cmpf oge, %202, %203 : vector<16x64xf32>
    %cst_114 = arith.constant 2.000000e-01 : f32
    %205 = vector.broadcast %cst_114 : f32 to vector<16x64xf32>
    %206 = arith.mulf %205, %202 : vector<16x64xf32>
    %207 = arith.select %204, %202, %206 : vector<16x64xi1>, vector<16x64xf32>
    %c1_115 = arith.constant 1 : index
    %c1_116 = arith.constant 1 : index
    %c0_117 = arith.constant 0 : index
    %c0_118 = arith.constant 0 : index
    %208 = vector.load %arg3[%c1_115, %c1_116, %c0_117, %c0_118] : memref<2x4x16x64xf32, #tpu.memory_space<vmem>>, vector<1x1x16x64xf32>
    %209 = vector.shape_cast %208 : vector<1x1x16x64xf32> to vector<16x64xf32>
    %210 = vector.shape_cast %207 : vector<16x64xf32> to vector<1x1x16x64xf32>
    tpu.vector_store %arg3[%c1_115, %c1_116, %c0_117, %c0_118], %210 {strides = array<i32>} : memref<2x4x16x64xf32, #tpu.memory_space<vmem>>, vector<1x1x16x64xf32>,
    %211 = vector.broadcast %158 : vector<16x1xf32> to vector<16x64xf32>
    %212 = arith.subf %138, %211 : vector<16x64xf32>
    %213 = vector.broadcast %186 : vector<16x1xf32> to vector<16x64xf32>
    %214 = arith.mulf %212, %213 : vector<16x64xf32>
    %cst_119 = arith.constant 0.000000e+00 : f32
    %215 = vector.broadcast %cst_119 : f32 to vector<16x64xf32>
    %216 = arith.cmpf oge, %214, %215 : vector<16x64xf32>
    %cst_120 = arith.constant 2.000000e-01 : f32
    %217 = vector.broadcast %cst_120 : f32 to vector<16x64xf32>
    %218 = arith.mulf %217, %214 : vector<16x64xf32>
    %219 = arith.select %216, %214, %218 : vector<16x64xi1>, vector<16x64xf32>
    %c1_121 = arith.constant 1 : index
    %c2_122 = arith.constant 2 : index
    %c0_123 = arith.constant 0 : index
    %c0_124 = arith.constant 0 : index
    %220 = vector.load %arg3[%c1_121, %c2_122, %c0_123, %c0_124] : memref<2x4x16x64xf32, #tpu.memory_space<vmem>>, vector<1x1x16x64xf32>
    %221 = vector.shape_cast %220 : vector<1x1x16x64xf32> to vector<16x64xf32>
    %222 = vector.shape_cast %219 : vector<16x64xf32> to vector<1x1x16x64xf32>
    tpu.vector_store %arg3[%c1_121, %c2_122, %c0_123, %c0_124], %222 {strides = array<i32>} : memref<2x4x16x64xf32, #tpu.memory_space<vmem>>, vector<1x1x16x64xf32>,
    %223 = vector.broadcast %158 : vector<16x1xf32> to vector<16x64xf32>
    %224 = arith.subf %145, %223 : vector<16x64xf32>
    %225 = vector.broadcast %186 : vector<16x1xf32> to vector<16x64xf32>
    %226 = arith.mulf %224, %225 : vector<16x64xf32>
    %cst_125 = arith.constant 0.000000e+00 : f32
    %227 = vector.broadcast %cst_125 : f32 to vector<16x64xf32>
    %228 = arith.cmpf oge, %226, %227 : vector<16x64xf32>
    %cst_126 = arith.constant 2.000000e-01 : f32
    %229 = vector.broadcast %cst_126 : f32 to vector<16x64xf32>
    %230 = arith.mulf %229, %226 : vector<16x64xf32>
    %231 = arith.select %228, %226, %230 : vector<16x64xi1>, vector<16x64xf32>
    %c1_127 = arith.constant 1 : index
    %c3_128 = arith.constant 3 : index
    %c0_129 = arith.constant 0 : index
    %c0_130 = arith.constant 0 : index
    %232 = vector.load %arg3[%c1_127, %c3_128, %c0_129, %c0_130] : memref<2x4x16x64xf32, #tpu.memory_space<vmem>>, vector<1x1x16x64xf32>
    %233 = vector.shape_cast %232 : vector<1x1x16x64xf32> to vector<16x64xf32>
    %234 = vector.shape_cast %231 : vector<16x64xf32> to vector<1x1x16x64xf32>
    tpu.vector_store %arg3[%c1_127, %c3_128, %c0_129, %c0_130], %234 {strides = array<i32>} : memref<2x4x16x64xf32, #tpu.memory_space<vmem>>, vector<1x1x16x64xf32>,
    return
  }
}

module attributes {stable_mosaic.version = 11 : i64} {
  func.func @kernel(%arg0: memref<4x3x64xbf16, #tpu.memory_space<vmem>>, %arg1: memref<4x2x64x256xbf16, #tpu.memory_space<vmem>>, %arg2: memref<3x1xf32, #tpu.memory_space<vmem>>, %arg3: memref<2x4x3x256xf32, #tpu.memory_space<vmem>>) attributes {dimension_semantics = [], scalar_prefetch = 0 : i64, scratch_operands = 0 : i64, tpu.core_type = #tpu.core_type<tc>} {
    %c0 = arith.constant 0 : index
    %c0_0 = arith.constant 0 : index
    %0 = vector.load %arg2[%c0, %c0_0] : memref<3x1xf32, #tpu.memory_space<vmem>>, vector<3x1xf32>
    %c0_1 = arith.constant 0 : index
    %c0_2 = arith.constant 0 : index
    %c0_3 = arith.constant 0 : index
    %1 = vector.load %arg0[%c0_1, %c0_2, %c0_3] : memref<4x3x64xbf16, #tpu.memory_space<vmem>>, vector<1x3x64xbf16>
    %2 = vector.shape_cast %1 : vector<1x3x64xbf16> to vector<3x64xbf16>
    %c0_4 = arith.constant 0 : index
    %c0_5 = arith.constant 0 : index
    %c0_6 = arith.constant 0 : index
    %c0_7 = arith.constant 0 : index
    %3 = vector.load %arg1[%c0_4, %c0_5, %c0_6, %c0_7] : memref<4x2x64x256xbf16, #tpu.memory_space<vmem>>, vector<1x1x64x256xbf16>
    %4 = vector.shape_cast %3 : vector<1x1x64x256xbf16> to vector<64x256xbf16>
    %cst = arith.constant dense<0.000000e+00> : vector<3x256xf32>
    %5 = tpu.matmul %2, %4, %cst {dimension_numbers = #tpu.dot_dimension_numbers<[1], [0], [0], [1], [0, 0, 1, 1], [], []>} : vector<3x64xbf16>, vector<64x256xbf16>, vector<3x256xf32> -> vector<3x256xf32>
    %6 = vector.broadcast %0 : vector<3x1xf32> to vector<3x256xf32>
    %7 = arith.addf %5, %6 : vector<3x256xf32>
    %c1 = arith.constant 1 : index
    %c0_8 = arith.constant 0 : index
    %c0_9 = arith.constant 0 : index
    %8 = vector.load %arg0[%c1, %c0_8, %c0_9] : memref<4x3x64xbf16, #tpu.memory_space<vmem>>, vector<1x3x64xbf16>
    %9 = vector.shape_cast %8 : vector<1x3x64xbf16> to vector<3x64xbf16>
    %c1_10 = arith.constant 1 : index
    %c0_11 = arith.constant 0 : index
    %c0_12 = arith.constant 0 : index
    %c0_13 = arith.constant 0 : index
    %10 = vector.load %arg1[%c1_10, %c0_11, %c0_12, %c0_13] : memref<4x2x64x256xbf16, #tpu.memory_space<vmem>>, vector<1x1x64x256xbf16>
    %11 = vector.shape_cast %10 : vector<1x1x64x256xbf16> to vector<64x256xbf16>
    %cst_14 = arith.constant dense<0.000000e+00> : vector<3x256xf32>
    %12 = tpu.matmul %9, %11, %cst_14 {dimension_numbers = #tpu.dot_dimension_numbers<[1], [0], [0], [1], [0, 0, 1, 1], [], []>} : vector<3x64xbf16>, vector<64x256xbf16>, vector<3x256xf32> -> vector<3x256xf32>
    %13 = vector.broadcast %0 : vector<3x1xf32> to vector<3x256xf32>
    %14 = arith.addf %12, %13 : vector<3x256xf32>
    %c2 = arith.constant 2 : index
    %c0_15 = arith.constant 0 : index
    %c0_16 = arith.constant 0 : index
    %15 = vector.load %arg0[%c2, %c0_15, %c0_16] : memref<4x3x64xbf16, #tpu.memory_space<vmem>>, vector<1x3x64xbf16>
    %16 = vector.shape_cast %15 : vector<1x3x64xbf16> to vector<3x64xbf16>
    %c2_17 = arith.constant 2 : index
    %c0_18 = arith.constant 0 : index
    %c0_19 = arith.constant 0 : index
    %c0_20 = arith.constant 0 : index
    %17 = vector.load %arg1[%c2_17, %c0_18, %c0_19, %c0_20] : memref<4x2x64x256xbf16, #tpu.memory_space<vmem>>, vector<1x1x64x256xbf16>
    %18 = vector.shape_cast %17 : vector<1x1x64x256xbf16> to vector<64x256xbf16>
    %cst_21 = arith.constant dense<0.000000e+00> : vector<3x256xf32>
    %19 = tpu.matmul %16, %18, %cst_21 {dimension_numbers = #tpu.dot_dimension_numbers<[1], [0], [0], [1], [0, 0, 1, 1], [], []>} : vector<3x64xbf16>, vector<64x256xbf16>, vector<3x256xf32> -> vector<3x256xf32>
    %20 = vector.broadcast %0 : vector<3x1xf32> to vector<3x256xf32>
    %21 = arith.addf %19, %20 : vector<3x256xf32>
    %c3 = arith.constant 3 : index
    %c0_22 = arith.constant 0 : index
    %c0_23 = arith.constant 0 : index
    %22 = vector.load %arg0[%c3, %c0_22, %c0_23] : memref<4x3x64xbf16, #tpu.memory_space<vmem>>, vector<1x3x64xbf16>
    %23 = vector.shape_cast %22 : vector<1x3x64xbf16> to vector<3x64xbf16>
    %c3_24 = arith.constant 3 : index
    %c0_25 = arith.constant 0 : index
    %c0_26 = arith.constant 0 : index
    %c0_27 = arith.constant 0 : index
    %24 = vector.load %arg1[%c3_24, %c0_25, %c0_26, %c0_27] : memref<4x2x64x256xbf16, #tpu.memory_space<vmem>>, vector<1x1x64x256xbf16>
    %25 = vector.shape_cast %24 : vector<1x1x64x256xbf16> to vector<64x256xbf16>
    %cst_28 = arith.constant dense<0.000000e+00> : vector<3x256xf32>
    %26 = tpu.matmul %23, %25, %cst_28 {dimension_numbers = #tpu.dot_dimension_numbers<[1], [0], [0], [1], [0, 0, 1, 1], [], []>} : vector<3x64xbf16>, vector<64x256xbf16>, vector<3x256xf32> -> vector<3x256xf32>
    %27 = vector.broadcast %0 : vector<3x1xf32> to vector<3x256xf32>
    %28 = arith.addf %26, %27 : vector<3x256xf32>
    %c0_29 = arith.constant 0 : index
    %c0_30 = arith.constant 0 : index
    %c0_31 = arith.constant 0 : index
    %c0_32 = arith.constant 0 : index
    %29 = vector.load %arg3[%c0_29, %c0_30, %c0_31, %c0_32] : memref<2x4x3x256xf32, #tpu.memory_space<vmem>>, vector<1x1x3x256xf32>
    %30 = vector.shape_cast %29 : vector<1x1x3x256xf32> to vector<3x256xf32>
    %31 = vector.shape_cast %7 : vector<3x256xf32> to vector<1x1x3x256xf32>
    tpu.vector_store %arg3[%c0_29, %c0_30, %c0_31, %c0_32], %31 {strides = array<i32>} : memref<2x4x3x256xf32, #tpu.memory_space<vmem>>, vector<1x1x3x256xf32>,
    %c0_33 = arith.constant 0 : index
    %c1_34 = arith.constant 1 : index
    %c0_35 = arith.constant 0 : index
    %c0_36 = arith.constant 0 : index
    %32 = vector.load %arg3[%c0_33, %c1_34, %c0_35, %c0_36] : memref<2x4x3x256xf32, #tpu.memory_space<vmem>>, vector<1x1x3x256xf32>
    %33 = vector.shape_cast %32 : vector<1x1x3x256xf32> to vector<3x256xf32>
    %34 = vector.shape_cast %14 : vector<3x256xf32> to vector<1x1x3x256xf32>
    tpu.vector_store %arg3[%c0_33, %c1_34, %c0_35, %c0_36], %34 {strides = array<i32>} : memref<2x4x3x256xf32, #tpu.memory_space<vmem>>, vector<1x1x3x256xf32>,
    %c0_37 = arith.constant 0 : index
    %c2_38 = arith.constant 2 : index
    %c0_39 = arith.constant 0 : index
    %c0_40 = arith.constant 0 : index
    %35 = vector.load %arg3[%c0_37, %c2_38, %c0_39, %c0_40] : memref<2x4x3x256xf32, #tpu.memory_space<vmem>>, vector<1x1x3x256xf32>
    %36 = vector.shape_cast %35 : vector<1x1x3x256xf32> to vector<3x256xf32>
    %37 = vector.shape_cast %21 : vector<3x256xf32> to vector<1x1x3x256xf32>
    tpu.vector_store %arg3[%c0_37, %c2_38, %c0_39, %c0_40], %37 {strides = array<i32>} : memref<2x4x3x256xf32, #tpu.memory_space<vmem>>, vector<1x1x3x256xf32>,
    %c0_41 = arith.constant 0 : index
    %c3_42 = arith.constant 3 : index
    %c0_43 = arith.constant 0 : index
    %c0_44 = arith.constant 0 : index
    %38 = vector.load %arg3[%c0_41, %c3_42, %c0_43, %c0_44] : memref<2x4x3x256xf32, #tpu.memory_space<vmem>>, vector<1x1x3x256xf32>
    %39 = vector.shape_cast %38 : vector<1x1x3x256xf32> to vector<3x256xf32>
    %40 = vector.shape_cast %28 : vector<3x256xf32> to vector<1x1x3x256xf32>
    tpu.vector_store %arg3[%c0_41, %c3_42, %c0_43, %c0_44], %40 {strides = array<i32>} : memref<2x4x3x256xf32, #tpu.memory_space<vmem>>, vector<1x1x3x256xf32>,
    %c0_45 = arith.constant 0 : index
    %c0_46 = arith.constant 0 : index
    %c0_47 = arith.constant 0 : index
    %41 = vector.load %arg0[%c0_45, %c0_46, %c0_47] : memref<4x3x64xbf16, #tpu.memory_space<vmem>>, vector<1x3x64xbf16>
    %42 = vector.shape_cast %41 : vector<1x3x64xbf16> to vector<3x64xbf16>
    %c0_48 = arith.constant 0 : index
    %c1_49 = arith.constant 1 : index
    %c0_50 = arith.constant 0 : index
    %c0_51 = arith.constant 0 : index
    %43 = vector.load %arg1[%c0_48, %c1_49, %c0_50, %c0_51] : memref<4x2x64x256xbf16, #tpu.memory_space<vmem>>, vector<1x1x64x256xbf16>
    %44 = vector.shape_cast %43 : vector<1x1x64x256xbf16> to vector<64x256xbf16>
    %cst_52 = arith.constant dense<0.000000e+00> : vector<3x256xf32>
    %45 = tpu.matmul %42, %44, %cst_52 {dimension_numbers = #tpu.dot_dimension_numbers<[1], [0], [0], [1], [0, 0, 1, 1], [], []>} : vector<3x64xbf16>, vector<64x256xbf16>, vector<3x256xf32> -> vector<3x256xf32>
    %46 = vector.broadcast %0 : vector<3x1xf32> to vector<3x256xf32>
    %47 = arith.addf %45, %46 : vector<3x256xf32>
    %c1_53 = arith.constant 1 : index
    %c0_54 = arith.constant 0 : index
    %c0_55 = arith.constant 0 : index
    %48 = vector.load %arg0[%c1_53, %c0_54, %c0_55] : memref<4x3x64xbf16, #tpu.memory_space<vmem>>, vector<1x3x64xbf16>
    %49 = vector.shape_cast %48 : vector<1x3x64xbf16> to vector<3x64xbf16>
    %c1_56 = arith.constant 1 : index
    %c1_57 = arith.constant 1 : index
    %c0_58 = arith.constant 0 : index
    %c0_59 = arith.constant 0 : index
    %50 = vector.load %arg1[%c1_56, %c1_57, %c0_58, %c0_59] : memref<4x2x64x256xbf16, #tpu.memory_space<vmem>>, vector<1x1x64x256xbf16>
    %51 = vector.shape_cast %50 : vector<1x1x64x256xbf16> to vector<64x256xbf16>
    %cst_60 = arith.constant dense<0.000000e+00> : vector<3x256xf32>
    %52 = tpu.matmul %49, %51, %cst_60 {dimension_numbers = #tpu.dot_dimension_numbers<[1], [0], [0], [1], [0, 0, 1, 1], [], []>} : vector<3x64xbf16>, vector<64x256xbf16>, vector<3x256xf32> -> vector<3x256xf32>
    %53 = vector.broadcast %0 : vector<3x1xf32> to vector<3x256xf32>
    %54 = arith.addf %52, %53 : vector<3x256xf32>
    %c2_61 = arith.constant 2 : index
    %c0_62 = arith.constant 0 : index
    %c0_63 = arith.constant 0 : index
    %55 = vector.load %arg0[%c2_61, %c0_62, %c0_63] : memref<4x3x64xbf16, #tpu.memory_space<vmem>>, vector<1x3x64xbf16>
    %56 = vector.shape_cast %55 : vector<1x3x64xbf16> to vector<3x64xbf16>
    %c2_64 = arith.constant 2 : index
    %c1_65 = arith.constant 1 : index
    %c0_66 = arith.constant 0 : index
    %c0_67 = arith.constant 0 : index
    %57 = vector.load %arg1[%c2_64, %c1_65, %c0_66, %c0_67] : memref<4x2x64x256xbf16, #tpu.memory_space<vmem>>, vector<1x1x64x256xbf16>
    %58 = vector.shape_cast %57 : vector<1x1x64x256xbf16> to vector<64x256xbf16>
    %cst_68 = arith.constant dense<0.000000e+00> : vector<3x256xf32>
    %59 = tpu.matmul %56, %58, %cst_68 {dimension_numbers = #tpu.dot_dimension_numbers<[1], [0], [0], [1], [0, 0, 1, 1], [], []>} : vector<3x64xbf16>, vector<64x256xbf16>, vector<3x256xf32> -> vector<3x256xf32>
    %60 = vector.broadcast %0 : vector<3x1xf32> to vector<3x256xf32>
    %61 = arith.addf %59, %60 : vector<3x256xf32>
    %c3_69 = arith.constant 3 : index
    %c0_70 = arith.constant 0 : index
    %c0_71 = arith.constant 0 : index
    %62 = vector.load %arg0[%c3_69, %c0_70, %c0_71] : memref<4x3x64xbf16, #tpu.memory_space<vmem>>, vector<1x3x64xbf16>
    %63 = vector.shape_cast %62 : vector<1x3x64xbf16> to vector<3x64xbf16>
    %c3_72 = arith.constant 3 : index
    %c1_73 = arith.constant 1 : index
    %c0_74 = arith.constant 0 : index
    %c0_75 = arith.constant 0 : index
    %64 = vector.load %arg1[%c3_72, %c1_73, %c0_74, %c0_75] : memref<4x2x64x256xbf16, #tpu.memory_space<vmem>>, vector<1x1x64x256xbf16>
    %65 = vector.shape_cast %64 : vector<1x1x64x256xbf16> to vector<64x256xbf16>
    %cst_76 = arith.constant dense<0.000000e+00> : vector<3x256xf32>
    %66 = tpu.matmul %63, %65, %cst_76 {dimension_numbers = #tpu.dot_dimension_numbers<[1], [0], [0], [1], [0, 0, 1, 1], [], []>} : vector<3x64xbf16>, vector<64x256xbf16>, vector<3x256xf32> -> vector<3x256xf32>
    %67 = vector.broadcast %0 : vector<3x1xf32> to vector<3x256xf32>
    %68 = arith.addf %66, %67 : vector<3x256xf32>
    %c1_77 = arith.constant 1 : index
    %c0_78 = arith.constant 0 : index
    %c0_79 = arith.constant 0 : index
    %c0_80 = arith.constant 0 : index
    %69 = vector.load %arg3[%c1_77, %c0_78, %c0_79, %c0_80] : memref<2x4x3x256xf32, #tpu.memory_space<vmem>>, vector<1x1x3x256xf32>
    %70 = vector.shape_cast %69 : vector<1x1x3x256xf32> to vector<3x256xf32>
    %71 = vector.shape_cast %47 : vector<3x256xf32> to vector<1x1x3x256xf32>
    tpu.vector_store %arg3[%c1_77, %c0_78, %c0_79, %c0_80], %71 {strides = array<i32>} : memref<2x4x3x256xf32, #tpu.memory_space<vmem>>, vector<1x1x3x256xf32>,
    %c1_81 = arith.constant 1 : index
    %c1_82 = arith.constant 1 : index
    %c0_83 = arith.constant 0 : index
    %c0_84 = arith.constant 0 : index
    %72 = vector.load %arg3[%c1_81, %c1_82, %c0_83, %c0_84] : memref<2x4x3x256xf32, #tpu.memory_space<vmem>>, vector<1x1x3x256xf32>
    %73 = vector.shape_cast %72 : vector<1x1x3x256xf32> to vector<3x256xf32>
    %74 = vector.shape_cast %54 : vector<3x256xf32> to vector<1x1x3x256xf32>
    tpu.vector_store %arg3[%c1_81, %c1_82, %c0_83, %c0_84], %74 {strides = array<i32>} : memref<2x4x3x256xf32, #tpu.memory_space<vmem>>, vector<1x1x3x256xf32>,
    %c1_85 = arith.constant 1 : index
    %c2_86 = arith.constant 2 : index
    %c0_87 = arith.constant 0 : index
    %c0_88 = arith.constant 0 : index
    %75 = vector.load %arg3[%c1_85, %c2_86, %c0_87, %c0_88] : memref<2x4x3x256xf32, #tpu.memory_space<vmem>>, vector<1x1x3x256xf32>
    %76 = vector.shape_cast %75 : vector<1x1x3x256xf32> to vector<3x256xf32>
    %77 = vector.shape_cast %61 : vector<3x256xf32> to vector<1x1x3x256xf32>
    tpu.vector_store %arg3[%c1_85, %c2_86, %c0_87, %c0_88], %77 {strides = array<i32>} : memref<2x4x3x256xf32, #tpu.memory_space<vmem>>, vector<1x1x3x256xf32>,
    %c1_89 = arith.constant 1 : index
    %c3_90 = arith.constant 3 : index
    %c0_91 = arith.constant 0 : index
    %c0_92 = arith.constant 0 : index
    %78 = vector.load %arg3[%c1_89, %c3_90, %c0_91, %c0_92] : memref<2x4x3x256xf32, #tpu.memory_space<vmem>>, vector<1x1x3x256xf32>
    %79 = vector.shape_cast %78 : vector<1x1x3x256xf32> to vector<3x256xf32>
    %80 = vector.shape_cast %68 : vector<3x256xf32> to vector<1x1x3x256xf32>
    tpu.vector_store %arg3[%c1_89, %c3_90, %c0_91, %c0_92], %80 {strides = array<i32>} : memref<2x4x3x256xf32, #tpu.memory_space<vmem>>, vector<1x1x3x256xf32>,
    return
  }
}

</mosaic_0001>

<llo_original>
// kernel: _lambda_.4
$region0: #{_lambda_.4}
  #allocation0 [shape = 'u32[]', space=smem, size = 0x4, offset = 0x4, fixed_abs, tag = 'smem constant byte address 0x4 - core index']
  #allocation1 [shape = 'u32[72,128]{1,0:T(1,128)}', space=vmem, size = 0x9000, scoped, tag = 'internal scratch']
  %s0 = inlined_call_operand.hbm [shape: bf16[1,32,256], index: 0, kind: input, shape index: {}]
  %s1 = inlined_call_operand.vmem [shape: bf16[1,2,256,16], index: 1, kind: input, shape index: {}]
  %s2 = inlined_call_operand.hbm [shape: f32[32,1], index: 2, kind: input, shape index: {}]
  %s3 = inlined_call_operand.vmem [shape: f32[2,1,32,16], index: 3, kind: output, shape index: {}]
  %s4 = sld [smem:[#allocation0]]
  $region30: #{_lambda_.4} parent=0
    _
  %s6 = ssub.s32 1, %s4
  %s7 = scalar_select 0, %s6, %s4
  $region1: #{_lambda_.4} parent=0
    #allocation2 [shape = 'u8[16384]{0}', space=vmem, size = 0x4000, scoped, tag = 'input window, operand 0, single buffered']
    #allocation3 [shape = 's32[1]{0}', space=sflag, size = 0x4, scoped, tag = 'scoped memory for _lambda_.4']
    #allocation4 [shape = 'u8[16384]{0}', space=vmem, size = 0x4000, scoped, tag = 'input window, operand 2, single buffered']
    #allocation5 [shape = 's32[1]{0}', space=sflag, size = 0x4, scoped, tag = 'scoped memory for _lambda_.4']
    %8 = vsyncpa [#allocation3], 0
    %9 = vsyncpa [#allocation5], 0
    // Predicated region
    $region2: #{_lambda_.4} parent=1 // pred_check
      _
    $region3: #{_lambda_.4} parent=1 // pred_check_branch
      %11 = sbr.rel (0) target = $region5
    $region4: #{_lambda_.4} parent=1 // pred_region
      %13 = vsyncadd [#allocation3], 0
      %s14 = sshll.u32 %s0, 4
      %s15 = int_to_ptr.hbm [resolvable:$true] %s14
      %s16 = sshll.u32 [#allocation2], 4
      %s17 = int_to_ptr.vmem [resolvable:$true] %s16
      %22 = dma.hbm_to_vmem [thread:$0]  %s15, 512, %s17, [#allocation3], 128, 128, 8
    $region5: #{_lambda_.4} parent=1 // pred_fallthru
      _
    // Predicated region
    $region6: #{_lambda_.4} parent=1 // pred_check
      _
    $region7: #{_lambda_.4} parent=1 // pred_check_branch
      %24 = sbr.rel (0) target = $region9
    $region8: #{_lambda_.4} parent=1 // pred_region
      _
    $region9: #{_lambda_.4} parent=1 // pred_fallthru
      _
    // Predicated region
    $region10: #{_lambda_.4} parent=1 // pred_check
      _
    $region11: #{_lambda_.4} parent=1 // pred_check_branch
      %26 = sbr.rel (0) target = $region13
    $region12: #{_lambda_.4} parent=1 // pred_region
      %28 = vsyncadd [#allocation5], 0
      %s29 = sshll.u32 %s2, 4
      %s30 = int_to_ptr.hbm [resolvable:$true] %s29
      %s31 = sshll.u32 [#allocation4], 4
      %s32 = int_to_ptr.vmem [resolvable:$true] %s31
      %37 = dma.hbm_to_vmem [thread:$0]  %s30, 512, %s32, [#allocation5], 128, 128, 8
    $region13: #{_lambda_.4} parent=1 // pred_fallthru
      _
    // Predicated region
    $region14: #{_lambda_.4} parent=1 // pred_check
      _
    $region15: #{_lambda_.4} parent=1 // pred_check_branch
      %39 = sbr.rel (0) target = $region17
    $region16: #{_lambda_.4} parent=1 // pred_region
      %41 = dma.done [#allocation3], 512
    $region17: #{_lambda_.4} parent=1 // pred_fallthru
      _
    // Predicated region
    $region18: #{_lambda_.4} parent=1 // pred_check
      _
    $region19: #{_lambda_.4} parent=1 // pred_check_branch
      %43 = sbr.rel (0) target = $region21
    $region20: #{_lambda_.4} parent=1 // pred_region
      %45 = dma.done [#allocation5], 512
    $region21: #{_lambda_.4} parent=1 // pred_fallthru
      _
    %v46 = vld [vmem:[#allocation4] sm:$0xff]
    %v47 = vld [vmem:[#allocation4 + $0x8] sm:$0xff]
    %v48 = vld [vmem:[#allocation4 + $0x10] sm:$0xff]
    %v49 = vld [vmem:[#allocation4 + $0x18] sm:$0xff]
    %v50 = vld [vmem:[#allocation2] sm:$0xff]
    %v51 = vld [vmem:[#allocation2 + $0x8] sm:$0xff]
    %v52 = vld [vmem:[#allocation2 + $0x10] sm:$0xff]
    %v53 = vld [vmem:[#allocation2 + $0x18] sm:$0xff]
    %v54 = vld [vmem:[%s1] sm:$0xf]
    %v55 = vld [vmem:[%s1 + $0x4] sm:$0xf]
    %v56 = vld [vmem:[%s1 + $0x8] sm:$0xf]
    %v57 = vld [vmem:[%s1 + $0xc] sm:$0xf]
    %v58 = vld [vmem:[%s1 + $0x10] sm:$0xf]
    %v59 = vld [vmem:[%s1 + $0x14] sm:$0xf]
    %v60 = vld [vmem:[%s1 + $0x18] sm:$0xf]
    %v61 = vld [vmem:[%s1 + $0x1c] sm:$0xf]
    %v62 = vld [vmem:[%s1 + $0x20] sm:$0xf]
    %v63 = vld [vmem:[%s1 + $0x24] sm:$0xf]
    %v64 = vld [vmem:[%s1 + $0x28] sm:$0xf]
    %v65 = vld [vmem:[%s1 + $0x2c] sm:$0xf]
    %v66 = vld [vmem:[%s1 + $0x30] sm:$0xf]
    %v67 = vld [vmem:[%s1 + $0x34] sm:$0xf]
    %v68 = vld [vmem:[%s1 + $0x38] sm:$0xf]
    %v69 = vld [vmem:[%s1 + $0x3c] sm:$0xf]
    %v70 = vld [vmem:[%s1 + $0x40] sm:$0xf]
    %v71 = vld [vmem:[%s1 + $0x44] sm:$0xf]
    %v72 = vld [vmem:[%s1 + $0x48] sm:$0xf]
    %v73 = vld [vmem:[%s1 + $0x4c] sm:$0xf]
    %v74 = vld [vmem:[%s1 + $0x50] sm:$0xf]
    %v75 = vld [vmem:[%s1 + $0x54] sm:$0xf]
    %v76 = vld [vmem:[%s1 + $0x58] sm:$0xf]
    %v77 = vld [vmem:[%s1 + $0x5c] sm:$0xf]
    %v78 = vld [vmem:[%s1 + $0x60] sm:$0xf]
    %v79 = vld [vmem:[%s1 + $0x64] sm:$0xf]
    %v80 = vld [vmem:[%s1 + $0x68] sm:$0xf]
    %v81 = vld [vmem:[%s1 + $0x6c] sm:$0xf]
    %v82 = vld [vmem:[%s1 + $0x70] sm:$0xf]
    %v83 = vld [vmem:[%s1 + $0x74] sm:$0xf]
    %v84 = vld [vmem:[%s1 + $0x78] sm:$0xf]
    %v85 = vld [vmem:[%s1 + $0x7c] sm:$0xf]
    %87 = vset.pattern.permute.xlu0 0
    %88 = vperm.xlu0 %87, %v46
    %v89 = vpop.permute.xlu0 %88
    %92 = vset.pattern.permute.xlu0 0
    %93 = vperm.xlu0 %92, %v47
    %v94 = vpop.permute.xlu0 %93
    %97 = vset.pattern.permute.xlu0 0
    %98 = vperm.xlu0 %97, %v48
    %v99 = vpop.permute.xlu0 %98
    %102 = vset.pattern.permute.xlu0 0
    %103 = vperm.xlu0 %102, %v49
    %v104 = vpop.permute.xlu0 %103
    %v110 = vunpack.c.l.b16 %v50
    %v111 = vunpack.c.h.b16 %v50
    %v112 = vunpack.c.l.b16 %v51
    %v113 = vunpack.c.h.b16 %v51
    %v114 = vunpack.c.l.b16 %v52
    %v115 = vunpack.c.h.b16 %v52
    %v116 = vunpack.c.l.b16 %v53
    %v117 = vunpack.c.h.b16 %v53
    %v118 = vpack.c.b16 %v112, %v110
    %v119 = vpack.c.b16 %v113, %v111
    %v120 = vpack.c.b16 %v116, %v114
    %v121 = vpack.c.b16 %v117, %v115
    %v158 = vunpack.c.l.b16 %v54
    %v159 = vunpack.c.l.b16 %v55
    %v160 = vunpack.c.l.b16 %v56
    %v161 = vunpack.c.l.b16 %v57
    %v162 = vunpack.c.l.b16 %v58
    %v163 = vunpack.c.l.b16 %v59
    %v164 = vunpack.c.l.b16 %v60
    %v165 = vunpack.c.l.b16 %v61
    %v166 = vunpack.c.l.b16 %v62
    %v167 = vunpack.c.l.b16 %v63
    %v168 = vunpack.c.l.b16 %v64
    %v169 = vunpack.c.l.b16 %v65
    %v170 = vunpack.c.l.b16 %v66
    %v171 = vunpack.c.l.b16 %v67
    %v172 = vunpack.c.l.b16 %v68
    %v173 = vunpack.c.l.b16 %v69
    %v174 = vunpack.c.l.b16 %v70
    %v175 = vunpack.c.l.b16 %v71
    %v176 = vunpack.c.l.b16 %v72
    %v177 = vunpack.c.l.b16 %v73
    %v178 = vunpack.c.l.b16 %v74
    %v179 = vunpack.c.l.b16 %v75
    %v180 = vunpack.c.l.b16 %v76
    %v181 = vunpack.c.l.b16 %v77
    %v182 = vunpack.c.l.b16 %v78
    %v183 = vunpack.c.l.b16 %v79
    %v184 = vunpack.c.l.b16 %v80
    %v185 = vunpack.c.l.b16 %v81
    %v186 = vunpack.c.l.b16 %v82
    %v187 = vunpack.c.l.b16 %v83
    %v188 = vunpack.c.l.b16 %v84
    %v189 = vunpack.c.l.b16 %v85
    %v190 = vpack.c.b16 %v159, %v158
    %v191 = vpack.c.b16 %v161, %v160
    %v192 = vpack.c.b16 %v163, %v162
    %v193 = vpack.c.b16 %v165, %v164
    %v194 = vpack.c.b16 %v167, %v166
    %v195 = vpack.c.b16 %v169, %v168
    %v196 = vpack.c.b16 %v171, %v170
    %v197 = vpack.c.b16 %v173, %v172
    %v198 = vpack.c.b16 %v175, %v174
    %v199 = vpack.c.b16 %v177, %v176
    %v200 = vpack.c.b16 %v179, %v178
    %v201 = vpack.c.b16 %v181, %v180
    %v202 = vpack.c.b16 %v183, %v182
    %v203 = vpack.c.b16 %v185, %v184
    %v204 = vpack.c.b16 %v187, %v186
    %v205 = vpack.c.b16 %v189, %v188
    %222 = vmatpush.bf16.msra.mxu0 %v197
    %223 = vmatpush.bf16.msra.mxu0 %v196
    %224 = vmatpush.bf16.msra.mxu0 %v195
    %225 = vmatpush.bf16.msra.mxu0 %v194
    %226 = vmatpush.bf16.msra.mxu0 %v193
    %227 = vmatpush.bf16.msra.mxu0 %v192
    %228 = vmatpush.bf16.msra.mxu0 %v191
    %229 = vmatpush.bf16.msra.mxu0 %v190
    %230 = vmatmul.bf16.gmra.mxu0 %v118
    %v231 = vpop.f32.mrf.mxu0
    %v232 = vadd.f32 %v89, %v231
    %v233 = vpop.f32.mrf.mxu0
    %v234 = vadd.f32 %v94, %v233
    %235 = vmatmul.bf16.gmra.mxu0 %v120
    %v236 = vpop.f32.mrf.mxu0
    %v237 = vadd.f32 %v99, %v236
    %v238 = vpop.f32.mrf.mxu0
    %v239 = vadd.f32 %v104, %v238
    %240 = vdwg.mxu0
    %241 = vmatpush.bf16.msra.mxu0 %v205
    %242 = vmatpush.bf16.msra.mxu0 %v204
    %243 = vmatpush.bf16.msra.mxu0 %v203
    %244 = vmatpush.bf16.msra.mxu0 %v202
    %245 = vmatpush.bf16.msra.mxu0 %v201
    %246 = vmatpush.bf16.msra.mxu0 %v200
    %247 = vmatpush.bf16.msra.mxu0 %v199
    %248 = vmatpush.bf16.msra.mxu0 %v198
    %249 = vmatmul.bf16.gmra.mxu0 %v119
    %v250 = vpop.f32.mrf.mxu0
    %v251 = vadd.f32 %v232, %v250
    %v252 = vpop.f32.mrf.mxu0
    %v253 = vadd.f32 %v234, %v252
    %254 = vmatmul.bf16.gmra.mxu0 %v121
    %v255 = vpop.f32.mrf.mxu0
    %v256 = vadd.f32 %v237, %v255
    %v257 = vpop.f32.mrf.mxu0
    %v258 = vadd.f32 %v239, %v257
    %259 = vdwg.mxu0
    %vm260 = vcmask 130048
    %v261 = vsel %vm260, %v251, 0.0
    %262 = vadd.xlane.f32.xlu0 %v261
    %v263 = vpop.xlane.xlu0 %262
    %v264 = vsel %vm260, %v253, 0.0
    %265 = vadd.xlane.f32.xlu0 %v264
    %v266 = vpop.xlane.xlu0 %265
    %v267 = vsel %vm260, %v256, 0.0
    %268 = vadd.xlane.f32.xlu0 %v267
    %v269 = vpop.xlane.xlu0 %268
    %v270 = vsel %vm260, %v258, 0.0
    %271 = vadd.xlane.f32.xlu0 %v270
    %v272 = vpop.xlane.xlu0 %271
    %v273 = vmul.f32 %v263, 0.0625
    %v274 = vmul.f32 %v266, 0.0625
    %v275 = vmul.f32 %v269, 0.0625
    %v276 = vmul.f32 %v272, 0.0625
    %v277 = vsub.f32 %v251, %v273
    %v278 = vsub.f32 %v253, %v274
    %v279 = vsub.f32 %v256, %v275
    %v280 = vsub.f32 %v258, %v276
    %v281 = vmul.f32 %v277, %v277
    %v282 = vmul.f32 %v278, %v278
    %v283 = vmul.f32 %v279, %v279
    %v284 = vmul.f32 %v280, %v280
    %v285 = vsel %vm260, %v281, 0.0
    %286 = vadd.xlane.f32.xlu0 %v285
    %v287 = vpop.xlane.xlu0 %286
    %v288 = vsel %vm260, %v282, 0.0
    %289 = vadd.xlane.f32.xlu0 %v288
    %v290 = vpop.xlane.xlu0 %289
    %v291 = vsel %vm260, %v283, 0.0
    %292 = vadd.xlane.f32.xlu0 %v291
    %v293 = vpop.xlane.xlu0 %292
    %v294 = vsel %vm260, %v284, 0.0
    %295 = vadd.xlane.f32.xlu0 %v294
    %v296 = vpop.xlane.xlu0 %295
    %v297 = vmul.f32 %v287, 0.0625
    %v298 = vmul.f32 %v290, 0.0625
    %v299 = vmul.f32 %v293, 0.0625
    %v300 = vmul.f32 %v296, 0.0625
    %v301 = vadd.f32 %v297, 1e-08
    %v302 = vadd.f32 %v298, 1e-08
    %v303 = vadd.f32 %v299, 1e-08
    %v304 = vadd.f32 %v300, 1e-08
    %v305 = vrsqrt.pop %v301
    %v306 = vmul.f32 %v305, %v301
    %v307 = vmul.f32 %v306, %v305
    %v308 = vmul.f32 0.5, %v307
    %v309 = vsub.f32 1.5, %v308
    %v310 = vmul.f32 %v305, %v309
    %vm311 = vweird.f32 %v301
    %vm312 = vweird.f32 %v305
    %vm313 = vmor %vm311, %vm312
    %v314 = vsel %vm313, %v305, %v310
    %v315 = vrsqrt.pop %v302
    %v316 = vmul.f32 %v315, %v302
    %v317 = vmul.f32 %v316, %v315
    %v318 = vmul.f32 0.5, %v317
    %v319 = vsub.f32 1.5, %v318
    %v320 = vmul.f32 %v315, %v319
    %vm321 = vweird.f32 %v302
    %vm322 = vweird.f32 %v315
    %vm323 = vmor %vm321, %vm322
    %v324 = vsel %vm323, %v315, %v320
    %v325 = vrsqrt.pop %v303
    %v326 = vmul.f32 %v325, %v303
    %v327 = vmul.f32 %v326, %v325
    %v328 = vmul.f32 0.5, %v327
    %v329 = vsub.f32 1.5, %v328
    %v330 = vmul.f32 %v325, %v329
    %vm331 = vweird.f32 %v303
    %vm332 = vweird.f32 %v325
    %vm333 = vmor %vm331, %vm332
    %v334 = vsel %vm333, %v325, %v330
    %v335 = vrsqrt.pop %v304
    %v336 = vmul.f32 %v335, %v304
    %v337 = vmul.f32 %v336, %v335
    %v338 = vmul.f32 0.5, %v337
    %v339 = vsub.f32 1.5, %v338
    %v340 = vmul.f32 %v335, %v339
    %vm341 = vweird.f32 %v304
    %vm342 = vweird.f32 %v335
    %vm343 = vmor %vm341, %vm342
    %v344 = vsel %vm343, %v335, %v340
    %v345 = vmul.f32 %v277, %v314
    %v346 = vmul.f32 %v278, %v324
    %v347 = vmul.f32 %v279, %v334
    %v348 = vmul.f32 %v280, %v344
    %vm349 = vcmp.ge.f32.partialorder %v345, 0.0
    %vm350 = vcmp.ge.f32.partialorder %v346, 0.0
    %vm351 = vcmp.ge.f32.partialorder %v347, 0.0
    %vm352 = vcmp.ge.f32.partialorder %v348, 0.0
    %v353 = vmul.f32 %v345, 0.2
    %v354 = vmul.f32 %v346, 0.2
    %v355 = vmul.f32 %v347, 0.2
    %v356 = vmul.f32 %v348, 0.2
    %v357 = vsel %vm349, %v345, %v353
    %v358 = vsel %vm350, %v346, %v354
    %v359 = vsel %vm351, %v347, %v355
    %v360 = vsel %vm352, %v348, %v356
    %361 = vst.msk [vmem:[%s3] sm:$0xff] %vm260, %v357
    %362 = vst.msk [vmem:[%s3 + $0x8] sm:$0xff] %vm260, %v358
    %363 = vst.msk [vmem:[%s3 + $0x10] sm:$0xff] %vm260, %v359
    %364 = vst.msk [vmem:[%s3 + $0x18] sm:$0xff] %vm260, %v360
    %v365 = vld [vmem:[#allocation2] sm:$0xff]
    %v366 = vld [vmem:[#allocation2 + $0x8] sm:$0xff]
    %v367 = vld [vmem:[#allocation2 + $0x10] sm:$0xff]
    %v368 = vld [vmem:[#allocation2 + $0x18] sm:$0xff]
    %s369 = scalar_lea.vmem %s1, 128
    %v370 = vld [vmem:[%s369] sm:$0xf]
    %v371 = vld [vmem:[%s369 + $0x4] sm:$0xf]
    %v372 = vld [vmem:[%s369 + $0x8] sm:$0xf]
    %v373 = vld [vmem:[%s369 + $0xc] sm:$0xf]
    %v374 = vld [vmem:[%s369 + $0x10] sm:$0xf]
    %v375 = vld [vmem:[%s369 + $0x14] sm:$0xf]
    %v376 = vld [vmem:[%s369 + $0x18] sm:$0xf]
    %v377 = vld [vmem:[%s369 + $0x1c] sm:$0xf]
    %v378 = vld [vmem:[%s369 + $0x20] sm:$0xf]
    %v379 = vld [vmem:[%s369 + $0x24] sm:$0xf]
    %v380 = vld [vmem:[%s369 + $0x28] sm:$0xf]
    %v381 = vld [vmem:[%s369 + $0x2c] sm:$0xf]
    %v382 = vld [vmem:[%s369 + $0x30] sm:$0xf]
    %v383 = vld [vmem:[%s369 + $0x34] sm:$0xf]
    %v384 = vld [vmem:[%s369 + $0x38] sm:$0xf]
    %v385 = vld [vmem:[%s369 + $0x3c] sm:$0xf]
    %v386 = vld [vmem:[%s369 + $0x40] sm:$0xf]
    %v387 = vld [vmem:[%s369 + $0x44] sm:$0xf]
    %v388 = vld [vmem:[%s369 + $0x48] sm:$0xf]
    %v389 = vld [vmem:[%s369 + $0x4c] sm:$0xf]
    %v390 = vld [vmem:[%s369 + $0x50] sm:$0xf]
    %v391 = vld [vmem:[%s369 + $0x54] sm:$0xf]
    %v392 = vld [vmem:[%s369 + $0x58] sm:$0xf]
    %v393 = vld [vmem:[%s369 + $0x5c] sm:$0xf]
    %v394 = vld [vmem:[%s369 + $0x60] sm:$0xf]
    %v395 = vld [vmem:[%s369 + $0x64] sm:$0xf]
    %v396 = vld [vmem:[%s369 + $0x68] sm:$0xf]
    %v397 = vld [vmem:[%s369 + $0x6c] sm:$0xf]
    %v398 = vld [vmem:[%s369 + $0x70] sm:$0xf]
    %v399 = vld [vmem:[%s369 + $0x74] sm:$0xf]
    %v400 = vld [vmem:[%s369 + $0x78] sm:$0xf]
    %v401 = vld [vmem:[%s369 + $0x7c] sm:$0xf]
    %v406 = vunpack.c.l.b16 %v365
    %v407 = vunpack.c.h.b16 %v365
    %v408 = vunpack.c.l.b16 %v366
    %v409 = vunpack.c.h.b16 %v366
    %v410 = vunpack.c.l.b16 %v367
    %v411 = vunpack.c.h.b16 %v367
    %v412 = vunpack.c.l.b16 %v368
    %v413 = vunpack.c.h.b16 %v368
    %v414 = vpack.c.b16 %v408, %v406
    %v415 = vpack.c.b16 %v409, %v407
    %v416 = vpack.c.b16 %v412, %v410
    %v417 = vpack.c.b16 %v413, %v411
    %v454 = vunpack.c.l.b16 %v370
    %v455 = vunpack.c.l.b16 %v371
    %v456 = vunpack.c.l.b16 %v372
    %v457 = vunpack.c.l.b16 %v373
    %v458 = vunpack.c.l.b16 %v374
    %v459 = vunpack.c.l.b16 %v375
    %v460 = vunpack.c.l.b16 %v376
    %v461 = vunpack.c.l.b16 %v377
    %v462 = vunpack.c.l.b16 %v378
    %v463 = vunpack.c.l.b16 %v379
    %v464 = vunpack.c.l.b16 %v380
    %v465 = vunpack.c.l.b16 %v381
    %v466 = vunpack.c.l.b16 %v382
    %v467 = vunpack.c.l.b16 %v383
    %v468 = vunpack.c.l.b16 %v384
    %v469 = vunpack.c.l.b16 %v385
    %v470 = vunpack.c.l.b16 %v386
    %v471 = vunpack.c.l.b16 %v387
    %v472 = vunpack.c.l.b16 %v388
    %v473 = vunpack.c.l.b16 %v389
    %v474 = vunpack.c.l.b16 %v390
    %v475 = vunpack.c.l.b16 %v391
    %v476 = vunpack.c.l.b16 %v392
    %v477 = vunpack.c.l.b16 %v393
    %v478 = vunpack.c.l.b16 %v394
    %v479 = vunpack.c.l.b16 %v395
    %v480 = vunpack.c.l.b16 %v396
    %v481 = vunpack.c.l.b16 %v397
    %v482 = vunpack.c.l.b16 %v398
    %v483 = vunpack.c.l.b16 %v399
    %v484 = vunpack.c.l.b16 %v400
    %v485 = vunpack.c.l.b16 %v401
    %v486 = vpack.c.b16 %v455, %v454
    %v487 = vpack.c.b16 %v457, %v456
    %v488 = vpack.c.b16 %v459, %v458
    %v489 = vpack.c.b16 %v461, %v460
    %v490 = vpack.c.b16 %v463, %v462
    %v491 = vpack.c.b16 %v465, %v464
    %v492 = vpack.c.b16 %v467, %v466
    %v493 = vpack.c.b16 %v469, %v468
    %v494 = vpack.c.b16 %v471, %v470
    %v495 = vpack.c.b16 %v473, %v472
    %v496 = vpack.c.b16 %v475, %v474
    %v497 = vpack.c.b16 %v477, %v476
    %v498 = vpack.c.b16 %v479, %v478
    %v499 = vpack.c.b16 %v481, %v480
    %v500 = vpack.c.b16 %v483, %v482
    %v501 = vpack.c.b16 %v485, %v484
    %518 = vmatpush.bf16.msra.mxu0 %v493
    %519 = vmatpush.bf16.msra.mxu0 %v492
    %520 = vmatpush.bf16.msra.mxu0 %v491
    %521 = vmatpush.bf16.msra.mxu0 %v490
    %522 = vmatpush.bf16.msra.mxu0 %v489
    %523 = vmatpush.bf16.msra.mxu0 %v488
    %524 = vmatpush.bf16.msra.mxu0 %v487
    %525 = vmatpush.bf16.msra.mxu0 %v486
    %526 = vmatmul.bf16.gmra.mxu0 %v414
    %v527 = vpop.f32.mrf.mxu0
    %v528 = vadd.f32 %v89, %v527
    %v529 = vpop.f32.mrf.mxu0
    %v530 = vadd.f32 %v94, %v529
    %531 = vmatmul.bf16.gmra.mxu0 %v416
    %v532 = vpop.f32.mrf.mxu0
    %v533 = vadd.f32 %v99, %v532
    %v534 = vpop.f32.mrf.mxu0
    %v535 = vadd.f32 %v104, %v534
    %536 = vdwg.mxu0
    %537 = vmatpush.bf16.msra.mxu0 %v501
    %538 = vmatpush.bf16.msra.mxu0 %v500
    %539 = vmatpush.bf16.msra.mxu0 %v499
    %540 = vmatpush.bf16.msra.mxu0 %v498
    %541 = vmatpush.bf16.msra.mxu0 %v497
    %542 = vmatpush.bf16.msra.mxu0 %v496
    %543 = vmatpush.bf16.msra.mxu0 %v495
    %544 = vmatpush.bf16.msra.mxu0 %v494
    %545 = vmatmul.bf16.gmra.mxu0 %v415
    %v546 = vpop.f32.mrf.mxu0
    %v547 = vadd.f32 %v528, %v546
    %v548 = vpop.f32.mrf.mxu0
    %v549 = vadd.f32 %v530, %v548
    %550 = vmatmul.bf16.gmra.mxu0 %v417
    %v551 = vpop.f32.mrf.mxu0
    %v552 = vadd.f32 %v533, %v551
    %v553 = vpop.f32.mrf.mxu0
    %v554 = vadd.f32 %v535, %v553
    %555 = vdwg.mxu0
    %v556 = vsel %vm260, %v547, 0.0
    %557 = vadd.xlane.f32.xlu0 %v556
    %v558 = vpop.xlane.xlu0 %557
    %v559 = vsel %vm260, %v549, 0.0
    %560 = vadd.xlane.f32.xlu0 %v559
    %v561 = vpop.xlane.xlu0 %560
    %v562 = vsel %vm260, %v552, 0.0
    %563 = vadd.xlane.f32.xlu0 %v562
    %v564 = vpop.xlane.xlu0 %563
    %v565 = vsel %vm260, %v554, 0.0
    %566 = vadd.xlane.f32.xlu0 %v565
    %v567 = vpop.xlane.xlu0 %566
    %v568 = vmul.f32 %v558, 0.0625
    %v569 = vmul.f32 %v561, 0.0625
    %v570 = vmul.f32 %v564, 0.0625
    %v571 = vmul.f32 %v567, 0.0625
    %v572 = vsub.f32 %v547, %v568
    %v573 = vsub.f32 %v549, %v569
    %v574 = vsub.f32 %v552, %v570
    %v575 = vsub.f32 %v554, %v571
    %v576 = vmul.f32 %v572, %v572
    %v577 = vmul.f32 %v573, %v573
    %v578 = vmul.f32 %v574, %v574
    %v579 = vmul.f32 %v575, %v575
    %v580 = vsel %vm260, %v576, 0.0
    %581 = vadd.xlane.f32.xlu0 %v580
    %v582 = vpop.xlane.xlu0 %581
    %v583 = vsel %vm260, %v577, 0.0
    %584 = vadd.xlane.f32.xlu0 %v583
    %v585 = vpop.xlane.xlu0 %584
    %v586 = vsel %vm260, %v578, 0.0
    %587 = vadd.xlane.f32.xlu0 %v586
    %v588 = vpop.xlane.xlu0 %587
    %v589 = vsel %vm260, %v579, 0.0
    %590 = vadd.xlane.f32.xlu0 %v589
    %v591 = vpop.xlane.xlu0 %590
    %v592 = vmul.f32 %v582, 0.0625
    %v593 = vmul.f32 %v585, 0.0625
    %v594 = vmul.f32 %v588, 0.0625
    %v595 = vmul.f32 %v591, 0.0625
    %v596 = vadd.f32 %v592, 1e-08
    %v597 = vadd.f32 %v593, 1e-08
    %v598 = vadd.f32 %v594, 1e-08
    %v599 = vadd.f32 %v595, 1e-08
    %v600 = vrsqrt.pop %v596
    %v601 = vmul.f32 %v600, %v596
    %v602 = vmul.f32 %v601, %v600
    %v603 = vmul.f32 0.5, %v602
    %v604 = vsub.f32 1.5, %v603
    %v605 = vmul.f32 %v600, %v604
    %vm606 = vweird.f32 %v596
    %vm607 = vweird.f32 %v600
    %vm608 = vmor %vm606, %vm607
    %v609 = vsel %vm608, %v600, %v605
    %v610 = vrsqrt.pop %v597
    %v611 = vmul.f32 %v610, %v597
    %v612 = vmul.f32 %v611, %v610
    %v613 = vmul.f32 0.5, %v612
    %v614 = vsub.f32 1.5, %v613
    %v615 = vmul.f32 %v610, %v614
    %vm616 = vweird.f32 %v597
    %vm617 = vweird.f32 %v610
    %vm618 = vmor %vm616, %vm617
    %v619 = vsel %vm618, %v610, %v615
    %v620 = vrsqrt.pop %v598
    %v621 = vmul.f32 %v620, %v598
    %v622 = vmul.f32 %v621, %v620
    %v623 = vmul.f32 0.5, %v622
    %v624 = vsub.f32 1.5, %v623
    %v625 = vmul.f32 %v620, %v624
    %vm626 = vweird.f32 %v598
    %vm627 = vweird.f32 %v620
    %vm628 = vmor %vm626, %vm627
    %v629 = vsel %vm628, %v620, %v625
    %v630 = vrsqrt.pop %v599
    %v631 = vmul.f32 %v630, %v599
    %v632 = vmul.f32 %v631, %v630
    %v633 = vmul.f32 0.5, %v632
    %v634 = vsub.f32 1.5, %v633
    %v635 = vmul.f32 %v630, %v634
    %vm636 = vweird.f32 %v599
    %vm637 = vweird.f32 %v630
    %vm638 = vmor %vm636, %vm637
    %v639 = vsel %vm638, %v630, %v635
    %v640 = vmul.f32 %v572, %v609
    %v641 = vmul.f32 %v573, %v619
    %v642 = vmul.f32 %v574, %v629
    %v643 = vmul.f32 %v575, %v639
    %vm644 = vcmp.ge.f32.partialorder %v640, 0.0
    %vm645 = vcmp.ge.f32.partialorder %v641, 0.0
    %vm646 = vcmp.ge.f32.partialorder %v642, 0.0
    %vm647 = vcmp.ge.f32.partialorder %v643, 0.0
    %v648 = vmul.f32 %v640, 0.2
    %v649 = vmul.f32 %v641, 0.2
    %v650 = vmul.f32 %v642, 0.2
    %v651 = vmul.f32 %v643, 0.2
    %v652 = vsel %vm644, %v640, %v648
    %v653 = vsel %vm645, %v641, %v649
    %v654 = vsel %vm646, %v642, %v650
    %v655 = vsel %vm647, %v643, %v651
    %s656 = scalar_lea.vmem %s3, 32
    %657 = vst.msk [vmem:[%s656] sm:$0xff] %vm260, %v652
    %658 = vst.msk [vmem:[%s656 + $0x8] sm:$0xff] %vm260, %v653
    %659 = vst.msk [vmem:[%s656 + $0x10] sm:$0xff] %vm260, %v654
    %660 = vst.msk [vmem:[%s656 + $0x18] sm:$0xff] %vm260, %v655
    // Predicated region
    $region22: #{_lambda_.4} parent=1 // pred_check
      _
    $region23: #{_lambda_.4} parent=1 // pred_check_branch
      %662 = sbr.rel (0) target = $region25
    $region24: #{_lambda_.4} parent=1 // pred_region
      _
    $region25: #{_lambda_.4} parent=1 // pred_fallthru
      _
    // Predicated region
    $region26: #{_lambda_.4} parent=1 // pred_check
      _
    $region27: #{_lambda_.4} parent=1 // pred_check_branch
      %664 = sbr.rel (0) target = $region29
    $region28: #{_lambda_.4} parent=1 // pred_region
      _
    $region29: #{_lambda_.4} parent=1 // pred_fallthru
      _
    %665 = vsyncpa [#allocation3], 1
    %666 = vsyncpa [#allocation5], 1

// kernel: _lambda_.5
$region0: #{_lambda_.5}
  #allocation0 [shape = 'u32[]', space=smem, size = 0x4, offset = 0x4, fixed_abs, tag = 'smem constant byte address 0x4 - core index']
  #allocation1 [shape = 'u32[72,128]{1,0:T(1,128)}', space=vmem, size = 0x9000, scoped, tag = 'internal scratch']
  %s0 = inlined_call_operand.vmem [shape: bf16[4,32,128], index: 0, kind: input, shape index: {}]
  %s1 = inlined_call_operand.vmem [shape: bf16[4,2,128,16], index: 1, kind: input, shape index: {}]
  %s2 = inlined_call_operand.vmem [shape: f32[32,1], index: 2, kind: input, shape index: {}]
  %s3 = inlined_call_operand.vmem [shape: f32[2,4,32,16], index: 3, kind: output, shape index: {}]
  %s4 = sld [smem:[#allocation0]]
  $region22: #{_lambda_.5} parent=0
    _
  %s6 = ssub.s32 1, %s4
  %s7 = scalar_select 0, %s6, %s4
  // Predicated region
  $region2: #{_lambda_.5} parent=0 // pred_check
    _
  $region3: #{_lambda_.5} parent=0 // pred_check_branch
    %9 = sbr.rel (0) target = $region5
  $region4: #{_lambda_.5} parent=0 // pred_region
    _
  $region5: #{_lambda_.5} parent=0 // pred_fallthru
    _
  // Predicated region
  $region6: #{_lambda_.5} parent=0 // pred_check
    _
  $region7: #{_lambda_.5} parent=0 // pred_check_branch
    %11 = sbr.rel (0) target = $region9
  $region8: #{_lambda_.5} parent=0 // pred_region
    _
  $region9: #{_lambda_.5} parent=0 // pred_fallthru
    _
  // Predicated region
  $region10: #{_lambda_.5} parent=0 // pred_check
    _
  $region11: #{_lambda_.5} parent=0 // pred_check_branch
    %13 = sbr.rel (0) target = $region13
  $region12: #{_lambda_.5} parent=0 // pred_region
    _
  $region13: #{_lambda_.5} parent=0 // pred_fallthru
    _
  %v14 = vld [vmem:[%s2] sm:$0xff]
  %v15 = vld [vmem:[%s2 + $0x8] sm:$0xff]
  %v16 = vld [vmem:[%s2 + $0x10] sm:$0xff]
  %v17 = vld [vmem:[%s2 + $0x18] sm:$0xff]
  %v18 = vld [vmem:[%s0] sm:$0xf]
  %v19 = vld [vmem:[%s0 + $0x4] sm:$0xf]
  %v20 = vld [vmem:[%s0 + $0x8] sm:$0xf]
  %v21 = vld [vmem:[%s0 + $0xc] sm:$0xf]
  %v22 = vld [vmem:[%s1] sm:$0xf]
  %v23 = vld [vmem:[%s1 + $0x4] sm:$0xf]
  %v24 = vld [vmem:[%s1 + $0x8] sm:$0xf]
  %v25 = vld [vmem:[%s1 + $0xc] sm:$0xf]
  %v26 = vld [vmem:[%s1 + $0x10] sm:$0xf]
  %v27 = vld [vmem:[%s1 + $0x14] sm:$0xf]
  %v28 = vld [vmem:[%s1 + $0x18] sm:$0xf]
  %v29 = vld [vmem:[%s1 + $0x1c] sm:$0xf]
  %v30 = vld [vmem:[%s1 + $0x20] sm:$0xf]
  %v31 = vld [vmem:[%s1 + $0x24] sm:$0xf]
  %v32 = vld [vmem:[%s1 + $0x28] sm:$0xf]
  %v33 = vld [vmem:[%s1 + $0x2c] sm:$0xf]
  %v34 = vld [vmem:[%s1 + $0x30] sm:$0xf]
  %v35 = vld [vmem:[%s1 + $0x34] sm:$0xf]
  %v36 = vld [vmem:[%s1 + $0x38] sm:$0xf]
  %v37 = vld [vmem:[%s1 + $0x3c] sm:$0xf]
  %39 = vset.pattern.permute.xlu0 0
  %40 = vperm.xlu0 %39, %v14
  %v41 = vpop.permute.xlu0 %40
  %44 = vset.pattern.permute.xlu0 0
  %45 = vperm.xlu0 %44, %v15
  %v46 = vpop.permute.xlu0 %45
  %49 = vset.pattern.permute.xlu0 0
  %50 = vperm.xlu0 %49, %v16
  %v51 = vpop.permute.xlu0 %50
  %54 = vset.pattern.permute.xlu0 0
  %55 = vperm.xlu0 %54, %v17
  %v56 = vpop.permute.xlu0 %55
  %v62 = vunpack.c.l.b16 %v18
  %v63 = vunpack.c.l.b16 %v19
  %v64 = vunpack.c.l.b16 %v20
  %v65 = vunpack.c.l.b16 %v21
  %v66 = vpack.c.b16 %v63, %v62
  %v67 = vpack.c.b16 %v65, %v64
  %v86 = vunpack.c.l.b16 %v22
  %v87 = vunpack.c.l.b16 %v23
  %v88 = vunpack.c.l.b16 %v24
  %v89 = vunpack.c.l.b16 %v25
  %v90 = vunpack.c.l.b16 %v26
  %v91 = vunpack.c.l.b16 %v27
  %v92 = vunpack.c.l.b16 %v28
  %v93 = vunpack.c.l.b16 %v29
  %v94 = vunpack.c.l.b16 %v30
  %v95 = vunpack.c.l.b16 %v31
  %v96 = vunpack.c.l.b16 %v32
  %v97 = vunpack.c.l.b16 %v33
  %v98 = vunpack.c.l.b16 %v34
  %v99 = vunpack.c.l.b16 %v35
  %v100 = vunpack.c.l.b16 %v36
  %v101 = vunpack.c.l.b16 %v37
  %v102 = vpack.c.b16 %v87, %v86
  %v103 = vpack.c.b16 %v89, %v88
  %v104 = vpack.c.b16 %v91, %v90
  %v105 = vpack.c.b16 %v93, %v92
  %v106 = vpack.c.b16 %v95, %v94
  %v107 = vpack.c.b16 %v97, %v96
  %v108 = vpack.c.b16 %v99, %v98
  %v109 = vpack.c.b16 %v101, %v100
  %118 = vmatpush.bf16.msra.mxu0 %v109
  %119 = vmatpush.bf16.msra.mxu0 %v108
  %120 = vmatpush.bf16.msra.mxu0 %v107
  %121 = vmatpush.bf16.msra.mxu0 %v106
  %122 = vmatpush.bf16.msra.mxu0 %v105
  %123 = vmatpush.bf16.msra.mxu0 %v104
  %124 = vmatpush.bf16.msra.mxu0 %v103
  %125 = vmatpush.bf16.msra.mxu0 %v102
  %126 = vmatmul.bf16.gmra.mxu0 %v66
  %v127 = vpop.f32.mrf.mxu0
  %v128 = vadd.f32 %v41, %v127
  %v129 = vpop.f32.mrf.mxu0
  %v130 = vadd.f32 %v46, %v129
  %131 = vmatmul.bf16.gmra.mxu0 %v67
  %v132 = vpop.f32.mrf.mxu0
  %v133 = vadd.f32 %v51, %v132
  %v134 = vpop.f32.mrf.mxu0
  %v135 = vadd.f32 %v56, %v134
  %136 = vdwg.mxu0
  %s137 = scalar_lea.vmem %s0, 16
  %v138 = vld [vmem:[%s137] sm:$0xf]
  %v139 = vld [vmem:[%s137 + $0x4] sm:$0xf]
  %v140 = vld [vmem:[%s137 + $0x8] sm:$0xf]
  %v141 = vld [vmem:[%s137 + $0xc] sm:$0xf]
  %s142 = scalar_lea.vmem %s1, 128
  %v143 = vld [vmem:[%s142] sm:$0xf]
  %v144 = vld [vmem:[%s142 + $0x4] sm:$0xf]
  %v145 = vld [vmem:[%s142 + $0x8] sm:$0xf]
  %v146 = vld [vmem:[%s142 + $0xc] sm:$0xf]
  %v147 = vld [vmem:[%s142 + $0x10] sm:$0xf]
  %v148 = vld [vmem:[%s142 + $0x14] sm:$0xf]
  %v149 = vld [vmem:[%s142 + $0x18] sm:$0xf]
  %v150 = vld [vmem:[%s142 + $0x1c] sm:$0xf]
  %v151 = vld [vmem:[%s142 + $0x20] sm:$0xf]
  %v152 = vld [vmem:[%s142 + $0x24] sm:$0xf]
  %v153 = vld [vmem:[%s142 + $0x28] sm:$0xf]
  %v154 = vld [vmem:[%s142 + $0x2c] sm:$0xf]
  %v155 = vld [vmem:[%s142 + $0x30] sm:$0xf]
  %v156 = vld [vmem:[%s142 + $0x34] sm:$0xf]
  %v157 = vld [vmem:[%s142 + $0x38] sm:$0xf]
  %v158 = vld [vmem:[%s142 + $0x3c] sm:$0xf]
  %v163 = vunpack.c.l.b16 %v138
  %v164 = vunpack.c.l.b16 %v139
  %v165 = vunpack.c.l.b16 %v140
  %v166 = vunpack.c.l.b16 %v141
  %v167 = vpack.c.b16 %v164, %v163
  %v168 = vpack.c.b16 %v166, %v165
  %v187 = vunpack.c.l.b16 %v143
  %v188 = vunpack.c.l.b16 %v144
  %v189 = vunpack.c.l.b16 %v145
  %v190 = vunpack.c.l.b16 %v146
  %v191 = vunpack.c.l.b16 %v147
  %v192 = vunpack.c.l.b16 %v148
  %v193 = vunpack.c.l.b16 %v149
  %v194 = vunpack.c.l.b16 %v150
  %v195 = vunpack.c.l.b16 %v151
  %v196 = vunpack.c.l.b16 %v152
  %v197 = vunpack.c.l.b16 %v153
  %v198 = vunpack.c.l.b16 %v154
  %v199 = vunpack.c.l.b16 %v155
  %v200 = vunpack.c.l.b16 %v156
  %v201 = vunpack.c.l.b16 %v157
  %v202 = vunpack.c.l.b16 %v158
  %v203 = vpack.c.b16 %v188, %v187
  %v204 = vpack.c.b16 %v190, %v189
  %v205 = vpack.c.b16 %v192, %v191
  %v206 = vpack.c.b16 %v194, %v193
  %v207 = vpack.c.b16 %v196, %v195
  %v208 = vpack.c.b16 %v198, %v197
  %v209 = vpack.c.b16 %v200, %v199
  %v210 = vpack.c.b16 %v202, %v201
  %219 = vmatpush.bf16.msra.mxu0 %v210
  %220 = vmatpush.bf16.msra.mxu0 %v209
  %221 = vmatpush.bf16.msra.mxu0 %v208
  %222 = vmatpush.bf16.msra.mxu0 %v207
  %223 = vmatpush.bf16.msra.mxu0 %v206
  %224 = vmatpush.bf16.msra.mxu0 %v205
  %225 = vmatpush.bf16.msra.mxu0 %v204
  %226 = vmatpush.bf16.msra.mxu0 %v203
  %227 = vmatmul.bf16.gmra.mxu0 %v167
  %v228 = vpop.f32.mrf.mxu0
  %v229 = vadd.f32 %v41, %v228
  %v230 = vpop.f32.mrf.mxu0
  %v231 = vadd.f32 %v46, %v230
  %232 = vmatmul.bf16.gmra.mxu0 %v168
  %v233 = vpop.f32.mrf.mxu0
  %v234 = vadd.f32 %v51, %v233
  %v235 = vpop.f32.mrf.mxu0
  %v236 = vadd.f32 %v56, %v235
  %237 = vdwg.mxu0
  %s238 = scalar_lea.vmem %s0, 32
  %v239 = vld [vmem:[%s238] sm:$0xf]
  %v240 = vld [vmem:[%s238 + $0x4] sm:$0xf]
  %v241 = vld [vmem:[%s238 + $0x8] sm:$0xf]
  %v242 = vld [vmem:[%s238 + $0xc] sm:$0xf]
  %s243 = scalar_lea.vmem %s1, 256
  %v244 = vld [vmem:[%s243] sm:$0xf]
  %v245 = vld [vmem:[%s243 + $0x4] sm:$0xf]
  %v246 = vld [vmem:[%s243 + $0x8] sm:$0xf]
  %v247 = vld [vmem:[%s243 + $0xc] sm:$0xf]
  %v248 = vld [vmem:[%s243 + $0x10] sm:$0xf]
  %v249 = vld [vmem:[%s243 + $0x14] sm:$0xf]
  %v250 = vld [vmem:[%s243 + $0x18] sm:$0xf]
  %v251 = vld [vmem:[%s243 + $0x1c] sm:$0xf]
  %v252 = vld [vmem:[%s243 + $0x20] sm:$0xf]
  %v253 = vld [vmem:[%s243 + $0x24] sm:$0xf]
  %v254 = vld [vmem:[%s243 + $0x28] sm:$0xf]
  %v255 = vld [vmem:[%s243 + $0x2c] sm:$0xf]
  %v256 = vld [vmem:[%s243 + $0x30] sm:$0xf]
  %v257 = vld [vmem:[%s243 + $0x34] sm:$0xf]
  %v258 = vld [vmem:[%s243 + $0x38] sm:$0xf]
  %v259 = vld [vmem:[%s243 + $0x3c] sm:$0xf]
  %v264 = vunpack.c.l.b16 %v239
  %v265 = vunpack.c.l.b16 %v240
  %v266 = vunpack.c.l.b16 %v241
  %v267 = vunpack.c.l.b16 %v242
  %v268 = vpack.c.b16 %v265, %v264
  %v269 = vpack.c.b16 %v267, %v266
  %v288 = vunpack.c.l.b16 %v244
  %v289 = vunpack.c.l.b16 %v245
  %v290 = vunpack.c.l.b16 %v246
  %v291 = vunpack.c.l.b16 %v247
  %v292 = vunpack.c.l.b16 %v248
  %v293 = vunpack.c.l.b16 %v249
  %v294 = vunpack.c.l.b16 %v250
  %v295 = vunpack.c.l.b16 %v251
  %v296 = vunpack.c.l.b16 %v252
  %v297 = vunpack.c.l.b16 %v253
  %v298 = vunpack.c.l.b16 %v254
  %v299 = vunpack.c.l.b16 %v255
  %v300 = vunpack.c.l.b16 %v256
  %v301 = vunpack.c.l.b16 %v257
  %v302 = vunpack.c.l.b16 %v258
  %v303 = vunpack.c.l.b16 %v259
  %v304 = vpack.c.b16 %v289, %v288
  %v305 = vpack.c.b16 %v291, %v290
  %v306 = vpack.c.b16 %v293, %v292
  %v307 = vpack.c.b16 %v295, %v294
  %v308 = vpack.c.b16 %v297, %v296
  %v309 = vpack.c.b16 %v299, %v298
  %v310 = vpack.c.b16 %v301, %v300
  %v311 = vpack.c.b16 %v303, %v302
  %320 = vmatpush.bf16.msra.mxu0 %v311
  %321 = vmatpush.bf16.msra.mxu0 %v310
  %322 = vmatpush.bf16.msra.mxu0 %v309
  %323 = vmatpush.bf16.msra.mxu0 %v308
  %324 = vmatpush.bf16.msra.mxu0 %v307
  %325 = vmatpush.bf16.msra.mxu0 %v306
  %326 = vmatpush.bf16.msra.mxu0 %v305
  %327 = vmatpush.bf16.msra.mxu0 %v304
  %328 = vmatmul.bf16.gmra.mxu0 %v268
  %v329 = vpop.f32.mrf.mxu0
  %v330 = vadd.f32 %v41, %v329
  %v331 = vpop.f32.mrf.mxu0
  %v332 = vadd.f32 %v46, %v331
  %333 = vmatmul.bf16.gmra.mxu0 %v269
  %v334 = vpop.f32.mrf.mxu0
  %v335 = vadd.f32 %v51, %v334
  %v336 = vpop.f32.mrf.mxu0
  %v337 = vadd.f32 %v56, %v336
  %338 = vdwg.mxu0
  %s339 = scalar_lea.vmem %s0, 48
  %v340 = vld [vmem:[%s339] sm:$0xf]
  %v341 = vld [vmem:[%s339 + $0x4] sm:$0xf]
  %v342 = vld [vmem:[%s339 + $0x8] sm:$0xf]
  %v343 = vld [vmem:[%s339 + $0xc] sm:$0xf]
  %s344 = scalar_lea.vmem %s1, 384
  %v345 = vld [vmem:[%s344] sm:$0xf]
  %v346 = vld [vmem:[%s344 + $0x4] sm:$0xf]
  %v347 = vld [vmem:[%s344 + $0x8] sm:$0xf]
  %v348 = vld [vmem:[%s344 + $0xc] sm:$0xf]
  %v349 = vld [vmem:[%s344 + $0x10] sm:$0xf]
  %v350 = vld [vmem:[%s344 + $0x14] sm:$0xf]
  %v351 = vld [vmem:[%s344 + $0x18] sm:$0xf]
  %v352 = vld [vmem:[%s344 + $0x1c] sm:$0xf]
  %v353 = vld [vmem:[%s344 + $0x20] sm:$0xf]
  %v354 = vld [vmem:[%s344 + $0x24] sm:$0xf]
  %v355 = vld [vmem:[%s344 + $0x28] sm:$0xf]
  %v356 = vld [vmem:[%s344 + $0x2c] sm:$0xf]
  %v357 = vld [vmem:[%s344 + $0x30] sm:$0xf]
  %v358 = vld [vmem:[%s344 + $0x34] sm:$0xf]
  %v359 = vld [vmem:[%s344 + $0x38] sm:$0xf]
  %v360 = vld [vmem:[%s344 + $0x3c] sm:$0xf]
  %v365 = vunpack.c.l.b16 %v340
  %v366 = vunpack.c.l.b16 %v341
  %v367 = vunpack.c.l.b16 %v342
  %v368 = vunpack.c.l.b16 %v343
  %v369 = vpack.c.b16 %v366, %v365
  %v370 = vpack.c.b16 %v368, %v367
  %v389 = vunpack.c.l.b16 %v345
  %v390 = vunpack.c.l.b16 %v346
  %v391 = vunpack.c.l.b16 %v347
  %v392 = vunpack.c.l.b16 %v348
  %v393 = vunpack.c.l.b16 %v349
  %v394 = vunpack.c.l.b16 %v350
  %v395 = vunpack.c.l.b16 %v351
  %v396 = vunpack.c.l.b16 %v352
  %v397 = vunpack.c.l.b16 %v353
  %v398 = vunpack.c.l.b16 %v354
  %v399 = vunpack.c.l.b16 %v355
  %v400 = vunpack.c.l.b16 %v356
  %v401 = vunpack.c.l.b16 %v357
  %v402 = vunpack.c.l.b16 %v358
  %v403 = vunpack.c.l.b16 %v359
  %v404 = vunpack.c.l.b16 %v360
  %v405 = vpack.c.b16 %v390, %v389
  %v406 = vpack.c.b16 %v392, %v391
  %v407 = vpack.c.b16 %v394, %v393
  %v408 = vpack.c.b16 %v396, %v395
  %v409 = vpack.c.b16 %v398, %v397
  %v410 = vpack.c.b16 %v400, %v399
  %v411 = vpack.c.b16 %v402, %v401
  %v412 = vpack.c.b16 %v404, %v403
  %421 = vmatpush.bf16.msra.mxu0 %v412
  %422 = vmatpush.bf16.msra.mxu0 %v411
  %423 = vmatpush.bf16.msra.mxu0 %v410
  %424 = vmatpush.bf16.msra.mxu0 %v409
  %425 = vmatpush.bf16.msra.mxu0 %v408
  %426 = vmatpush.bf16.msra.mxu0 %v407
  %427 = vmatpush.bf16.msra.mxu0 %v406
  %428 = vmatpush.bf16.msra.mxu0 %v405
  %429 = vmatmul.bf16.gmra.mxu0 %v369
  %v430 = vpop.f32.mrf.mxu0
  %v431 = vadd.f32 %v41, %v430
  %v432 = vpop.f32.mrf.mxu0
  %v433 = vadd.f32 %v46, %v432
  %434 = vmatmul.bf16.gmra.mxu0 %v370
  %v435 = vpop.f32.mrf.mxu0
  %v436 = vadd.f32 %v51, %v435
  %v437 = vpop.f32.mrf.mxu0
  %v438 = vadd.f32 %v56, %v437
  %439 = vdwg.mxu0
  %vm440 = vcmask 130048
  %v441 = vsel %vm440, %v128, 0.0
  %442 = vadd.xlane.f32.xlu0 %v441
  %v443 = vpop.xlane.xlu0 %442
  %v444 = vsel %vm440, %v130, 0.0
  %445 = vadd.xlane.f32.xlu0 %v444
  %v446 = vpop.xlane.xlu0 %445
  %v447 = vsel %vm440, %v133, 0.0
  %448 = vadd.xlane.f32.xlu0 %v447
  %v449 = vpop.xlane.xlu0 %448
  %v450 = vsel %vm440, %v135, 0.0
  %451 = vadd.xlane.f32.xlu0 %v450
  %v452 = vpop.xlane.xlu0 %451
  %v453 = vsel %vm440, %v229, 0.0
  %454 = vadd.xlane.f32.xlu0 %v453
  %v455 = vpop.xlane.xlu0 %454
  %v456 = vsel %vm440, %v231, 0.0
  %457 = vadd.xlane.f32.xlu0 %v456
  %v458 = vpop.xlane.xlu0 %457
  %v459 = vsel %vm440, %v234, 0.0
  %460 = vadd.xlane.f32.xlu0 %v459
  %v461 = vpop.xlane.xlu0 %460
  %v462 = vsel %vm440, %v236, 0.0
  %463 = vadd.xlane.f32.xlu0 %v462
  %v464 = vpop.xlane.xlu0 %463
  %v465 = vadd.f32 %v443, %v455
  %v466 = vadd.f32 %v446, %v458
  %v467 = vadd.f32 %v449, %v461
  %v468 = vadd.f32 %v452, %v464
  %v469 = vsel %vm440, %v330, 0.0
  %470 = vadd.xlane.f32.xlu0 %v469
  %v471 = vpop.xlane.xlu0 %470
  %v472 = vsel %vm440, %v332, 0.0
  %473 = vadd.xlane.f32.xlu0 %v472
  %v474 = vpop.xlane.xlu0 %473
  %v475 = vsel %vm440, %v335, 0.0
  %476 = vadd.xlane.f32.xlu0 %v475
  %v477 = vpop.xlane.xlu0 %476
  %v478 = vsel %vm440, %v337, 0.0
  %479 = vadd.xlane.f32.xlu0 %v478
  %v480 = vpop.xlane.xlu0 %479
  %v481 = vadd.f32 %v465, %v471
  %v482 = vadd.f32 %v466, %v474
  %v483 = vadd.f32 %v467, %v477
  %v484 = vadd.f32 %v468, %v480
  %v485 = vsel %vm440, %v431, 0.0
  %486 = vadd.xlane.f32.xlu0 %v485
  %v487 = vpop.xlane.xlu0 %486
  %v488 = vsel %vm440, %v433, 0.0
  %489 = vadd.xlane.f32.xlu0 %v488
  %v490 = vpop.xlane.xlu0 %489
  %v491 = vsel %vm440, %v436, 0.0
  %492 = vadd.xlane.f32.xlu0 %v491
  %v493 = vpop.xlane.xlu0 %492
  %v494 = vsel %vm440, %v438, 0.0
  %495 = vadd.xlane.f32.xlu0 %v494
  %v496 = vpop.xlane.xlu0 %495
  %v497 = vadd.f32 %v481, %v487
  %v498 = vadd.f32 %v482, %v490
  %v499 = vadd.f32 %v483, %v493
  %v500 = vadd.f32 %v484, %v496
  %v501 = vmul.f32 %v497, 0.015625
  %v502 = vmul.f32 %v498, 0.015625
  %v503 = vmul.f32 %v499, 0.015625
  %v504 = vmul.f32 %v500, 0.015625
  %v505 = vsub.f32 %v128, %v501
  %v506 = vsub.f32 %v130, %v502
  %v507 = vsub.f32 %v133, %v503
  %v508 = vsub.f32 %v135, %v504
  %v509 = vmul.f32 %v505, %v505
  %v510 = vmul.f32 %v506, %v506
  %v511 = vmul.f32 %v507, %v507
  %v512 = vmul.f32 %v508, %v508
  %v513 = vsel %vm440, %v509, 0.0
  %514 = vadd.xlane.f32.xlu0 %v513
  %v515 = vpop.xlane.xlu0 %514
  %v516 = vsel %vm440, %v510, 0.0
  %517 = vadd.xlane.f32.xlu0 %v516
  %v518 = vpop.xlane.xlu0 %517
  %v519 = vsel %vm440, %v511, 0.0
  %520 = vadd.xlane.f32.xlu0 %v519
  %v521 = vpop.xlane.xlu0 %520
  %v522 = vsel %vm440, %v512, 0.0
  %523 = vadd.xlane.f32.xlu0 %v522
  %v524 = vpop.xlane.xlu0 %523
  %v525 = vsub.f32 %v229, %v501
  %v526 = vsub.f32 %v231, %v502
  %v527 = vsub.f32 %v234, %v503
  %v528 = vsub.f32 %v236, %v504
  %v529 = vmul.f32 %v525, %v525
  %v530 = vmul.f32 %v526, %v526
  %v531 = vmul.f32 %v527, %v527
  %v532 = vmul.f32 %v528, %v528
  %v533 = vsel %vm440, %v529, 0.0
  %534 = vadd.xlane.f32.xlu0 %v533
  %v535 = vpop.xlane.xlu0 %534
  %v536 = vsel %vm440, %v530, 0.0
  %537 = vadd.xlane.f32.xlu0 %v536
  %v538 = vpop.xlane.xlu0 %537
  %v539 = vsel %vm440, %v531, 0.0
  %540 = vadd.xlane.f32.xlu0 %v539
  %v541 = vpop.xlane.xlu0 %540
  %v542 = vsel %vm440, %v532, 0.0
  %543 = vadd.xlane.f32.xlu0 %v542
  %v544 = vpop.xlane.xlu0 %543
  %v545 = vadd.f32 %v515, %v535
  %v546 = vadd.f32 %v518, %v538
  %v547 = vadd.f32 %v521, %v541
  %v548 = vadd.f32 %v524, %v544
  %v549 = vsub.f32 %v330, %v501
  %v550 = vsub.f32 %v332, %v502
  %v551 = vsub.f32 %v335, %v503
  %v552 = vsub.f32 %v337, %v504
  %v553 = vmul.f32 %v549, %v549
  %v554 = vmul.f32 %v550, %v550
  %v555 = vmul.f32 %v551, %v551
  %v556 = vmul.f32 %v552, %v552
  %v557 = vsel %vm440, %v553, 0.0
  %558 = vadd.xlane.f32.xlu0 %v557
  %v559 = vpop.xlane.xlu0 %558
  %v560 = vsel %vm440, %v554, 0.0
  %561 = vadd.xlane.f32.xlu0 %v560
  %v562 = vpop.xlane.xlu0 %561
  %v563 = vsel %vm440, %v555, 0.0
  %564 = vadd.xlane.f32.xlu0 %v563
  %v565 = vpop.xlane.xlu0 %564
  %v566 = vsel %vm440, %v556, 0.0
  %567 = vadd.xlane.f32.xlu0 %v566
  %v568 = vpop.xlane.xlu0 %567
  %v569 = vadd.f32 %v545, %v559
  %v570 = vadd.f32 %v546, %v562
  %v571 = vadd.f32 %v547, %v565
  %v572 = vadd.f32 %v548, %v568
  %v573 = vsub.f32 %v431, %v501
  %v574 = vsub.f32 %v433, %v502
  %v575 = vsub.f32 %v436, %v503
  %v576 = vsub.f32 %v438, %v504
  %v577 = vmul.f32 %v573, %v573
  %v578 = vmul.f32 %v574, %v574
  %v579 = vmul.f32 %v575, %v575
  %v580 = vmul.f32 %v576, %v576
  %v581 = vsel %vm440, %v577, 0.0
  %582 = vadd.xlane.f32.xlu0 %v581
  %v583 = vpop.xlane.xlu0 %582
  %v584 = vsel %vm440, %v578, 0.0
  %585 = vadd.xlane.f32.xlu0 %v584
  %v586 = vpop.xlane.xlu0 %585
  %v587 = vsel %vm440, %v579, 0.0
  %588 = vadd.xlane.f32.xlu0 %v587
  %v589 = vpop.xlane.xlu0 %588
  %v590 = vsel %vm440, %v580, 0.0
  %591 = vadd.xlane.f32.xlu0 %v590
  %v592 = vpop.xlane.xlu0 %591
  %v593 = vadd.f32 %v569, %v583
  %v594 = vadd.f32 %v570, %v586
  %v595 = vadd.f32 %v571, %v589
  %v596 = vadd.f32 %v572, %v592
  %v597 = vmul.f32 %v593, 0.015625
  %v598 = vmul.f32 %v594, 0.015625
  %v599 = vmul.f32 %v595, 0.015625
  %v600 = vmul.f32 %v596, 0.015625
  %v601 = vadd.f32 %v597, 1e-08
  %v602 = vadd.f32 %v598, 1e-08
  %v603 = vadd.f32 %v599, 1e-08
  %v604 = vadd.f32 %v600, 1e-08
  %v605 = vrsqrt.pop %v601
  %v606 = vmul.f32 %v605, %v601
  %v607 = vmul.f32 %v606, %v605
  %v608 = vmul.f32 0.5, %v607
  %v609 = vsub.f32 1.5, %v608
  %v610 = vmul.f32 %v605, %v609
  %vm611 = vweird.f32 %v601
  %vm612 = vweird.f32 %v605
  %vm613 = vmor %vm611, %vm612
  %v614 = vsel %vm613, %v605, %v610
  %v615 = vrsqrt.pop %v602
  %v616 = vmul.f32 %v615, %v602
  %v617 = vmul.f32 %v616, %v615
  %v618 = vmul.f32 0.5, %v617
  %v619 = vsub.f32 1.5, %v618
  %v620 = vmul.f32 %v615, %v619
  %vm621 = vweird.f32 %v602
  %vm622 = vweird.f32 %v615
  %vm623 = vmor %vm621, %vm622
  %v624 = vsel %vm623, %v615, %v620
  %v625 = vrsqrt.pop %v603
  %v626 = vmul.f32 %v625, %v603
  %v627 = vmul.f32 %v626, %v625
  %v628 = vmul.f32 0.5, %v627
  %v629 = vsub.f32 1.5, %v628
  %v630 = vmul.f32 %v625, %v629
  %vm631 = vweird.f32 %v603
  %vm632 = vweird.f32 %v625
  %vm633 = vmor %vm631, %vm632
  %v634 = vsel %vm633, %v625, %v630
  %v635 = vrsqrt.pop %v604
  %v636 = vmul.f32 %v635, %v604
  %v637 = vmul.f32 %v636, %v635
  %v638 = vmul.f32 0.5, %v637
  %v639 = vsub.f32 1.5, %v638
  %v640 = vmul.f32 %v635, %v639
  %vm641 = vweird.f32 %v604
  %vm642 = vweird.f32 %v635
  %vm643 = vmor %vm641, %vm642
  %v644 = vsel %vm643, %v635, %v640
  %v645 = vmul.f32 %v505, %v614
  %v646 = vmul.f32 %v506, %v624
  %v647 = vmul.f32 %v507, %v634
  %v648 = vmul.f32 %v508, %v644
  %vm649 = vcmp.ge.f32.partialorder %v645, 0.0
  %vm650 = vcmp.ge.f32.partialorder %v646, 0.0
  %vm651 = vcmp.ge.f32.partialorder %v647, 0.0
  %vm652 = vcmp.ge.f32.partialorder %v648, 0.0
  %v653 = vmul.f32 %v645, 0.2
  %v654 = vmul.f32 %v646, 0.2
  %v655 = vmul.f32 %v647, 0.2
  %v656 = vmul.f32 %v648, 0.2
  %v657 = vsel %vm649, %v645, %v653
  %v658 = vsel %vm650, %v646, %v654
  %v659 = vsel %vm651, %v647, %v655
  %v660 = vsel %vm652, %v648, %v656
  %661 = vst.msk [vmem:[%s3] sm:$0xff] %vm440, %v657
  %662 = vst.msk [vmem:[%s3 + $0x8] sm:$0xff] %vm440, %v658
  %663 = vst.msk [vmem:[%s3 + $0x10] sm:$0xff] %vm440, %v659
  %664 = vst.msk [vmem:[%s3 + $0x18] sm:$0xff] %vm440, %v660
  %v665 = vmul.f32 %v525, %v614
  %v666 = vmul.f32 %v526, %v624
  %v667 = vmul.f32 %v527, %v634
  %v668 = vmul.f32 %v528, %v644
  %vm669 = vcmp.ge.f32.partialorder %v665, 0.0
  %vm670 = vcmp.ge.f32.partialorder %v666, 0.0
  %vm671 = vcmp.ge.f32.partialorder %v667, 0.0
  %vm672 = vcmp.ge.f32.partialorder %v668, 0.0
  %v673 = vmul.f32 %v665, 0.2
  %v674 = vmul.f32 %v666, 0.2
  %v675 = vmul.f32 %v667, 0.2
  %v676 = vmul.f32 %v668, 0.2
  %v677 = vsel %vm669, %v665, %v673
  %v678 = vsel %vm670, %v666, %v674
  %v679 = vsel %vm671, %v667, %v675
  %v680 = vsel %vm672, %v668, %v676
  %s681 = scalar_lea.vmem %s3, 32
  %682 = vst.msk [vmem:[%s681] sm:$0xff] %vm440, %v677
  %683 = vst.msk [vmem:[%s681 + $0x8] sm:$0xff] %vm440, %v678
  %684 = vst.msk [vmem:[%s681 + $0x10] sm:$0xff] %vm440, %v679
  %685 = vst.msk [vmem:[%s681 + $0x18] sm:$0xff] %vm440, %v680
  %v686 = vmul.f32 %v549, %v614
  %v687 = vmul.f32 %v550, %v624
  %v688 = vmul.f32 %v551, %v634
  %v689 = vmul.f32 %v552, %v644
  %vm690 = vcmp.ge.f32.partialorder %v686, 0.0
  %vm691 = vcmp.ge.f32.partialorder %v687, 0.0
  %vm692 = vcmp.ge.f32.partialorder %v688, 0.0
  %vm693 = vcmp.ge.f32.partialorder %v689, 0.0
  %v694 = vmul.f32 %v686, 0.2
  %v695 = vmul.f32 %v687, 0.2
  %v696 = vmul.f32 %v688, 0.2
  %v697 = vmul.f32 %v689, 0.2
  %v698 = vsel %vm690, %v686, %v694
  %v699 = vsel %vm691, %v687, %v695
  %v700 = vsel %vm692, %v688, %v696
  %v701 = vsel %vm693, %v689, %v697
  %s702 = scalar_lea.vmem %s3, 64
  %703 = vst.msk [vmem:[%s702] sm:$0xff] %vm440, %v698
  %704 = vst.msk [vmem:[%s702 + $0x8] sm:$0xff] %vm440, %v699
  %705 = vst.msk [vmem:[%s702 + $0x10] sm:$0xff] %vm440, %v700
  %706 = vst.msk [vmem:[%s702 + $0x18] sm:$0xff] %vm440, %v701
  %v707 = vmul.f32 %v573, %v614
  %v708 = vmul.f32 %v574, %v624
  %v709 = vmul.f32 %v575, %v634
  %v710 = vmul.f32 %v576, %v644
  %vm711 = vcmp.ge.f32.partialorder %v707, 0.0
  %vm712 = vcmp.ge.f32.partialorder %v708, 0.0
  %vm713 = vcmp.ge.f32.partialorder %v709, 0.0
  %vm714 = vcmp.ge.f32.partialorder %v710, 0.0
  %v715 = vmul.f32 %v707, 0.2
  %v716 = vmul.f32 %v708, 0.2
  %v717 = vmul.f32 %v709, 0.2
  %v718 = vmul.f32 %v710, 0.2
  %v719 = vsel %vm711, %v707, %v715
  %v720 = vsel %vm712, %v708, %v716
  %v721 = vsel %vm713, %v709, %v717
  %v722 = vsel %vm714, %v710, %v718
  %s723 = scalar_lea.vmem %s3, 96
  %724 = vst.msk [vmem:[%s723] sm:$0xff] %vm440, %v719
  %725 = vst.msk [vmem:[%s723 + $0x8] sm:$0xff] %vm440, %v720
  %726 = vst.msk [vmem:[%s723 + $0x10] sm:$0xff] %vm440, %v721
  %727 = vst.msk [vmem:[%s723 + $0x18] sm:$0xff] %vm440, %v722
  %v728 = vld [vmem:[%s0] sm:$0xf]
  %v729 = vld [vmem:[%s0 + $0x4] sm:$0xf]
  %v730 = vld [vmem:[%s0 + $0x8] sm:$0xf]
  %v731 = vld [vmem:[%s0 + $0xc] sm:$0xf]
  %s732 = scalar_lea.vmem %s1, 64
  %v733 = vld [vmem:[%s732] sm:$0xf]
  %v734 = vld [vmem:[%s732 + $0x4] sm:$0xf]
  %v735 = vld [vmem:[%s732 + $0x8] sm:$0xf]
  %v736 = vld [vmem:[%s732 + $0xc] sm:$0xf]
  %v737 = vld [vmem:[%s732 + $0x10] sm:$0xf]
  %v738 = vld [vmem:[%s732 + $0x14] sm:$0xf]
  %v739 = vld [vmem:[%s732 + $0x18] sm:$0xf]
  %v740 = vld [vmem:[%s732 + $0x1c] sm:$0xf]
  %v741 = vld [vmem:[%s732 + $0x20] sm:$0xf]
  %v742 = vld [vmem:[%s732 + $0x24] sm:$0xf]
  %v743 = vld [vmem:[%s732 + $0x28] sm:$0xf]
  %v744 = vld [vmem:[%s732 + $0x2c] sm:$0xf]
  %v745 = vld [vmem:[%s732 + $0x30] sm:$0xf]
  %v746 = vld [vmem:[%s732 + $0x34] sm:$0xf]
  %v747 = vld [vmem:[%s732 + $0x38] sm:$0xf]
  %v748 = vld [vmem:[%s732 + $0x3c] sm:$0xf]
  %v753 = vunpack.c.l.b16 %v728
  %v754 = vunpack.c.l.b16 %v729
  %v755 = vunpack.c.l.b16 %v730
  %v756 = vunpack.c.l.b16 %v731
  %v757 = vpack.c.b16 %v754, %v753
  %v758 = vpack.c.b16 %v756, %v755
  %v777 = vunpack.c.l.b16 %v733
  %v778 = vunpack.c.l.b16 %v734
  %v779 = vunpack.c.l.b16 %v735
  %v780 = vunpack.c.l.b16 %v736
  %v781 = vunpack.c.l.b16 %v737
  %v782 = vunpack.c.l.b16 %v738
  %v783 = vunpack.c.l.b16 %v739
  %v784 = vunpack.c.l.b16 %v740
  %v785 = vunpack.c.l.b16 %v741
  %v786 = vunpack.c.l.b16 %v742
  %v787 = vunpack.c.l.b16 %v743
  %v788 = vunpack.c.l.b16 %v744
  %v789 = vunpack.c.l.b16 %v745
  %v790 = vunpack.c.l.b16 %v746
  %v791 = vunpack.c.l.b16 %v747
  %v792 = vunpack.c.l.b16 %v748
  %v793 = vpack.c.b16 %v778, %v777
  %v794 = vpack.c.b16 %v780, %v779
  %v795 = vpack.c.b16 %v782, %v781
  %v796 = vpack.c.b16 %v784, %v783
  %v797 = vpack.c.b16 %v786, %v785
  %v798 = vpack.c.b16 %v788, %v787
  %v799 = vpack.c.b16 %v790, %v789
  %v800 = vpack.c.b16 %v792, %v791
  %809 = vmatpush.bf16.msra.mxu0 %v800
  %810 = vmatpush.bf16.msra.mxu0 %v799
  %811 = vmatpush.bf16.msra.mxu0 %v798
  %812 = vmatpush.bf16.msra.mxu0 %v797
  %813 = vmatpush.bf16.msra.mxu0 %v796
  %814 = vmatpush.bf16.msra.mxu0 %v795
  %815 = vmatpush.bf16.msra.mxu0 %v794
  %816 = vmatpush.bf16.msra.mxu0 %v793
  %817 = vmatmul.bf16.gmra.mxu0 %v757
  %v818 = vpop.f32.mrf.mxu0
  %v819 = vadd.f32 %v41, %v818
  %v820 = vpop.f32.mrf.mxu0
  %v821 = vadd.f32 %v46, %v820
  %822 = vmatmul.bf16.gmra.mxu0 %v758
  %v823 = vpop.f32.mrf.mxu0
  %v824 = vadd.f32 %v51, %v823
  %v825 = vpop.f32.mrf.mxu0
  %v826 = vadd.f32 %v56, %v825
  %827 = vdwg.mxu0
  %v828 = vld [vmem:[%s137] sm:$0xf]
  %v829 = vld [vmem:[%s137 + $0x4] sm:$0xf]
  %v830 = vld [vmem:[%s137 + $0x8] sm:$0xf]
  %v831 = vld [vmem:[%s137 + $0xc] sm:$0xf]
  %s832 = scalar_lea.vmem %s1, 192
  %v833 = vld [vmem:[%s832] sm:$0xf]
  %v834 = vld [vmem:[%s832 + $0x4] sm:$0xf]
  %v835 = vld [vmem:[%s832 + $0x8] sm:$0xf]
  %v836 = vld [vmem:[%s832 + $0xc] sm:$0xf]
  %v837 = vld [vmem:[%s832 + $0x10] sm:$0xf]
  %v838 = vld [vmem:[%s832 + $0x14] sm:$0xf]
  %v839 = vld [vmem:[%s832 + $0x18] sm:$0xf]
  %v840 = vld [vmem:[%s832 + $0x1c] sm:$0xf]
  %v841 = vld [vmem:[%s832 + $0x20] sm:$0xf]
  %v842 = vld [vmem:[%s832 + $0x24] sm:$0xf]
  %v843 = vld [vmem:[%s832 + $0x28] sm:$0xf]
  %v844 = vld [vmem:[%s832 + $0x2c] sm:$0xf]
  %v845 = vld [vmem:[%s832 + $0x30] sm:$0xf]
  %v846 = vld [vmem:[%s832 + $0x34] sm:$0xf]
  %v847 = vld [vmem:[%s832 + $0x38] sm:$0xf]
  %v848 = vld [vmem:[%s832 + $0x3c] sm:$0xf]
  %v853 = vunpack.c.l.b16 %v828
  %v854 = vunpack.c.l.b16 %v829
  %v855 = vunpack.c.l.b16 %v830
  %v856 = vunpack.c.l.b16 %v831
  %v857 = vpack.c.b16 %v854, %v853
  %v858 = vpack.c.b16 %v856, %v855
  %v877 = vunpack.c.l.b16 %v833
  %v878 = vunpack.c.l.b16 %v834
  %v879 = vunpack.c.l.b16 %v835
  %v880 = vunpack.c.l.b16 %v836
  %v881 = vunpack.c.l.b16 %v837
  %v882 = vunpack.c.l.b16 %v838
  %v883 = vunpack.c.l.b16 %v839
  %v884 = vunpack.c.l.b16 %v840
  %v885 = vunpack.c.l.b16 %v841
  %v886 = vunpack.c.l.b16 %v842
  %v887 = vunpack.c.l.b16 %v843
  %v888 = vunpack.c.l.b16 %v844
  %v889 = vunpack.c.l.b16 %v845
  %v890 = vunpack.c.l.b16 %v846
  %v891 = vunpack.c.l.b16 %v847
  %v892 = vunpack.c.l.b16 %v848
  %v893 = vpack.c.b16 %v878, %v877
  %v894 = vpack.c.b16 %v880, %v879
  %v895 = vpack.c.b16 %v882, %v881
  %v896 = vpack.c.b16 %v884, %v883
  %v897 = vpack.c.b16 %v886, %v885
  %v898 = vpack.c.b16 %v888, %v887
  %v899 = vpack.c.b16 %v890, %v889
  %v900 = vpack.c.b16 %v892, %v891
  %909 = vmatpush.bf16.msra.mxu0 %v900
  %910 = vmatpush.bf16.msra.mxu0 %v899
  %911 = vmatpush.bf16.msra.mxu0 %v898
  %912 = vmatpush.bf16.msra.mxu0 %v897
  %913 = vmatpush.bf16.msra.mxu0 %v896
  %914 = vmatpush.bf16.msra.mxu0 %v895
  %915 = vmatpush.bf16.msra.mxu0 %v894
  %916 = vmatpush.bf16.msra.mxu0 %v893
  %917 = vmatmul.bf16.gmra.mxu0 %v857
  %v918 = vpop.f32.mrf.mxu0
  %v919 = vadd.f32 %v41, %v918
  %v920 = vpop.f32.mrf.mxu0
  %v921 = vadd.f32 %v46, %v920
  %922 = vmatmul.bf16.gmra.mxu0 %v858
  %v923 = vpop.f32.mrf.mxu0
  %v924 = vadd.f32 %v51, %v923
  %v925 = vpop.f32.mrf.mxu0
  %v926 = vadd.f32 %v56, %v925
  %927 = vdwg.mxu0
  %v928 = vld [vmem:[%s238] sm:$0xf]
  %v929 = vld [vmem:[%s238 + $0x4] sm:$0xf]
  %v930 = vld [vmem:[%s238 + $0x8] sm:$0xf]
  %v931 = vld [vmem:[%s238 + $0xc] sm:$0xf]
  %s932 = scalar_lea.vmem %s1, 320
  %v933 = vld [vmem:[%s932] sm:$0xf]
  %v934 = vld [vmem:[%s932 + $0x4] sm:$0xf]
  %v935 = vld [vmem:[%s932 + $0x8] sm:$0xf]
  %v936 = vld [vmem:[%s932 + $0xc] sm:$0xf]
  %v937 = vld [vmem:[%s932 + $0x10] sm:$0xf]
  %v938 = vld [vmem:[%s932 + $0x14] sm:$0xf]
  %v939 = vld [vmem:[%s932 + $0x18] sm:$0xf]
  %v940 = vld [vmem:[%s932 + $0x1c] sm:$0xf]
  %v941 = vld [vmem:[%s932 + $0x20] sm:$0xf]
  %v942 = vld [vmem:[%s932 + $0x24] sm:$0xf]
  %v943 = vld [vmem:[%s932 + $0x28] sm:$0xf]
  %v944 = vld [vmem:[%s932 + $0x2c] sm:$0xf]
  %v945 = vld [vmem:[%s932 + $0x30] sm:$0xf]
  %v946 = vld [vmem:[%s932 + $0x34] sm:$0xf]
  %v947 = vld [vmem:[%s932 + $0x38] sm:$0xf]
  %v948 = vld [vmem:[%s932 + $0x3c] sm:$0xf]
  %v953 = vunpack.c.l.b16 %v928
  %v954 = vunpack.c.l.b16 %v929
  %v955 = vunpack.c.l.b16 %v930
  %v956 = vunpack.c.l.b16 %v931
  %v957 = vpack.c.b16 %v954, %v953
  %v958 = vpack.c.b16 %v956, %v955
  %v977 = vunpack.c.l.b16 %v933
  %v978 = vunpack.c.l.b16 %v934
  %v979 = vunpack.c.l.b16 %v935
  %v980 = vunpack.c.l.b16 %v936
  %v981 = vunpack.c.l.b16 %v937
  %v982 = vunpack.c.l.b16 %v938
  %v983 = vunpack.c.l.b16 %v939
  %v984 = vunpack.c.l.b16 %v940
  %v985 = vunpack.c.l.b16 %v941
  %v986 = vunpack.c.l.b16 %v942
  %v987 = vunpack.c.l.b16 %v943
  %v988 = vunpack.c.l.b16 %v944
  %v989 = vunpack.c.l.b16 %v945
  %v990 = vunpack.c.l.b16 %v946
  %v991 = vunpack.c.l.b16 %v947
  %v992 = vunpack.c.l.b16 %v948
  %v993 = vpack.c.b16 %v978, %v977
  %v994 = vpack.c.b16 %v980, %v979
  %v995 = vpack.c.b16 %v982, %v981
  %v996 = vpack.c.b16 %v984, %v983
  %v997 = vpack.c.b16 %v986, %v985
  %v998 = vpack.c.b16 %v988, %v987
  %v999 = vpack.c.b16 %v990, %v989
  %v1000 = vpack.c.b16 %v992, %v991
  %1009 = vmatpush.bf16.msra.mxu0 %v1000
  %1010 = vmatpush.bf16.msra.mxu0 %v999
  %1011 = vmatpush.bf16.msra.mxu0 %v998
  %1012 = vmatpush.bf16.msra.mxu0 %v997
  %1013 = vmatpush.bf16.msra.mxu0 %v996
  %1014 = vmatpush.bf16.msra.mxu0 %v995
  %1015 = vmatpush.bf16.msra.mxu0 %v994
  %1016 = vmatpush.bf16.msra.mxu0 %v993
  %1017 = vmatmul.bf16.gmra.mxu0 %v957
  %v1018 = vpop.f32.mrf.mxu0
  %v1019 = vadd.f32 %v41, %v1018
  %v1020 = vpop.f32.mrf.mxu0
  %v1021 = vadd.f32 %v46, %v1020
  %1022 = vmatmul.bf16.gmra.mxu0 %v958
  %v1023 = vpop.f32.mrf.mxu0
  %v1024 = vadd.f32 %v51, %v1023
  %v1025 = vpop.f32.mrf.mxu0
  %v1026 = vadd.f32 %v56, %v1025
  %1027 = vdwg.mxu0
  %v1028 = vld [vmem:[%s339] sm:$0xf]
  %v1029 = vld [vmem:[%s339 + $0x4] sm:$0xf]
  %v1030 = vld [vmem:[%s339 + $0x8] sm:$0xf]
  %v1031 = vld [vmem:[%s339 + $0xc] sm:$0xf]
  %s1032 = scalar_lea.vmem %s1, 448
  %v1033 = vld [vmem:[%s1032] sm:$0xf]
  %v1034 = vld [vmem:[%s1032 + $0x4] sm:$0xf]
  %v1035 = vld [vmem:[%s1032 + $0x8] sm:$0xf]
  %v1036 = vld [vmem:[%s1032 + $0xc] sm:$0xf]
  %v1037 = vld [vmem:[%s1032 + $0x10] sm:$0xf]
  %v1038 = vld [vmem:[%s1032 + $0x14] sm:$0xf]
  %v1039 = vld [vmem:[%s1032 + $0x18] sm:$0xf]
  %v1040 = vld [vmem:[%s1032 + $0x1c] sm:$0xf]
  %v1041 = vld [vmem:[%s1032 + $0x20] sm:$0xf]
  %v1042 = vld [vmem:[%s1032 + $0x24] sm:$0xf]
  %v1043 = vld [vmem:[%s1032 + $0x28] sm:$0xf]
  %v1044 = vld [vmem:[%s1032 + $0x2c] sm:$0xf]
  %v1045 = vld [vmem:[%s1032 + $0x30] sm:$0xf]
  %v1046 = vld [vmem:[%s1032 + $0x34] sm:$0xf]
  %v1047 = vld [vmem:[%s1032 + $0x38] sm:$0xf]
  %v1048 = vld [vmem:[%s1032 + $0x3c] sm:$0xf]
  %v1053 = vunpack.c.l.b16 %v1028
  %v1054 = vunpack.c.l.b16 %v1029
  %v1055 = vunpack.c.l.b16 %v1030
  %v1056 = vunpack.c.l.b16 %v1031
  %v1057 = vpack.c.b16 %v1054, %v1053
  %v1058 = vpack.c.b16 %v1056, %v1055
  %v1077 = vunpack.c.l.b16 %v1033
  %v1078 = vunpack.c.l.b16 %v1034
  %v1079 = vunpack.c.l.b16 %v1035
  %v1080 = vunpack.c.l.b16 %v1036
  %v1081 = vunpack.c.l.b16 %v1037
  %v1082 = vunpack.c.l.b16 %v1038
  %v1083 = vunpack.c.l.b16 %v1039
  %v1084 = vunpack.c.l.b16 %v1040
  %v1085 = vunpack.c.l.b16 %v1041
  %v1086 = vunpack.c.l.b16 %v1042
  %v1087 = vunpack.c.l.b16 %v1043
  %v1088 = vunpack.c.l.b16 %v1044
  %v1089 = vunpack.c.l.b16 %v1045
  %v1090 = vunpack.c.l.b16 %v1046
  %v1091 = vunpack.c.l.b16 %v1047
  %v1092 = vunpack.c.l.b16 %v1048
  %v1093 = vpack.c.b16 %v1078, %v1077
  %v1094 = vpack.c.b16 %v1080, %v1079
  %v1095 = vpack.c.b16 %v1082, %v1081
  %v1096 = vpack.c.b16 %v1084, %v1083
  %v1097 = vpack.c.b16 %v1086, %v1085
  %v1098 = vpack.c.b16 %v1088, %v1087
  %v1099 = vpack.c.b16 %v1090, %v1089
  %v1100 = vpack.c.b16 %v1092, %v1091
  %1109 = vmatpush.bf16.msra.mxu0 %v1100
  %1110 = vmatpush.bf16.msra.mxu0 %v1099
  %1111 = vmatpush.bf16.msra.mxu0 %v1098
  %1112 = vmatpush.bf16.msra.mxu0 %v1097
  %1113 = vmatpush.bf16.msra.mxu0 %v1096
  %1114 = vmatpush.bf16.msra.mxu0 %v1095
  %1115 = vmatpush.bf16.msra.mxu0 %v1094
  %1116 = vmatpush.bf16.msra.mxu0 %v1093
  %1117 = vmatmul.bf16.gmra.mxu0 %v1057
  %v1118 = vpop.f32.mrf.mxu0
  %v1119 = vadd.f32 %v41, %v1118
  %v1120 = vpop.f32.mrf.mxu0
  %v1121 = vadd.f32 %v46, %v1120
  %1122 = vmatmul.bf16.gmra.mxu0 %v1058
  %v1123 = vpop.f32.mrf.mxu0
  %v1124 = vadd.f32 %v51, %v1123
  %v1125 = vpop.f32.mrf.mxu0
  %v1126 = vadd.f32 %v56, %v1125
  %1127 = vdwg.mxu0
  %v1128 = vsel %vm440, %v819, 0.0
  %1129 = vadd.xlane.f32.xlu0 %v1128
  %v1130 = vpop.xlane.xlu0 %1129
  %v1131 = vsel %vm440, %v821, 0.0
  %1132 = vadd.xlane.f32.xlu0 %v1131
  %v1133 = vpop.xlane.xlu0 %1132
  %v1134 = vsel %vm440, %v824, 0.0
  %1135 = vadd.xlane.f32.xlu0 %v1134
  %v1136 = vpop.xlane.xlu0 %1135
  %v1137 = vsel %vm440, %v826, 0.0
  %1138 = vadd.xlane.f32.xlu0 %v1137
  %v1139 = vpop.xlane.xlu0 %1138
  %v1140 = vsel %vm440, %v919, 0.0
  %1141 = vadd.xlane.f32.xlu0 %v1140
  %v1142 = vpop.xlane.xlu0 %1141
  %v1143 = vsel %vm440, %v921, 0.0
  %1144 = vadd.xlane.f32.xlu0 %v1143
  %v1145 = vpop.xlane.xlu0 %1144
  %v1146 = vsel %vm440, %v924, 0.0
  %1147 = vadd.xlane.f32.xlu0 %v1146
  %v1148 = vpop.xlane.xlu0 %1147
  %v1149 = vsel %vm440, %v926, 0.0
  %1150 = vadd.xlane.f32.xlu0 %v1149
  %v1151 = vpop.xlane.xlu0 %1150
  %v1152 = vadd.f32 %v1130, %v1142
  %v1153 = vadd.f32 %v1133, %v1145
  %v1154 = vadd.f32 %v1136, %v1148
  %v1155 = vadd.f32 %v1139, %v1151
  %v1156 = vsel %vm440, %v1019, 0.0
  %1157 = vadd.xlane.f32.xlu0 %v1156
  %v1158 = vpop.xlane.xlu0 %1157
  %v1159 = vsel %vm440, %v1021, 0.0
  %1160 = vadd.xlane.f32.xlu0 %v1159
  %v1161 = vpop.xlane.xlu0 %1160
  %v1162 = vsel %vm440, %v1024, 0.0
  %1163 = vadd.xlane.f32.xlu0 %v1162
  %v1164 = vpop.xlane.xlu0 %1163
  %v1165 = vsel %vm440, %v1026, 0.0
  %1166 = vadd.xlane.f32.xlu0 %v1165
  %v1167 = vpop.xlane.xlu0 %1166
  %v1168 = vadd.f32 %v1152, %v1158
  %v1169 = vadd.f32 %v1153, %v1161
  %v1170 = vadd.f32 %v1154, %v1164
  %v1171 = vadd.f32 %v1155, %v1167
  %v1172 = vsel %vm440, %v1119, 0.0
  %1173 = vadd.xlane.f32.xlu0 %v1172
  %v1174 = vpop.xlane.xlu0 %1173
  %v1175 = vsel %vm440, %v1121, 0.0
  %1176 = vadd.xlane.f32.xlu0 %v1175
  %v1177 = vpop.xlane.xlu0 %1176
  %v1178 = vsel %vm440, %v1124, 0.0
  %1179 = vadd.xlane.f32.xlu0 %v1178
  %v1180 = vpop.xlane.xlu0 %1179
  %v1181 = vsel %vm440, %v1126, 0.0
  %1182 = vadd.xlane.f32.xlu0 %v1181
  %v1183 = vpop.xlane.xlu0 %1182
  %v1184 = vadd.f32 %v1168, %v1174
  %v1185 = vadd.f32 %v1169, %v1177
  %v1186 = vadd.f32 %v1170, %v1180
  %v1187 = vadd.f32 %v1171, %v1183
  %v1188 = vmul.f32 %v1184, 0.015625
  %v1189 = vmul.f32 %v1185, 0.015625
  %v1190 = vmul.f32 %v1186, 0.015625
  %v1191 = vmul.f32 %v1187, 0.015625
  %v1192 = vsub.f32 %v819, %v1188
  %v1193 = vsub.f32 %v821, %v1189
  %v1194 = vsub.f32 %v824, %v1190
  %v1195 = vsub.f32 %v826, %v1191
  %v1196 = vmul.f32 %v1192, %v1192
  %v1197 = vmul.f32 %v1193, %v1193
  %v1198 = vmul.f32 %v1194, %v1194
  %v1199 = vmul.f32 %v1195, %v1195
  %v1200 = vsel %vm440, %v1196, 0.0
  %1201 = vadd.xlane.f32.xlu0 %v1200
  %v1202 = vpop.xlane.xlu0 %1201
  %v1203 = vsel %vm440, %v1197, 0.0
  %1204 = vadd.xlane.f32.xlu0 %v1203
  %v1205 = vpop.xlane.xlu0 %1204
  %v1206 = vsel %vm440, %v1198, 0.0
  %1207 = vadd.xlane.f32.xlu0 %v1206
  %v1208 = vpop.xlane.xlu0 %1207
  %v1209 = vsel %vm440, %v1199, 0.0
  %1210 = vadd.xlane.f32.xlu0 %v1209
  %v1211 = vpop.xlane.xlu0 %1210
  %v1212 = vsub.f32 %v919, %v1188
  %v1213 = vsub.f32 %v921, %v1189
  %v1214 = vsub.f32 %v924, %v1190
  %v1215 = vsub.f32 %v926, %v1191
  %v1216 = vmul.f32 %v1212, %v1212
  %v1217 = vmul.f32 %v1213, %v1213
  %v1218 = vmul.f32 %v1214, %v1214
  %v1219 = vmul.f32 %v1215, %v1215
  %v1220 = vsel %vm440, %v1216, 0.0
  %1221 = vadd.xlane.f32.xlu0 %v1220
  %v1222 = vpop.xlane.xlu0 %1221
  %v1223 = vsel %vm440, %v1217, 0.0
  %1224 = vadd.xlane.f32.xlu0 %v1223
  %v1225 = vpop.xlane.xlu0 %1224
  %v1226 = vsel %vm440, %v1218, 0.0
  %1227 = vadd.xlane.f32.xlu0 %v1226
  %v1228 = vpop.xlane.xlu0 %1227
  %v1229 = vsel %vm440, %v1219, 0.0
  %1230 = vadd.xlane.f32.xlu0 %v1229
  %v1231 = vpop.xlane.xlu0 %1230
  %v1232 = vadd.f32 %v1202, %v1222
  %v1233 = vadd.f32 %v1205, %v1225
  %v1234 = vadd.f32 %v1208, %v1228
  %v1235 = vadd.f32 %v1211, %v1231
  %v1236 = vsub.f32 %v1019, %v1188
  %v1237 = vsub.f32 %v1021, %v1189
  %v1238 = vsub.f32 %v1024, %v1190
  %v1239 = vsub.f32 %v1026, %v1191
  %v1240 = vmul.f32 %v1236, %v1236
  %v1241 = vmul.f32 %v1237, %v1237
  %v1242 = vmul.f32 %v1238, %v1238
  %v1243 = vmul.f32 %v1239, %v1239
  %v1244 = vsel %vm440, %v1240, 0.0
  %1245 = vadd.xlane.f32.xlu0 %v1244
  %v1246 = vpop.xlane.xlu0 %1245
  %v1247 = vsel %vm440, %v1241, 0.0
  %1248 = vadd.xlane.f32.xlu0 %v1247
  %v1249 = vpop.xlane.xlu0 %1248
  %v1250 = vsel %vm440, %v1242, 0.0
  %1251 = vadd.xlane.f32.xlu0 %v1250
  %v1252 = vpop.xlane.xlu0 %1251
  %v1253 = vsel %vm440, %v1243, 0.0
  %1254 = vadd.xlane.f32.xlu0 %v1253
  %v1255 = vpop.xlane.xlu0 %1254
  %v1256 = vadd.f32 %v1232, %v1246
  %v1257 = vadd.f32 %v1233, %v1249
  %v1258 = vadd.f32 %v1234, %v1252
  %v1259 = vadd.f32 %v1235, %v1255
  %v1260 = vsub.f32 %v1119, %v1188
  %v1261 = vsub.f32 %v1121, %v1189
  %v1262 = vsub.f32 %v1124, %v1190
  %v1263 = vsub.f32 %v1126, %v1191
  %v1264 = vmul.f32 %v1260, %v1260
  %v1265 = vmul.f32 %v1261, %v1261
  %v1266 = vmul.f32 %v1262, %v1262
  %v1267 = vmul.f32 %v1263, %v1263
  %v1268 = vsel %vm440, %v1264, 0.0
  %1269 = vadd.xlane.f32.xlu0 %v1268
  %v1270 = vpop.xlane.xlu0 %1269
  %v1271 = vsel %vm440, %v1265, 0.0
  %1272 = vadd.xlane.f32.xlu0 %v1271
  %v1273 = vpop.xlane.xlu0 %1272
  %v1274 = vsel %vm440, %v1266, 0.0
  %1275 = vadd.xlane.f32.xlu0 %v1274
  %v1276 = vpop.xlane.xlu0 %1275
  %v1277 = vsel %vm440, %v1267, 0.0
  %1278 = vadd.xlane.f32.xlu0 %v1277
  %v1279 = vpop.xlane.xlu0 %1278
  %v1280 = vadd.f32 %v1256, %v1270
  %v1281 = vadd.f32 %v1257, %v1273
  %v1282 = vadd.f32 %v1258, %v1276
  %v1283 = vadd.f32 %v1259, %v1279
  %v1284 = vmul.f32 %v1280, 0.015625
  %v1285 = vmul.f32 %v1281, 0.015625
  %v1286 = vmul.f32 %v1282, 0.015625
  %v1287 = vmul.f32 %v1283, 0.015625
  %v1288 = vadd.f32 %v1284, 1e-08
  %v1289 = vadd.f32 %v1285, 1e-08
  %v1290 = vadd.f32 %v1286, 1e-08
  %v1291 = vadd.f32 %v1287, 1e-08
  %v1292 = vrsqrt.pop %v1288
  %v1293 = vmul.f32 %v1292, %v1288
  %v1294 = vmul.f32 %v1293, %v1292
  %v1295 = vmul.f32 0.5, %v1294
  %v1296 = vsub.f32 1.5, %v1295
  %v1297 = vmul.f32 %v1292, %v1296
  %vm1298 = vweird.f32 %v1288
  %vm1299 = vweird.f32 %v1292
  %vm1300 = vmor %vm1298, %vm1299
  %v1301 = vsel %vm1300, %v1292, %v1297
  %v1302 = vrsqrt.pop %v1289
  %v1303 = vmul.f32 %v1302, %v1289
  %v1304 = vmul.f32 %v1303, %v1302
  %v1305 = vmul.f32 0.5, %v1304
  %v1306 = vsub.f32 1.5, %v1305
  %v1307 = vmul.f32 %v1302, %v1306
  %vm1308 = vweird.f32 %v1289
  %vm1309 = vweird.f32 %v1302
  %vm1310 = vmor %vm1308, %vm1309
  %v1311 = vsel %vm1310, %v1302, %v1307
  %v1312 = vrsqrt.pop %v1290
  %v1313 = vmul.f32 %v1312, %v1290
  %v1314 = vmul.f32 %v1313, %v1312
  %v1315 = vmul.f32 0.5, %v1314
  %v1316 = vsub.f32 1.5, %v1315
  %v1317 = vmul.f32 %v1312, %v1316
  %vm1318 = vweird.f32 %v1290
  %vm1319 = vweird.f32 %v1312
  %vm1320 = vmor %vm1318, %vm1319
  %v1321 = vsel %vm1320, %v1312, %v1317
  %v1322 = vrsqrt.pop %v1291
  %v1323 = vmul.f32 %v1322, %v1291
  %v1324 = vmul.f32 %v1323, %v1322
  %v1325 = vmul.f32 0.5, %v1324
  %v1326 = vsub.f32 1.5, %v1325
  %v1327 = vmul.f32 %v1322, %v1326
  %vm1328 = vweird.f32 %v1291
  %vm1329 = vweird.f32 %v1322
  %vm1330 = vmor %vm1328, %vm1329
  %v1331 = vsel %vm1330, %v1322, %v1327
  %v1332 = vmul.f32 %v1192, %v1301
  %v1333 = vmul.f32 %v1193, %v1311
  %v1334 = vmul.f32 %v1194, %v1321
  %v1335 = vmul.f32 %v1195, %v1331
  %vm1336 = vcmp.ge.f32.partialorder %v1332, 0.0
  %vm1337 = vcmp.ge.f32.partialorder %v1333, 0.0
  %vm1338 = vcmp.ge.f32.partialorder %v1334, 0.0
  %vm1339 = vcmp.ge.f32.partialorder %v1335, 0.0
  %v1340 = vmul.f32 %v1332, 0.2
  %v1341 = vmul.f32 %v1333, 0.2
  %v1342 = vmul.f32 %v1334, 0.2
  %v1343 = vmul.f32 %v1335, 0.2
  %v1344 = vsel %vm1336, %v1332, %v1340
  %v1345 = vsel %vm1337, %v1333, %v1341
  %v1346 = vsel %vm1338, %v1334, %v1342
  %v1347 = vsel %vm1339, %v1335, %v1343
  %s1348 = scalar_lea.vmem %s3, 128
  %1349 = vst.msk [vmem:[%s1348] sm:$0xff] %vm440, %v1344
  %1350 = vst.msk [vmem:[%s1348 + $0x8] sm:$0xff] %vm440, %v1345
  %1351 = vst.msk [vmem:[%s1348 + $0x10] sm:$0xff] %vm440, %v1346
  %1352 = vst.msk [vmem:[%s1348 + $0x18] sm:$0xff] %vm440, %v1347
  %v1353 = vmul.f32 %v1212, %v1301
  %v1354 = vmul.f32 %v1213, %v1311
  %v1355 = vmul.f32 %v1214, %v1321
  %v1356 = vmul.f32 %v1215, %v1331
  %vm1357 = vcmp.ge.f32.partialorder %v1353, 0.0
  %vm1358 = vcmp.ge.f32.partialorder %v1354, 0.0
  %vm1359 = vcmp.ge.f32.partialorder %v1355, 0.0
  %vm1360 = vcmp.ge.f32.partialorder %v1356, 0.0
  %v1361 = vmul.f32 %v1353, 0.2
  %v1362 = vmul.f32 %v1354, 0.2
  %v1363 = vmul.f32 %v1355, 0.2
  %v1364 = vmul.f32 %v1356, 0.2
  %v1365 = vsel %vm1357, %v1353, %v1361
  %v1366 = vsel %vm1358, %v1354, %v1362
  %v1367 = vsel %vm1359, %v1355, %v1363
  %v1368 = vsel %vm1360, %v1356, %v1364
  %s1369 = scalar_lea.vmem %s3, 160
  %1370 = vst.msk [vmem:[%s1369] sm:$0xff] %vm440, %v1365
  %1371 = vst.msk [vmem:[%s1369 + $0x8] sm:$0xff] %vm440, %v1366
  %1372 = vst.msk [vmem:[%s1369 + $0x10] sm:$0xff] %vm440, %v1367
  %1373 = vst.msk [vmem:[%s1369 + $0x18] sm:$0xff] %vm440, %v1368
  %v1374 = vmul.f32 %v1236, %v1301
  %v1375 = vmul.f32 %v1237, %v1311
  %v1376 = vmul.f32 %v1238, %v1321
  %v1377 = vmul.f32 %v1239, %v1331
  %vm1378 = vcmp.ge.f32.partialorder %v1374, 0.0
  %vm1379 = vcmp.ge.f32.partialorder %v1375, 0.0
  %vm1380 = vcmp.ge.f32.partialorder %v1376, 0.0
  %vm1381 = vcmp.ge.f32.partialorder %v1377, 0.0
  %v1382 = vmul.f32 %v1374, 0.2
  %v1383 = vmul.f32 %v1375, 0.2
  %v1384 = vmul.f32 %v1376, 0.2
  %v1385 = vmul.f32 %v1377, 0.2
  %v1386 = vsel %vm1378, %v1374, %v1382
  %v1387 = vsel %vm1379, %v1375, %v1383
  %v1388 = vsel %vm1380, %v1376, %v1384
  %v1389 = vsel %vm1381, %v1377, %v1385
  %s1390 = scalar_lea.vmem %s3, 192
  %1391 = vst.msk [vmem:[%s1390] sm:$0xff] %vm440, %v1386
  %1392 = vst.msk [vmem:[%s1390 + $0x8] sm:$0xff] %vm440, %v1387
  %1393 = vst.msk [vmem:[%s1390 + $0x10] sm:$0xff] %vm440, %v1388
  %1394 = vst.msk [vmem:[%s1390 + $0x18] sm:$0xff] %vm440, %v1389
  %v1395 = vmul.f32 %v1260, %v1301
  %v1396 = vmul.f32 %v1261, %v1311
  %v1397 = vmul.f32 %v1262, %v1321
  %v1398 = vmul.f32 %v1263, %v1331
  %vm1399 = vcmp.ge.f32.partialorder %v1395, 0.0
  %vm1400 = vcmp.ge.f32.partialorder %v1396, 0.0
  %vm1401 = vcmp.ge.f32.partialorder %v1397, 0.0
  %vm1402 = vcmp.ge.f32.partialorder %v1398, 0.0
  %v1403 = vmul.f32 %v1395, 0.2
  %v1404 = vmul.f32 %v1396, 0.2
  %v1405 = vmul.f32 %v1397, 0.2
  %v1406 = vmul.f32 %v1398, 0.2
  %v1407 = vsel %vm1399, %v1395, %v1403
  %v1408 = vsel %vm1400, %v1396, %v1404
  %v1409 = vsel %vm1401, %v1397, %v1405
  %v1410 = vsel %vm1402, %v1398, %v1406
  %s1411 = scalar_lea.vmem %s3, 224
  %1412 = vst.msk [vmem:[%s1411] sm:$0xff] %vm440, %v1407
  %1413 = vst.msk [vmem:[%s1411 + $0x8] sm:$0xff] %vm440, %v1408
  %1414 = vst.msk [vmem:[%s1411 + $0x10] sm:$0xff] %vm440, %v1409
  %1415 = vst.msk [vmem:[%s1411 + $0x18] sm:$0xff] %vm440, %v1410
  // Predicated region
  $region14: #{_lambda_.5} parent=0 // pred_check
    _
  $region15: #{_lambda_.5} parent=0 // pred_check_branch
    %1417 = sbr.rel (0) target = $region17
  $region16: #{_lambda_.5} parent=0 // pred_region
    _
  $region17: #{_lambda_.5} parent=0 // pred_fallthru
    _
  // Predicated region
  $region18: #{_lambda_.5} parent=0 // pred_check
    _
  $region19: #{_lambda_.5} parent=0 // pred_check_branch
    %1419 = sbr.rel (0) target = $region21
  $region20: #{_lambda_.5} parent=0 // pred_region
    _
  $region21: #{_lambda_.5} parent=0 // pred_fallthru
    _

// kernel: _lambda_.6
$region0: #{_lambda_.6}
  #allocation0 [shape = 'u32[]', space=smem, size = 0x4, offset = 0x4, fixed_abs, tag = 'smem constant byte address 0x4 - core index']
  #allocation1 [shape = 'u32[72,128]{1,0:T(1,128)}', space=vmem, size = 0x9000, scoped, tag = 'internal scratch']
  %s0 = inlined_call_operand.vmem [shape: bf16[4,16,128], index: 0, kind: input, shape index: {}]
  %s1 = inlined_call_operand.vmem [shape: bf16[4,2,128,64], index: 1, kind: input, shape index: {}]
  %s2 = inlined_call_operand.vmem [shape: f32[16,1], index: 2, kind: input, shape index: {}]
  %s3 = inlined_call_operand.vmem [shape: f32[2,4,16,64], index: 3, kind: output, shape index: {}]
  %s4 = sld [smem:[#allocation0]]
  $region22: #{_lambda_.6} parent=0
    _
  %s6 = ssub.s32 1, %s4
  %s7 = scalar_select 0, %s6, %s4
  // Predicated region
  $region2: #{_lambda_.6} parent=0 // pred_check
    _
  $region3: #{_lambda_.6} parent=0 // pred_check_branch
    %9 = sbr.rel (0) target = $region5
  $region4: #{_lambda_.6} parent=0 // pred_region
    _
  $region5: #{_lambda_.6} parent=0 // pred_fallthru
    _
  // Predicated region
  $region6: #{_lambda_.6} parent=0 // pred_check
    _
  $region7: #{_lambda_.6} parent=0 // pred_check_branch
    %11 = sbr.rel (0) target = $region9
  $region8: #{_lambda_.6} parent=0 // pred_region
    _
  $region9: #{_lambda_.6} parent=0 // pred_fallthru
    _
  // Predicated region
  $region10: #{_lambda_.6} parent=0 // pred_check
    _
  $region11: #{_lambda_.6} parent=0 // pred_check_branch
    %13 = sbr.rel (0) target = $region13
  $region12: #{_lambda_.6} parent=0 // pred_region
    _
  $region13: #{_lambda_.6} parent=0 // pred_fallthru
    _
  %v14 = vld [vmem:[%s2] sm:$0xff]
  %v15 = vld [vmem:[%s2 + $0x8] sm:$0xff]
  %v16 = vld [vmem:[%s0] sm:$0xf]
  %v17 = vld [vmem:[%s0 + $0x4] sm:$0xf]
  %v18 = vld [vmem:[%s1] sm:$0xf]
  %v19 = vld [vmem:[%s1 + $0x4] sm:$0xf]
  %v20 = vld [vmem:[%s1 + $0x8] sm:$0xf]
  %v21 = vld [vmem:[%s1 + $0xc] sm:$0xf]
  %v22 = vld [vmem:[%s1 + $0x10] sm:$0xf]
  %v23 = vld [vmem:[%s1 + $0x14] sm:$0xf]
  %v24 = vld [vmem:[%s1 + $0x18] sm:$0xf]
  %v25 = vld [vmem:[%s1 + $0x1c] sm:$0xf]
  %v26 = vld [vmem:[%s1 + $0x20] sm:$0xf]
  %v27 = vld [vmem:[%s1 + $0x24] sm:$0xf]
  %v28 = vld [vmem:[%s1 + $0x28] sm:$0xf]
  %v29 = vld [vmem:[%s1 + $0x2c] sm:$0xf]
  %v30 = vld [vmem:[%s1 + $0x30] sm:$0xf]
  %v31 = vld [vmem:[%s1 + $0x34] sm:$0xf]
  %v32 = vld [vmem:[%s1 + $0x38] sm:$0xf]
  %v33 = vld [vmem:[%s1 + $0x3c] sm:$0xf]
  %35 = vset.pattern.permute.xlu0 0
  %36 = vperm.xlu0 %35, %v14
  %v37 = vpop.permute.xlu0 %36
  %40 = vset.pattern.permute.xlu0 0
  %41 = vperm.xlu0 %40, %v15
  %v42 = vpop.permute.xlu0 %41
  %v46 = vunpack.c.l.b16 %v16
  %v47 = vunpack.c.l.b16 %v17
  %v48 = vpack.c.b16 %v47, %v46
  %v66 = vunpack.c.l.b16 %v18
  %v67 = vunpack.c.l.b16 %v19
  %v68 = vunpack.c.l.b16 %v20
  %v69 = vunpack.c.l.b16 %v21
  %v70 = vunpack.c.l.b16 %v22
  %v71 = vunpack.c.l.b16 %v23
  %v72 = vunpack.c.l.b16 %v24
  %v73 = vunpack.c.l.b16 %v25
  %v74 = vunpack.c.l.b16 %v26
  %v75 = vunpack.c.l.b16 %v27
  %v76 = vunpack.c.l.b16 %v28
  %v77 = vunpack.c.l.b16 %v29
  %v78 = vunpack.c.l.b16 %v30
  %v79 = vunpack.c.l.b16 %v31
  %v80 = vunpack.c.l.b16 %v32
  %v81 = vunpack.c.l.b16 %v33
  %v82 = vpack.c.b16 %v67, %v66
  %v83 = vpack.c.b16 %v69, %v68
  %v84 = vpack.c.b16 %v71, %v70
  %v85 = vpack.c.b16 %v73, %v72
  %v86 = vpack.c.b16 %v75, %v74
  %v87 = vpack.c.b16 %v77, %v76
  %v88 = vpack.c.b16 %v79, %v78
  %v89 = vpack.c.b16 %v81, %v80
  %98 = vmatpush.bf16.msra.mxu0 %v89
  %99 = vmatpush.bf16.msra.mxu0 %v88
  %100 = vmatpush.bf16.msra.mxu0 %v87
  %101 = vmatpush.bf16.msra.mxu0 %v86
  %102 = vmatpush.bf16.msra.mxu0 %v85
  %103 = vmatpush.bf16.msra.mxu0 %v84
  %104 = vmatpush.bf16.msra.mxu0 %v83
  %105 = vmatpush.bf16.msra.mxu0 %v82
  %106 = vmatmul.bf16.gmra.mxu0 %v48
  %v107 = vpop.f32.mrf.mxu0
  %v108 = vadd.f32 %v37, %v107
  %v109 = vpop.f32.mrf.mxu0
  %v110 = vadd.f32 %v42, %v109
  %111 = vdwg.mxu0
  %s112 = scalar_lea.vmem %s0, 8
  %v113 = vld [vmem:[%s112] sm:$0xf]
  %v114 = vld [vmem:[%s112 + $0x4] sm:$0xf]
  %s115 = scalar_lea.vmem %s1, 128
  %v116 = vld [vmem:[%s115] sm:$0xf]
  %v117 = vld [vmem:[%s115 + $0x4] sm:$0xf]
  %v118 = vld [vmem:[%s115 + $0x8] sm:$0xf]
  %v119 = vld [vmem:[%s115 + $0xc] sm:$0xf]
  %v120 = vld [vmem:[%s115 + $0x10] sm:$0xf]
  %v121 = vld [vmem:[%s115 + $0x14] sm:$0xf]
  %v122 = vld [vmem:[%s115 + $0x18] sm:$0xf]
  %v123 = vld [vmem:[%s115 + $0x1c] sm:$0xf]
  %v124 = vld [vmem:[%s115 + $0x20] sm:$0xf]
  %v125 = vld [vmem:[%s115 + $0x24] sm:$0xf]
  %v126 = vld [vmem:[%s115 + $0x28] sm:$0xf]
  %v127 = vld [vmem:[%s115 + $0x2c] sm:$0xf]
  %v128 = vld [vmem:[%s115 + $0x30] sm:$0xf]
  %v129 = vld [vmem:[%s115 + $0x34] sm:$0xf]
  %v130 = vld [vmem:[%s115 + $0x38] sm:$0xf]
  %v131 = vld [vmem:[%s115 + $0x3c] sm:$0xf]
  %v134 = vunpack.c.l.b16 %v113
  %v135 = vunpack.c.l.b16 %v114
  %v136 = vpack.c.b16 %v135, %v134
  %v154 = vunpack.c.l.b16 %v116
  %v155 = vunpack.c.l.b16 %v117
  %v156 = vunpack.c.l.b16 %v118
  %v157 = vunpack.c.l.b16 %v119
  %v158 = vunpack.c.l.b16 %v120
  %v159 = vunpack.c.l.b16 %v121
  %v160 = vunpack.c.l.b16 %v122
  %v161 = vunpack.c.l.b16 %v123
  %v162 = vunpack.c.l.b16 %v124
  %v163 = vunpack.c.l.b16 %v125
  %v164 = vunpack.c.l.b16 %v126
  %v165 = vunpack.c.l.b16 %v127
  %v166 = vunpack.c.l.b16 %v128
  %v167 = vunpack.c.l.b16 %v129
  %v168 = vunpack.c.l.b16 %v130
  %v169 = vunpack.c.l.b16 %v131
  %v170 = vpack.c.b16 %v155, %v154
  %v171 = vpack.c.b16 %v157, %v156
  %v172 = vpack.c.b16 %v159, %v158
  %v173 = vpack.c.b16 %v161, %v160
  %v174 = vpack.c.b16 %v163, %v162
  %v175 = vpack.c.b16 %v165, %v164
  %v176 = vpack.c.b16 %v167, %v166
  %v177 = vpack.c.b16 %v169, %v168
  %186 = vmatpush.bf16.msra.mxu0 %v177
  %187 = vmatpush.bf16.msra.mxu0 %v176
  %188 = vmatpush.bf16.msra.mxu0 %v175
  %189 = vmatpush.bf16.msra.mxu0 %v174
  %190 = vmatpush.bf16.msra.mxu0 %v173
  %191 = vmatpush.bf16.msra.mxu0 %v172
  %192 = vmatpush.bf16.msra.mxu0 %v171
  %193 = vmatpush.bf16.msra.mxu0 %v170
  %194 = vmatmul.bf16.gmra.mxu0 %v136
  %v195 = vpop.f32.mrf.mxu0
  %v196 = vadd.f32 %v37, %v195
  %v197 = vpop.f32.mrf.mxu0
  %v198 = vadd.f32 %v42, %v197
  %199 = vdwg.mxu0
  %s200 = scalar_lea.vmem %s0, 16
  %v201 = vld [vmem:[%s200] sm:$0xf]
  %v202 = vld [vmem:[%s200 + $0x4] sm:$0xf]
  %s203 = scalar_lea.vmem %s1, 256
  %v204 = vld [vmem:[%s203] sm:$0xf]
  %v205 = vld [vmem:[%s203 + $0x4] sm:$0xf]
  %v206 = vld [vmem:[%s203 + $0x8] sm:$0xf]
  %v207 = vld [vmem:[%s203 + $0xc] sm:$0xf]
  %v208 = vld [vmem:[%s203 + $0x10] sm:$0xf]
  %v209 = vld [vmem:[%s203 + $0x14] sm:$0xf]
  %v210 = vld [vmem:[%s203 + $0x18] sm:$0xf]
  %v211 = vld [vmem:[%s203 + $0x1c] sm:$0xf]
  %v212 = vld [vmem:[%s203 + $0x20] sm:$0xf]
  %v213 = vld [vmem:[%s203 + $0x24] sm:$0xf]
  %v214 = vld [vmem:[%s203 + $0x28] sm:$0xf]
  %v215 = vld [vmem:[%s203 + $0x2c] sm:$0xf]
  %v216 = vld [vmem:[%s203 + $0x30] sm:$0xf]
  %v217 = vld [vmem:[%s203 + $0x34] sm:$0xf]
  %v218 = vld [vmem:[%s203 + $0x38] sm:$0xf]
  %v219 = vld [vmem:[%s203 + $0x3c] sm:$0xf]
  %v222 = vunpack.c.l.b16 %v201
  %v223 = vunpack.c.l.b16 %v202
  %v224 = vpack.c.b16 %v223, %v222
  %v242 = vunpack.c.l.b16 %v204
  %v243 = vunpack.c.l.b16 %v205
  %v244 = vunpack.c.l.b16 %v206
  %v245 = vunpack.c.l.b16 %v207
  %v246 = vunpack.c.l.b16 %v208
  %v247 = vunpack.c.l.b16 %v209
  %v248 = vunpack.c.l.b16 %v210
  %v249 = vunpack.c.l.b16 %v211
  %v250 = vunpack.c.l.b16 %v212
  %v251 = vunpack.c.l.b16 %v213
  %v252 = vunpack.c.l.b16 %v214
  %v253 = vunpack.c.l.b16 %v215
  %v254 = vunpack.c.l.b16 %v216
  %v255 = vunpack.c.l.b16 %v217
  %v256 = vunpack.c.l.b16 %v218
  %v257 = vunpack.c.l.b16 %v219
  %v258 = vpack.c.b16 %v243, %v242
  %v259 = vpack.c.b16 %v245, %v244
  %v260 = vpack.c.b16 %v247, %v246
  %v261 = vpack.c.b16 %v249, %v248
  %v262 = vpack.c.b16 %v251, %v250
  %v263 = vpack.c.b16 %v253, %v252
  %v264 = vpack.c.b16 %v255, %v254
  %v265 = vpack.c.b16 %v257, %v256
  %274 = vmatpush.bf16.msra.mxu0 %v265
  %275 = vmatpush.bf16.msra.mxu0 %v264
  %276 = vmatpush.bf16.msra.mxu0 %v263
  %277 = vmatpush.bf16.msra.mxu0 %v262
  %278 = vmatpush.bf16.msra.mxu0 %v261
  %279 = vmatpush.bf16.msra.mxu0 %v260
  %280 = vmatpush.bf16.msra.mxu0 %v259
  %281 = vmatpush.bf16.msra.mxu0 %v258
  %282 = vmatmul.bf16.gmra.mxu0 %v224
  %v283 = vpop.f32.mrf.mxu0
  %v284 = vadd.f32 %v37, %v283
  %v285 = vpop.f32.mrf.mxu0
  %v286 = vadd.f32 %v42, %v285
  %287 = vdwg.mxu0
  %s288 = scalar_lea.vmem %s0, 24
  %v289 = vld [vmem:[%s288] sm:$0xf]
  %v290 = vld [vmem:[%s288 + $0x4] sm:$0xf]
  %s291 = scalar_lea.vmem %s1, 384
  %v292 = vld [vmem:[%s291] sm:$0xf]
  %v293 = vld [vmem:[%s291 + $0x4] sm:$0xf]
  %v294 = vld [vmem:[%s291 + $0x8] sm:$0xf]
  %v295 = vld [vmem:[%s291 + $0xc] sm:$0xf]
  %v296 = vld [vmem:[%s291 + $0x10] sm:$0xf]
  %v297 = vld [vmem:[%s291 + $0x14] sm:$0xf]
  %v298 = vld [vmem:[%s291 + $0x18] sm:$0xf]
  %v299 = vld [vmem:[%s291 + $0x1c] sm:$0xf]
  %v300 = vld [vmem:[%s291 + $0x20] sm:$0xf]
  %v301 = vld [vmem:[%s291 + $0x24] sm:$0xf]
  %v302 = vld [vmem:[%s291 + $0x28] sm:$0xf]
  %v303 = vld [vmem:[%s291 + $0x2c] sm:$0xf]
  %v304 = vld [vmem:[%s291 + $0x30] sm:$0xf]
  %v305 = vld [vmem:[%s291 + $0x34] sm:$0xf]
  %v306 = vld [vmem:[%s291 + $0x38] sm:$0xf]
  %v307 = vld [vmem:[%s291 + $0x3c] sm:$0xf]
  %v310 = vunpack.c.l.b16 %v289
  %v311 = vunpack.c.l.b16 %v290
  %v312 = vpack.c.b16 %v311, %v310
  %v330 = vunpack.c.l.b16 %v292
  %v331 = vunpack.c.l.b16 %v293
  %v332 = vunpack.c.l.b16 %v294
  %v333 = vunpack.c.l.b16 %v295
  %v334 = vunpack.c.l.b16 %v296
  %v335 = vunpack.c.l.b16 %v297
  %v336 = vunpack.c.l.b16 %v298
  %v337 = vunpack.c.l.b16 %v299
  %v338 = vunpack.c.l.b16 %v300
  %v339 = vunpack.c.l.b16 %v301
  %v340 = vunpack.c.l.b16 %v302
  %v341 = vunpack.c.l.b16 %v303
  %v342 = vunpack.c.l.b16 %v304
  %v343 = vunpack.c.l.b16 %v305
  %v344 = vunpack.c.l.b16 %v306
  %v345 = vunpack.c.l.b16 %v307
  %v346 = vpack.c.b16 %v331, %v330
  %v347 = vpack.c.b16 %v333, %v332
  %v348 = vpack.c.b16 %v335, %v334
  %v349 = vpack.c.b16 %v337, %v336
  %v350 = vpack.c.b16 %v339, %v338
  %v351 = vpack.c.b16 %v341, %v340
  %v352 = vpack.c.b16 %v343, %v342
  %v353 = vpack.c.b16 %v345, %v344
  %362 = vmatpush.bf16.msra.mxu0 %v353
  %363 = vmatpush.bf16.msra.mxu0 %v352
  %364 = vmatpush.bf16.msra.mxu0 %v351
  %365 = vmatpush.bf16.msra.mxu0 %v350
  %366 = vmatpush.bf16.msra.mxu0 %v349
  %367 = vmatpush.bf16.msra.mxu0 %v348
  %368 = vmatpush.bf16.msra.mxu0 %v347
  %369 = vmatpush.bf16.msra.mxu0 %v346
  %370 = vmatmul.bf16.gmra.mxu0 %v312
  %v371 = vpop.f32.mrf.mxu0
  %v372 = vadd.f32 %v37, %v371
  %v373 = vpop.f32.mrf.mxu0
  %v374 = vadd.f32 %v42, %v373
  %375 = vdwg.mxu0
  %vm376 = vcmask 523264
  %v377 = vsel %vm376, %v108, 0.0
  %378 = vadd.xlane.f32.xlu0 %v377
  %v379 = vpop.xlane.xlu0 %378
  %v380 = vsel %vm376, %v110, 0.0
  %381 = vadd.xlane.f32.xlu0 %v380
  %v382 = vpop.xlane.xlu0 %381
  %v383 = vsel %vm376, %v196, 0.0
  %384 = vadd.xlane.f32.xlu0 %v383
  %v385 = vpop.xlane.xlu0 %384
  %v386 = vsel %vm376, %v198, 0.0
  %387 = vadd.xlane.f32.xlu0 %v386
  %v388 = vpop.xlane.xlu0 %387
  %v389 = vadd.f32 %v379, %v385
  %v390 = vadd.f32 %v382, %v388
  %v391 = vsel %vm376, %v284, 0.0
  %392 = vadd.xlane.f32.xlu0 %v391
  %v393 = vpop.xlane.xlu0 %392
  %v394 = vsel %vm376, %v286, 0.0
  %395 = vadd.xlane.f32.xlu0 %v394
  %v396 = vpop.xlane.xlu0 %395
  %v397 = vadd.f32 %v389, %v393
  %v398 = vadd.f32 %v390, %v396
  %v399 = vsel %vm376, %v372, 0.0
  %400 = vadd.xlane.f32.xlu0 %v399
  %v401 = vpop.xlane.xlu0 %400
  %v402 = vsel %vm376, %v374, 0.0
  %403 = vadd.xlane.f32.xlu0 %v402
  %v404 = vpop.xlane.xlu0 %403
  %v405 = vadd.f32 %v397, %v401
  %v406 = vadd.f32 %v398, %v404
  %v407 = vmul.f32 %v405, 0.00390625
  %v408 = vmul.f32 %v406, 0.00390625
  %v409 = vsub.f32 %v108, %v407
  %v410 = vsub.f32 %v110, %v408
  %v411 = vmul.f32 %v409, %v409
  %v412 = vmul.f32 %v410, %v410
  %v413 = vsel %vm376, %v411, 0.0
  %414 = vadd.xlane.f32.xlu0 %v413
  %v415 = vpop.xlane.xlu0 %414
  %v416 = vsel %vm376, %v412, 0.0
  %417 = vadd.xlane.f32.xlu0 %v416
  %v418 = vpop.xlane.xlu0 %417
  %v419 = vsub.f32 %v196, %v407
  %v420 = vsub.f32 %v198, %v408
  %v421 = vmul.f32 %v419, %v419
  %v422 = vmul.f32 %v420, %v420
  %v423 = vsel %vm376, %v421, 0.0
  %424 = vadd.xlane.f32.xlu0 %v423
  %v425 = vpop.xlane.xlu0 %424
  %v426 = vsel %vm376, %v422, 0.0
  %427 = vadd.xlane.f32.xlu0 %v426
  %v428 = vpop.xlane.xlu0 %427
  %v429 = vadd.f32 %v415, %v425
  %v430 = vadd.f32 %v418, %v428
  %v431 = vsub.f32 %v284, %v407
  %v432 = vsub.f32 %v286, %v408
  %v433 = vmul.f32 %v431, %v431
  %v434 = vmul.f32 %v432, %v432
  %v435 = vsel %vm376, %v433, 0.0
  %436 = vadd.xlane.f32.xlu0 %v435
  %v437 = vpop.xlane.xlu0 %436
  %v438 = vsel %vm376, %v434, 0.0
  %439 = vadd.xlane.f32.xlu0 %v438
  %v440 = vpop.xlane.xlu0 %439
  %v441 = vadd.f32 %v429, %v437
  %v442 = vadd.f32 %v430, %v440
  %v443 = vsub.f32 %v372, %v407
  %v444 = vsub.f32 %v374, %v408
  %v445 = vmul.f32 %v443, %v443
  %v446 = vmul.f32 %v444, %v444
  %v447 = vsel %vm376, %v445, 0.0
  %448 = vadd.xlane.f32.xlu0 %v447
  %v449 = vpop.xlane.xlu0 %448
  %v450 = vsel %vm376, %v446, 0.0
  %451 = vadd.xlane.f32.xlu0 %v450
  %v452 = vpop.xlane.xlu0 %451
  %v453 = vadd.f32 %v441, %v449
  %v454 = vadd.f32 %v442, %v452
  %v455 = vmul.f32 %v453, 0.00390625
  %v456 = vmul.f32 %v454, 0.00390625
  %v457 = vadd.f32 %v455, 1e-08
  %v458 = vadd.f32 %v456, 1e-08
  %v459 = vrsqrt.pop %v457
  %v460 = vmul.f32 %v459, %v457
  %v461 = vmul.f32 %v460, %v459
  %v462 = vmul.f32 0.5, %v461
  %v463 = vsub.f32 1.5, %v462
  %v464 = vmul.f32 %v459, %v463
  %vm465 = vweird.f32 %v457
  %vm466 = vweird.f32 %v459
  %vm467 = vmor %vm465, %vm466
  %v468 = vsel %vm467, %v459, %v464
  %v469 = vrsqrt.pop %v458
  %v470 = vmul.f32 %v469, %v458
  %v471 = vmul.f32 %v470, %v469
  %v472 = vmul.f32 0.5, %v471
  %v473 = vsub.f32 1.5, %v472
  %v474 = vmul.f32 %v469, %v473
  %vm475 = vweird.f32 %v458
  %vm476 = vweird.f32 %v469
  %vm477 = vmor %vm475, %vm476
  %v478 = vsel %vm477, %v469, %v474
  %v479 = vmul.f32 %v409, %v468
  %v480 = vmul.f32 %v410, %v478
  %vm481 = vcmp.ge.f32.partialorder %v479, 0.0
  %vm482 = vcmp.ge.f32.partialorder %v480, 0.0
  %v483 = vmul.f32 %v479, 0.2
  %v484 = vmul.f32 %v480, 0.2
  %v485 = vsel %vm481, %v479, %v483
  %v486 = vsel %vm482, %v480, %v484
  %487 = vst.msk [vmem:[%s3] sm:$0xff] %vm376, %v485
  %488 = vst.msk [vmem:[%s3 + $0x8] sm:$0xff] %vm376, %v486
  %v489 = vmul.f32 %v419, %v468
  %v490 = vmul.f32 %v420, %v478
  %vm491 = vcmp.ge.f32.partialorder %v489, 0.0
  %vm492 = vcmp.ge.f32.partialorder %v490, 0.0
  %v493 = vmul.f32 %v489, 0.2
  %v494 = vmul.f32 %v490, 0.2
  %v495 = vsel %vm491, %v489, %v493
  %v496 = vsel %vm492, %v490, %v494
  %s497 = scalar_lea.vmem %s3, 16
  %498 = vst.msk [vmem:[%s497] sm:$0xff] %vm376, %v495
  %499 = vst.msk [vmem:[%s497 + $0x8] sm:$0xff] %vm376, %v496
  %v500 = vmul.f32 %v431, %v468
  %v501 = vmul.f32 %v432, %v478
  %vm502 = vcmp.ge.f32.partialorder %v500, 0.0
  %vm503 = vcmp.ge.f32.partialorder %v501, 0.0
  %v504 = vmul.f32 %v500, 0.2
  %v505 = vmul.f32 %v501, 0.2
  %v506 = vsel %vm502, %v500, %v504
  %v507 = vsel %vm503, %v501, %v505
  %s508 = scalar_lea.vmem %s3, 32
  %509 = vst.msk [vmem:[%s508] sm:$0xff] %vm376, %v506
  %510 = vst.msk [vmem:[%s508 + $0x8] sm:$0xff] %vm376, %v507
  %v511 = vmul.f32 %v443, %v468
  %v512 = vmul.f32 %v444, %v478
  %vm513 = vcmp.ge.f32.partialorder %v511, 0.0
  %vm514 = vcmp.ge.f32.partialorder %v512, 0.0
  %v515 = vmul.f32 %v511, 0.2
  %v516 = vmul.f32 %v512, 0.2
  %v517 = vsel %vm513, %v511, %v515
  %v518 = vsel %vm514, %v512, %v516
  %s519 = scalar_lea.vmem %s3, 48
  %520 = vst.msk [vmem:[%s519] sm:$0xff] %vm376, %v517
  %521 = vst.msk [vmem:[%s519 + $0x8] sm:$0xff] %vm376, %v518
  %v522 = vld [vmem:[%s0] sm:$0xf]
  %v523 = vld [vmem:[%s0 + $0x4] sm:$0xf]
  %s524 = scalar_lea.vmem %s1, 64
  %v525 = vld [vmem:[%s524] sm:$0xf]
  %v526 = vld [vmem:[%s524 + $0x4] sm:$0xf]
  %v527 = vld [vmem:[%s524 + $0x8] sm:$0xf]
  %v528 = vld [vmem:[%s524 + $0xc] sm:$0xf]
  %v529 = vld [vmem:[%s524 + $0x10] sm:$0xf]
  %v530 = vld [vmem:[%s524 + $0x14] sm:$0xf]
  %v531 = vld [vmem:[%s524 + $0x18] sm:$0xf]
  %v532 = vld [vmem:[%s524 + $0x1c] sm:$0xf]
  %v533 = vld [vmem:[%s524 + $0x20] sm:$0xf]
  %v534 = vld [vmem:[%s524 + $0x24] sm:$0xf]
  %v535 = vld [vmem:[%s524 + $0x28] sm:$0xf]
  %v536 = vld [vmem:[%s524 + $0x2c] sm:$0xf]
  %v537 = vld [vmem:[%s524 + $0x30] sm:$0xf]
  %v538 = vld [vmem:[%s524 + $0x34] sm:$0xf]
  %v539 = vld [vmem:[%s524 + $0x38] sm:$0xf]
  %v540 = vld [vmem:[%s524 + $0x3c] sm:$0xf]
  %v543 = vunpack.c.l.b16 %v522
  %v544 = vunpack.c.l.b16 %v523
  %v545 = vpack.c.b16 %v544, %v543
  %v563 = vunpack.c.l.b16 %v525
  %v564 = vunpack.c.l.b16 %v526
  %v565 = vunpack.c.l.b16 %v527
  %v566 = vunpack.c.l.b16 %v528
  %v567 = vunpack.c.l.b16 %v529
  %v568 = vunpack.c.l.b16 %v530
  %v569 = vunpack.c.l.b16 %v531
  %v570 = vunpack.c.l.b16 %v532
  %v571 = vunpack.c.l.b16 %v533
  %v572 = vunpack.c.l.b16 %v534
  %v573 = vunpack.c.l.b16 %v535
  %v574 = vunpack.c.l.b16 %v536
  %v575 = vunpack.c.l.b16 %v537
  %v576 = vunpack.c.l.b16 %v538
  %v577 = vunpack.c.l.b16 %v539
  %v578 = vunpack.c.l.b16 %v540
  %v579 = vpack.c.b16 %v564, %v563
  %v580 = vpack.c.b16 %v566, %v565
  %v581 = vpack.c.b16 %v568, %v567
  %v582 = vpack.c.b16 %v570, %v569
  %v583 = vpack.c.b16 %v572, %v571
  %v584 = vpack.c.b16 %v574, %v573
  %v585 = vpack.c.b16 %v576, %v575
  %v586 = vpack.c.b16 %v578, %v577
  %595 = vmatpush.bf16.msra.mxu0 %v586
  %596 = vmatpush.bf16.msra.mxu0 %v585
  %597 = vmatpush.bf16.msra.mxu0 %v584
  %598 = vmatpush.bf16.msra.mxu0 %v583
  %599 = vmatpush.bf16.msra.mxu0 %v582
  %600 = vmatpush.bf16.msra.mxu0 %v581
  %601 = vmatpush.bf16.msra.mxu0 %v580
  %602 = vmatpush.bf16.msra.mxu0 %v579
  %603 = vmatmul.bf16.gmra.mxu0 %v545
  %v604 = vpop.f32.mrf.mxu0
  %v605 = vadd.f32 %v37, %v604
  %v606 = vpop.f32.mrf.mxu0
  %v607 = vadd.f32 %v42, %v606
  %608 = vdwg.mxu0
  %v609 = vld [vmem:[%s112] sm:$0xf]
  %v610 = vld [vmem:[%s112 + $0x4] sm:$0xf]
  %s611 = scalar_lea.vmem %s1, 192
  %v612 = vld [vmem:[%s611] sm:$0xf]
  %v613 = vld [vmem:[%s611 + $0x4] sm:$0xf]
  %v614 = vld [vmem:[%s611 + $0x8] sm:$0xf]
  %v615 = vld [vmem:[%s611 + $0xc] sm:$0xf]
  %v616 = vld [vmem:[%s611 + $0x10] sm:$0xf]
  %v617 = vld [vmem:[%s611 + $0x14] sm:$0xf]
  %v618 = vld [vmem:[%s611 + $0x18] sm:$0xf]
  %v619 = vld [vmem:[%s611 + $0x1c] sm:$0xf]
  %v620 = vld [vmem:[%s611 + $0x20] sm:$0xf]
  %v621 = vld [vmem:[%s611 + $0x24] sm:$0xf]
  %v622 = vld [vmem:[%s611 + $0x28] sm:$0xf]
  %v623 = vld [vmem:[%s611 + $0x2c] sm:$0xf]
  %v624 = vld [vmem:[%s611 + $0x30] sm:$0xf]
  %v625 = vld [vmem:[%s611 + $0x34] sm:$0xf]
  %v626 = vld [vmem:[%s611 + $0x38] sm:$0xf]
  %v627 = vld [vmem:[%s611 + $0x3c] sm:$0xf]
  %v630 = vunpack.c.l.b16 %v609
  %v631 = vunpack.c.l.b16 %v610
  %v632 = vpack.c.b16 %v631, %v630
  %v650 = vunpack.c.l.b16 %v612
  %v651 = vunpack.c.l.b16 %v613
  %v652 = vunpack.c.l.b16 %v614
  %v653 = vunpack.c.l.b16 %v615
  %v654 = vunpack.c.l.b16 %v616
  %v655 = vunpack.c.l.b16 %v617
  %v656 = vunpack.c.l.b16 %v618
  %v657 = vunpack.c.l.b16 %v619
  %v658 = vunpack.c.l.b16 %v620
  %v659 = vunpack.c.l.b16 %v621
  %v660 = vunpack.c.l.b16 %v622
  %v661 = vunpack.c.l.b16 %v623
  %v662 = vunpack.c.l.b16 %v624
  %v663 = vunpack.c.l.b16 %v625
  %v664 = vunpack.c.l.b16 %v626
  %v665 = vunpack.c.l.b16 %v627
  %v666 = vpack.c.b16 %v651, %v650
  %v667 = vpack.c.b16 %v653, %v652
  %v668 = vpack.c.b16 %v655, %v654
  %v669 = vpack.c.b16 %v657, %v656
  %v670 = vpack.c.b16 %v659, %v658
  %v671 = vpack.c.b16 %v661, %v660
  %v672 = vpack.c.b16 %v663, %v662
  %v673 = vpack.c.b16 %v665, %v664
  %682 = vmatpush.bf16.msra.mxu0 %v673
  %683 = vmatpush.bf16.msra.mxu0 %v672
  %684 = vmatpush.bf16.msra.mxu0 %v671
  %685 = vmatpush.bf16.msra.mxu0 %v670
  %686 = vmatpush.bf16.msra.mxu0 %v669
  %687 = vmatpush.bf16.msra.mxu0 %v668
  %688 = vmatpush.bf16.msra.mxu0 %v667
  %689 = vmatpush.bf16.msra.mxu0 %v666
  %690 = vmatmul.bf16.gmra.mxu0 %v632
  %v691 = vpop.f32.mrf.mxu0
  %v692 = vadd.f32 %v37, %v691
  %v693 = vpop.f32.mrf.mxu0
  %v694 = vadd.f32 %v42, %v693
  %695 = vdwg.mxu0
  %v696 = vld [vmem:[%s200] sm:$0xf]
  %v697 = vld [vmem:[%s200 + $0x4] sm:$0xf]
  %s698 = scalar_lea.vmem %s1, 320
  %v699 = vld [vmem:[%s698] sm:$0xf]
  %v700 = vld [vmem:[%s698 + $0x4] sm:$0xf]
  %v701 = vld [vmem:[%s698 + $0x8] sm:$0xf]
  %v702 = vld [vmem:[%s698 + $0xc] sm:$0xf]
  %v703 = vld [vmem:[%s698 + $0x10] sm:$0xf]
  %v704 = vld [vmem:[%s698 + $0x14] sm:$0xf]
  %v705 = vld [vmem:[%s698 + $0x18] sm:$0xf]
  %v706 = vld [vmem:[%s698 + $0x1c] sm:$0xf]
  %v707 = vld [vmem:[%s698 + $0x20] sm:$0xf]
  %v708 = vld [vmem:[%s698 + $0x24] sm:$0xf]
  %v709 = vld [vmem:[%s698 + $0x28] sm:$0xf]
  %v710 = vld [vmem:[%s698 + $0x2c] sm:$0xf]
  %v711 = vld [vmem:[%s698 + $0x30] sm:$0xf]
  %v712 = vld [vmem:[%s698 + $0x34] sm:$0xf]
  %v713 = vld [vmem:[%s698 + $0x38] sm:$0xf]
  %v714 = vld [vmem:[%s698 + $0x3c] sm:$0xf]
  %v717 = vunpack.c.l.b16 %v696
  %v718 = vunpack.c.l.b16 %v697
  %v719 = vpack.c.b16 %v718, %v717
  %v737 = vunpack.c.l.b16 %v699
  %v738 = vunpack.c.l.b16 %v700
  %v739 = vunpack.c.l.b16 %v701
  %v740 = vunpack.c.l.b16 %v702
  %v741 = vunpack.c.l.b16 %v703
  %v742 = vunpack.c.l.b16 %v704
  %v743 = vunpack.c.l.b16 %v705
  %v744 = vunpack.c.l.b16 %v706
  %v745 = vunpack.c.l.b16 %v707
  %v746 = vunpack.c.l.b16 %v708
  %v747 = vunpack.c.l.b16 %v709
  %v748 = vunpack.c.l.b16 %v710
  %v749 = vunpack.c.l.b16 %v711
  %v750 = vunpack.c.l.b16 %v712
  %v751 = vunpack.c.l.b16 %v713
  %v752 = vunpack.c.l.b16 %v714
  %v753 = vpack.c.b16 %v738, %v737
  %v754 = vpack.c.b16 %v740, %v739
  %v755 = vpack.c.b16 %v742, %v741
  %v756 = vpack.c.b16 %v744, %v743
  %v757 = vpack.c.b16 %v746, %v745
  %v758 = vpack.c.b16 %v748, %v747
  %v759 = vpack.c.b16 %v750, %v749
  %v760 = vpack.c.b16 %v752, %v751
  %769 = vmatpush.bf16.msra.mxu0 %v760
  %770 = vmatpush.bf16.msra.mxu0 %v759
  %771 = vmatpush.bf16.msra.mxu0 %v758
  %772 = vmatpush.bf16.msra.mxu0 %v757
  %773 = vmatpush.bf16.msra.mxu0 %v756
  %774 = vmatpush.bf16.msra.mxu0 %v755
  %775 = vmatpush.bf16.msra.mxu0 %v754
  %776 = vmatpush.bf16.msra.mxu0 %v753
  %777 = vmatmul.bf16.gmra.mxu0 %v719
  %v778 = vpop.f32.mrf.mxu0
  %v779 = vadd.f32 %v37, %v778
  %v780 = vpop.f32.mrf.mxu0
  %v781 = vadd.f32 %v42, %v780
  %782 = vdwg.mxu0
  %v783 = vld [vmem:[%s288] sm:$0xf]
  %v784 = vld [vmem:[%s288 + $0x4] sm:$0xf]
  %s785 = scalar_lea.vmem %s1, 448
  %v786 = vld [vmem:[%s785] sm:$0xf]
  %v787 = vld [vmem:[%s785 + $0x4] sm:$0xf]
  %v788 = vld [vmem:[%s785 + $0x8] sm:$0xf]
  %v789 = vld [vmem:[%s785 + $0xc] sm:$0xf]
  %v790 = vld [vmem:[%s785 + $0x10] sm:$0xf]
  %v791 = vld [vmem:[%s785 + $0x14] sm:$0xf]
  %v792 = vld [vmem:[%s785 + $0x18] sm:$0xf]
  %v793 = vld [vmem:[%s785 + $0x1c] sm:$0xf]
  %v794 = vld [vmem:[%s785 + $0x20] sm:$0xf]
  %v795 = vld [vmem:[%s785 + $0x24] sm:$0xf]
  %v796 = vld [vmem:[%s785 + $0x28] sm:$0xf]
  %v797 = vld [vmem:[%s785 + $0x2c] sm:$0xf]
  %v798 = vld [vmem:[%s785 + $0x30] sm:$0xf]
  %v799 = vld [vmem:[%s785 + $0x34] sm:$0xf]
  %v800 = vld [vmem:[%s785 + $0x38] sm:$0xf]
  %v801 = vld [vmem:[%s785 + $0x3c] sm:$0xf]
  %v804 = vunpack.c.l.b16 %v783
  %v805 = vunpack.c.l.b16 %v784
  %v806 = vpack.c.b16 %v805, %v804
  %v824 = vunpack.c.l.b16 %v786
  %v825 = vunpack.c.l.b16 %v787
  %v826 = vunpack.c.l.b16 %v788
  %v827 = vunpack.c.l.b16 %v789
  %v828 = vunpack.c.l.b16 %v790
  %v829 = vunpack.c.l.b16 %v791
  %v830 = vunpack.c.l.b16 %v792
  %v831 = vunpack.c.l.b16 %v793
  %v832 = vunpack.c.l.b16 %v794
  %v833 = vunpack.c.l.b16 %v795
  %v834 = vunpack.c.l.b16 %v796
  %v835 = vunpack.c.l.b16 %v797
  %v836 = vunpack.c.l.b16 %v798
  %v837 = vunpack.c.l.b16 %v799
  %v838 = vunpack.c.l.b16 %v800
  %v839 = vunpack.c.l.b16 %v801
  %v840 = vpack.c.b16 %v825, %v824
  %v841 = vpack.c.b16 %v827, %v826
  %v842 = vpack.c.b16 %v829, %v828
  %v843 = vpack.c.b16 %v831, %v830
  %v844 = vpack.c.b16 %v833, %v832
  %v845 = vpack.c.b16 %v835, %v834
  %v846 = vpack.c.b16 %v837, %v836
  %v847 = vpack.c.b16 %v839, %v838
  %856 = vmatpush.bf16.msra.mxu0 %v847
  %857 = vmatpush.bf16.msra.mxu0 %v846
  %858 = vmatpush.bf16.msra.mxu0 %v845
  %859 = vmatpush.bf16.msra.mxu0 %v844
  %860 = vmatpush.bf16.msra.mxu0 %v843
  %861 = vmatpush.bf16.msra.mxu0 %v842
  %862 = vmatpush.bf16.msra.mxu0 %v841
  %863 = vmatpush.bf16.msra.mxu0 %v840
  %864 = vmatmul.bf16.gmra.mxu0 %v806
  %v865 = vpop.f32.mrf.mxu0
  %v866 = vadd.f32 %v37, %v865
  %v867 = vpop.f32.mrf.mxu0
  %v868 = vadd.f32 %v42, %v867
  %869 = vdwg.mxu0
  %v870 = vsel %vm376, %v605, 0.0
  %871 = vadd.xlane.f32.xlu0 %v870
  %v872 = vpop.xlane.xlu0 %871
  %v873 = vsel %vm376, %v607, 0.0
  %874 = vadd.xlane.f32.xlu0 %v873
  %v875 = vpop.xlane.xlu0 %874
  %v876 = vsel %vm376, %v692, 0.0
  %877 = vadd.xlane.f32.xlu0 %v876
  %v878 = vpop.xlane.xlu0 %877
  %v879 = vsel %vm376, %v694, 0.0
  %880 = vadd.xlane.f32.xlu0 %v879
  %v881 = vpop.xlane.xlu0 %880
  %v882 = vadd.f32 %v872, %v878
  %v883 = vadd.f32 %v875, %v881
  %v884 = vsel %vm376, %v779, 0.0
  %885 = vadd.xlane.f32.xlu0 %v884
  %v886 = vpop.xlane.xlu0 %885
  %v887 = vsel %vm376, %v781, 0.0
  %888 = vadd.xlane.f32.xlu0 %v887
  %v889 = vpop.xlane.xlu0 %888
  %v890 = vadd.f32 %v882, %v886
  %v891 = vadd.f32 %v883, %v889
  %v892 = vsel %vm376, %v866, 0.0
  %893 = vadd.xlane.f32.xlu0 %v892
  %v894 = vpop.xlane.xlu0 %893
  %v895 = vsel %vm376, %v868, 0.0
  %896 = vadd.xlane.f32.xlu0 %v895
  %v897 = vpop.xlane.xlu0 %896
  %v898 = vadd.f32 %v890, %v894
  %v899 = vadd.f32 %v891, %v897
  %v900 = vmul.f32 %v898, 0.00390625
  %v901 = vmul.f32 %v899, 0.00390625
  %v902 = vsub.f32 %v605, %v900
  %v903 = vsub.f32 %v607, %v901
  %v904 = vmul.f32 %v902, %v902
  %v905 = vmul.f32 %v903, %v903
  %v906 = vsel %vm376, %v904, 0.0
  %907 = vadd.xlane.f32.xlu0 %v906
  %v908 = vpop.xlane.xlu0 %907
  %v909 = vsel %vm376, %v905, 0.0
  %910 = vadd.xlane.f32.xlu0 %v909
  %v911 = vpop.xlane.xlu0 %910
  %v912 = vsub.f32 %v692, %v900
  %v913 = vsub.f32 %v694, %v901
  %v914 = vmul.f32 %v912, %v912
  %v915 = vmul.f32 %v913, %v913
  %v916 = vsel %vm376, %v914, 0.0
  %917 = vadd.xlane.f32.xlu0 %v916
  %v918 = vpop.xlane.xlu0 %917
  %v919 = vsel %vm376, %v915, 0.0
  %920 = vadd.xlane.f32.xlu0 %v919
  %v921 = vpop.xlane.xlu0 %920
  %v922 = vadd.f32 %v908, %v918
  %v923 = vadd.f32 %v911, %v921
  %v924 = vsub.f32 %v779, %v900
  %v925 = vsub.f32 %v781, %v901
  %v926 = vmul.f32 %v924, %v924
  %v927 = vmul.f32 %v925, %v925
  %v928 = vsel %vm376, %v926, 0.0
  %929 = vadd.xlane.f32.xlu0 %v928
  %v930 = vpop.xlane.xlu0 %929
  %v931 = vsel %vm376, %v927, 0.0
  %932 = vadd.xlane.f32.xlu0 %v931
  %v933 = vpop.xlane.xlu0 %932
  %v934 = vadd.f32 %v922, %v930
  %v935 = vadd.f32 %v923, %v933
  %v936 = vsub.f32 %v866, %v900
  %v937 = vsub.f32 %v868, %v901
  %v938 = vmul.f32 %v936, %v936
  %v939 = vmul.f32 %v937, %v937
  %v940 = vsel %vm376, %v938, 0.0
  %941 = vadd.xlane.f32.xlu0 %v940
  %v942 = vpop.xlane.xlu0 %941
  %v943 = vsel %vm376, %v939, 0.0
  %944 = vadd.xlane.f32.xlu0 %v943
  %v945 = vpop.xlane.xlu0 %944
  %v946 = vadd.f32 %v934, %v942
  %v947 = vadd.f32 %v935, %v945
  %v948 = vmul.f32 %v946, 0.00390625
  %v949 = vmul.f32 %v947, 0.00390625
  %v950 = vadd.f32 %v948, 1e-08
  %v951 = vadd.f32 %v949, 1e-08
  %v952 = vrsqrt.pop %v950
  %v953 = vmul.f32 %v952, %v950
  %v954 = vmul.f32 %v953, %v952
  %v955 = vmul.f32 0.5, %v954
  %v956 = vsub.f32 1.5, %v955
  %v957 = vmul.f32 %v952, %v956
  %vm958 = vweird.f32 %v950
  %vm959 = vweird.f32 %v952
  %vm960 = vmor %vm958, %vm959
  %v961 = vsel %vm960, %v952, %v957
  %v962 = vrsqrt.pop %v951
  %v963 = vmul.f32 %v962, %v951
  %v964 = vmul.f32 %v963, %v962
  %v965 = vmul.f32 0.5, %v964
  %v966 = vsub.f32 1.5, %v965
  %v967 = vmul.f32 %v962, %v966
  %vm968 = vweird.f32 %v951
  %vm969 = vweird.f32 %v962
  %vm970 = vmor %vm968, %vm969
  %v971 = vsel %vm970, %v962, %v967
  %v972 = vmul.f32 %v902, %v961
  %v973 = vmul.f32 %v903, %v971
  %vm974 = vcmp.ge.f32.partialorder %v972, 0.0
  %vm975 = vcmp.ge.f32.partialorder %v973, 0.0
  %v976 = vmul.f32 %v972, 0.2
  %v977 = vmul.f32 %v973, 0.2
  %v978 = vsel %vm974, %v972, %v976
  %v979 = vsel %vm975, %v973, %v977
  %s980 = scalar_lea.vmem %s3, 64
  %981 = vst.msk [vmem:[%s980] sm:$0xff] %vm376, %v978
  %982 = vst.msk [vmem:[%s980 + $0x8] sm:$0xff] %vm376, %v979
  %v983 = vmul.f32 %v912, %v961
  %v984 = vmul.f32 %v913, %v971
  %vm985 = vcmp.ge.f32.partialorder %v983, 0.0
  %vm986 = vcmp.ge.f32.partialorder %v984, 0.0
  %v987 = vmul.f32 %v983, 0.2
  %v988 = vmul.f32 %v984, 0.2
  %v989 = vsel %vm985, %v983, %v987
  %v990 = vsel %vm986, %v984, %v988
  %s991 = scalar_lea.vmem %s3, 80
  %992 = vst.msk [vmem:[%s991] sm:$0xff] %vm376, %v989
  %993 = vst.msk [vmem:[%s991 + $0x8] sm:$0xff] %vm376, %v990
  %v994 = vmul.f32 %v924, %v961
  %v995 = vmul.f32 %v925, %v971
  %vm996 = vcmp.ge.f32.partialorder %v994, 0.0
  %vm997 = vcmp.ge.f32.partialorder %v995, 0.0
  %v998 = vmul.f32 %v994, 0.2
  %v999 = vmul.f32 %v995, 0.2
  %v1000 = vsel %vm996, %v994, %v998
  %v1001 = vsel %vm997, %v995, %v999
  %s1002 = scalar_lea.vmem %s3, 96
  %1003 = vst.msk [vmem:[%s1002] sm:$0xff] %vm376, %v1000
  %1004 = vst.msk [vmem:[%s1002 + $0x8] sm:$0xff] %vm376, %v1001
  %v1005 = vmul.f32 %v936, %v961
  %v1006 = vmul.f32 %v937, %v971
  %vm1007 = vcmp.ge.f32.partialorder %v1005, 0.0
  %vm1008 = vcmp.ge.f32.partialorder %v1006, 0.0
  %v1009 = vmul.f32 %v1005, 0.2
  %v1010 = vmul.f32 %v1006, 0.2
  %v1011 = vsel %vm1007, %v1005, %v1009
  %v1012 = vsel %vm1008, %v1006, %v1010
  %s1013 = scalar_lea.vmem %s3, 112
  %1014 = vst.msk [vmem:[%s1013] sm:$0xff] %vm376, %v1011
  %1015 = vst.msk [vmem:[%s1013 + $0x8] sm:$0xff] %vm376, %v1012
  // Predicated region
  $region14: #{_lambda_.6} parent=0 // pred_check
    _
  $region15: #{_lambda_.6} parent=0 // pred_check_branch
    %1017 = sbr.rel (0) target = $region17
  $region16: #{_lambda_.6} parent=0 // pred_region
    _
  $region17: #{_lambda_.6} parent=0 // pred_fallthru
    _
  // Predicated region
  $region18: #{_lambda_.6} parent=0 // pred_check
    _
  $region19: #{_lambda_.6} parent=0 // pred_check_branch
    %1019 = sbr.rel (0) target = $region21
  $region20: #{_lambda_.6} parent=0 // pred_region
    _
  $region21: #{_lambda_.6} parent=0 // pred_fallthru
    _

// kernel: _lambda_.7
$region0: #{_lambda_.7}
  #allocation0 [shape = 'u32[]', space=smem, size = 0x4, offset = 0x4, fixed_abs, tag = 'smem constant byte address 0x4 - core index']
  #allocation1 [shape = 'u32[72,128]{1,0:T(1,128)}', space=vmem, size = 0x9000, scoped, tag = 'internal scratch']
  %s0 = inlined_call_operand.vmem [shape: bf16[4,3,64], index: 0, kind: input, shape index: {}]
  %s1 = inlined_call_operand.vmem [shape: bf16[4,2,64,256], index: 1, kind: input, shape index: {}]
  %s2 = inlined_call_operand.vmem [shape: f32[3,1], index: 2, kind: input, shape index: {}]
  %s3 = inlined_call_operand.vmem [shape: f32[2,4,3,256], index: 3, kind: output, shape index: {}]
  %s4 = sld [smem:[#allocation0]]
  $region22: #{_lambda_.7} parent=0
    _
  %s6 = ssub.s32 1, %s4
  %s7 = scalar_select 0, %s6, %s4
  // Predicated region
  $region2: #{_lambda_.7} parent=0 // pred_check
    _
  $region3: #{_lambda_.7} parent=0 // pred_check_branch
    %9 = sbr.rel (0) target = $region5
  $region4: #{_lambda_.7} parent=0 // pred_region
    _
  $region5: #{_lambda_.7} parent=0 // pred_fallthru
    _
  // Predicated region
  $region6: #{_lambda_.7} parent=0 // pred_check
    _
  $region7: #{_lambda_.7} parent=0 // pred_check_branch
    %11 = sbr.rel (0) target = $region9
  $region8: #{_lambda_.7} parent=0 // pred_region
    _
  $region9: #{_lambda_.7} parent=0 // pred_fallthru
    _
  // Predicated region
  $region10: #{_lambda_.7} parent=0 // pred_check
    _
  $region11: #{_lambda_.7} parent=0 // pred_check_branch
    %13 = sbr.rel (0) target = $region13
  $region12: #{_lambda_.7} parent=0 // pred_region
    _
  $region13: #{_lambda_.7} parent=0 // pred_fallthru
    _
  %v15 = vld [vmem:[%s2] sm:$0x7]
  %v16 = vld [vmem:[%s0] sm:$0x3]
  %v17 = vld [vmem:[%s1] sm:$0xff]
  %v18 = vld [vmem:[%s1 + $0x8] sm:$0xff]
  %v19 = vld [vmem:[%s1 + $0x10] sm:$0xff]
  %v20 = vld [vmem:[%s1 + $0x18] sm:$0xff]
  %v21 = vld [vmem:[%s1 + $0x20] sm:$0xff]
  %v22 = vld [vmem:[%s1 + $0x28] sm:$0xff]
  %v23 = vld [vmem:[%s1 + $0x30] sm:$0xff]
  %v24 = vld [vmem:[%s1 + $0x38] sm:$0xff]
  %26 = vset.pattern.permute.xlu0 0
  %27 = vperm.xlu0 %26, %v15
  %v28 = vpop.permute.xlu0 %27
  %v38 = vunpack.c.l.b16 %v17
  %v39 = vunpack.c.h.b16 %v17
  %v40 = vunpack.c.l.b16 %v18
  %v41 = vunpack.c.h.b16 %v18
  %v42 = vunpack.c.l.b16 %v19
  %v43 = vunpack.c.h.b16 %v19
  %v44 = vunpack.c.l.b16 %v20
  %v45 = vunpack.c.h.b16 %v20
  %v46 = vunpack.c.l.b16 %v21
  %v47 = vunpack.c.h.b16 %v21
  %v48 = vunpack.c.l.b16 %v22
  %v49 = vunpack.c.h.b16 %v22
  %v50 = vunpack.c.l.b16 %v23
  %v51 = vunpack.c.h.b16 %v23
  %v52 = vunpack.c.l.b16 %v24
  %v53 = vunpack.c.h.b16 %v24
  %v54 = vpack.c.b16 %v40, %v38
  %v55 = vpack.c.b16 %v41, %v39
  %v56 = vpack.c.b16 %v44, %v42
  %v57 = vpack.c.b16 %v45, %v43
  %v58 = vpack.c.b16 %v48, %v46
  %v59 = vpack.c.b16 %v49, %v47
  %v60 = vpack.c.b16 %v52, %v50
  %v61 = vpack.c.b16 %v53, %v51
  %vm70 = vcmask 523264
  %v72 = vsel %vm70, %v16, 0
  %74 = vmatpush.bf16.msra.mxu0 0
  %75 = vmatpush.bf16.msra.mxu0 0
  %76 = vmatpush.bf16.msra.mxu0 0
  %77 = vmatpush.bf16.msra.mxu0 0
  %78 = vmatpush.bf16.msra.mxu0 %v60
  %79 = vmatpush.bf16.msra.mxu0 %v58
  %80 = vmatpush.bf16.msra.mxu0 %v56
  %81 = vmatpush.bf16.msra.mxu0 %v54
  %82 = vmatmul.bf16.gmra.mxu0 %v72
  %v83 = vpop.f32.mrf.mxu0
  %v84 = vadd.f32 %v28, %v83
  %v85 = vpop.f32.mrf.mxu0
  %86 = vdwg.mxu0
  %87 = vmatpush.bf16.msra.mxu0 0
  %88 = vmatpush.bf16.msra.mxu0 0
  %89 = vmatpush.bf16.msra.mxu0 0
  %90 = vmatpush.bf16.msra.mxu0 0
  %91 = vmatpush.bf16.msra.mxu0 %v61
  %92 = vmatpush.bf16.msra.mxu0 %v59
  %93 = vmatpush.bf16.msra.mxu0 %v57
  %94 = vmatpush.bf16.msra.mxu0 %v55
  %95 = vmatmul.bf16.gmra.mxu0 %v72
  %v96 = vpop.f32.mrf.mxu0
  %v97 = vadd.f32 %v28, %v96
  %v98 = vpop.f32.mrf.mxu0
  %99 = vdwg.mxu0
  %s100 = scalar_lea.vmem %s0, 2
  %v101 = vld [vmem:[%s100] sm:$0x3]
  %s102 = scalar_lea.vmem %s1, 128
  %v103 = vld [vmem:[%s102] sm:$0xff]
  %v104 = vld [vmem:[%s102 + $0x8] sm:$0xff]
  %v105 = vld [vmem:[%s102 + $0x10] sm:$0xff]
  %v106 = vld [vmem:[%s102 + $0x18] sm:$0xff]
  %v107 = vld [vmem:[%s102 + $0x20] sm:$0xff]
  %v108 = vld [vmem:[%s102 + $0x28] sm:$0xff]
  %v109 = vld [vmem:[%s102 + $0x30] sm:$0xff]
  %v110 = vld [vmem:[%s102 + $0x38] sm:$0xff]
  %v119 = vunpack.c.l.b16 %v103
  %v120 = vunpack.c.h.b16 %v103
  %v121 = vunpack.c.l.b16 %v104
  %v122 = vunpack.c.h.b16 %v104
  %v123 = vunpack.c.l.b16 %v105
  %v124 = vunpack.c.h.b16 %v105
  %v125 = vunpack.c.l.b16 %v106
  %v126 = vunpack.c.h.b16 %v106
  %v127 = vunpack.c.l.b16 %v107
  %v128 = vunpack.c.h.b16 %v107
  %v129 = vunpack.c.l.b16 %v108
  %v130 = vunpack.c.h.b16 %v108
  %v131 = vunpack.c.l.b16 %v109
  %v132 = vunpack.c.h.b16 %v109
  %v133 = vunpack.c.l.b16 %v110
  %v134 = vunpack.c.h.b16 %v110
  %v135 = vpack.c.b16 %v121, %v119
  %v136 = vpack.c.b16 %v122, %v120
  %v137 = vpack.c.b16 %v125, %v123
  %v138 = vpack.c.b16 %v126, %v124
  %v139 = vpack.c.b16 %v129, %v127
  %v140 = vpack.c.b16 %v130, %v128
  %v141 = vpack.c.b16 %v133, %v131
  %v142 = vpack.c.b16 %v134, %v132
  %v152 = vsel %vm70, %v101, 0
  %154 = vmatpush.bf16.msra.mxu0 0
  %155 = vmatpush.bf16.msra.mxu0 0
  %156 = vmatpush.bf16.msra.mxu0 0
  %157 = vmatpush.bf16.msra.mxu0 0
  %158 = vmatpush.bf16.msra.mxu0 %v141
  %159 = vmatpush.bf16.msra.mxu0 %v139
  %160 = vmatpush.bf16.msra.mxu0 %v137
  %161 = vmatpush.bf16.msra.mxu0 %v135
  %162 = vmatmul.bf16.gmra.mxu0 %v152
  %v163 = vpop.f32.mrf.mxu0
  %v164 = vadd.f32 %v28, %v163
  %v165 = vpop.f32.mrf.mxu0
  %166 = vdwg.mxu0
  %167 = vmatpush.bf16.msra.mxu0 0
  %168 = vmatpush.bf16.msra.mxu0 0
  %169 = vmatpush.bf16.msra.mxu0 0
  %170 = vmatpush.bf16.msra.mxu0 0
  %171 = vmatpush.bf16.msra.mxu0 %v142
  %172 = vmatpush.bf16.msra.mxu0 %v140
  %173 = vmatpush.bf16.msra.mxu0 %v138
  %174 = vmatpush.bf16.msra.mxu0 %v136
  %175 = vmatmul.bf16.gmra.mxu0 %v152
  %v176 = vpop.f32.mrf.mxu0
  %v177 = vadd.f32 %v28, %v176
  %v178 = vpop.f32.mrf.mxu0
  %179 = vdwg.mxu0
  %s180 = scalar_lea.vmem %s0, 4
  %v181 = vld [vmem:[%s180] sm:$0x3]
  %s182 = scalar_lea.vmem %s1, 256
  %v183 = vld [vmem:[%s182] sm:$0xff]
  %v184 = vld [vmem:[%s182 + $0x8] sm:$0xff]
  %v185 = vld [vmem:[%s182 + $0x10] sm:$0xff]
  %v186 = vld [vmem:[%s182 + $0x18] sm:$0xff]
  %v187 = vld [vmem:[%s182 + $0x20] sm:$0xff]
  %v188 = vld [vmem:[%s182 + $0x28] sm:$0xff]
  %v189 = vld [vmem:[%s182 + $0x30] sm:$0xff]
  %v190 = vld [vmem:[%s182 + $0x38] sm:$0xff]
  %v199 = vunpack.c.l.b16 %v183
  %v200 = vunpack.c.h.b16 %v183
  %v201 = vunpack.c.l.b16 %v184
  %v202 = vunpack.c.h.b16 %v184
  %v203 = vunpack.c.l.b16 %v185
  %v204 = vunpack.c.h.b16 %v185
  %v205 = vunpack.c.l.b16 %v186
  %v206 = vunpack.c.h.b16 %v186
  %v207 = vunpack.c.l.b16 %v187
  %v208 = vunpack.c.h.b16 %v187
  %v209 = vunpack.c.l.b16 %v188
  %v210 = vunpack.c.h.b16 %v188
  %v211 = vunpack.c.l.b16 %v189
  %v212 = vunpack.c.h.b16 %v189
  %v213 = vunpack.c.l.b16 %v190
  %v214 = vunpack.c.h.b16 %v190
  %v215 = vpack.c.b16 %v201, %v199
  %v216 = vpack.c.b16 %v202, %v200
  %v217 = vpack.c.b16 %v205, %v203
  %v218 = vpack.c.b16 %v206, %v204
  %v219 = vpack.c.b16 %v209, %v207
  %v220 = vpack.c.b16 %v210, %v208
  %v221 = vpack.c.b16 %v213, %v211
  %v222 = vpack.c.b16 %v214, %v212
  %v232 = vsel %vm70, %v181, 0
  %234 = vmatpush.bf16.msra.mxu0 0
  %235 = vmatpush.bf16.msra.mxu0 0
  %236 = vmatpush.bf16.msra.mxu0 0
  %237 = vmatpush.bf16.msra.mxu0 0
  %238 = vmatpush.bf16.msra.mxu0 %v221
  %239 = vmatpush.bf16.msra.mxu0 %v219
  %240 = vmatpush.bf16.msra.mxu0 %v217
  %241 = vmatpush.bf16.msra.mxu0 %v215
  %242 = vmatmul.bf16.gmra.mxu0 %v232
  %v243 = vpop.f32.mrf.mxu0
  %v244 = vadd.f32 %v28, %v243
  %v245 = vpop.f32.mrf.mxu0
  %246 = vdwg.mxu0
  %247 = vmatpush.bf16.msra.mxu0 0
  %248 = vmatpush.bf16.msra.mxu0 0
  %249 = vmatpush.bf16.msra.mxu0 0
  %250 = vmatpush.bf16.msra.mxu0 0
  %251 = vmatpush.bf16.msra.mxu0 %v222
  %252 = vmatpush.bf16.msra.mxu0 %v220
  %253 = vmatpush.bf16.msra.mxu0 %v218
  %254 = vmatpush.bf16.msra.mxu0 %v216
  %255 = vmatmul.bf16.gmra.mxu0 %v232
  %v256 = vpop.f32.mrf.mxu0
  %v257 = vadd.f32 %v28, %v256
  %v258 = vpop.f32.mrf.mxu0
  %259 = vdwg.mxu0
  %s260 = scalar_lea.vmem %s0, 6
  %v261 = vld [vmem:[%s260] sm:$0x3]
  %s262 = scalar_lea.vmem %s1, 384
  %v263 = vld [vmem:[%s262] sm:$0xff]
  %v264 = vld [vmem:[%s262 + $0x8] sm:$0xff]
  %v265 = vld [vmem:[%s262 + $0x10] sm:$0xff]
  %v266 = vld [vmem:[%s262 + $0x18] sm:$0xff]
  %v267 = vld [vmem:[%s262 + $0x20] sm:$0xff]
  %v268 = vld [vmem:[%s262 + $0x28] sm:$0xff]
  %v269 = vld [vmem:[%s262 + $0x30] sm:$0xff]
  %v270 = vld [vmem:[%s262 + $0x38] sm:$0xff]
  %v279 = vunpack.c.l.b16 %v263
  %v280 = vunpack.c.h.b16 %v263
  %v281 = vunpack.c.l.b16 %v264
  %v282 = vunpack.c.h.b16 %v264
  %v283 = vunpack.c.l.b16 %v265
  %v284 = vunpack.c.h.b16 %v265
  %v285 = vunpack.c.l.b16 %v266
  %v286 = vunpack.c.h.b16 %v266
  %v287 = vunpack.c.l.b16 %v267
  %v288 = vunpack.c.h.b16 %v267
  %v289 = vunpack.c.l.b16 %v268
  %v290 = vunpack.c.h.b16 %v268
  %v291 = vunpack.c.l.b16 %v269
  %v292 = vunpack.c.h.b16 %v269
  %v293 = vunpack.c.l.b16 %v270
  %v294 = vunpack.c.h.b16 %v270
  %v295 = vpack.c.b16 %v281, %v279
  %v296 = vpack.c.b16 %v282, %v280
  %v297 = vpack.c.b16 %v285, %v283
  %v298 = vpack.c.b16 %v286, %v284
  %v299 = vpack.c.b16 %v289, %v287
  %v300 = vpack.c.b16 %v290, %v288
  %v301 = vpack.c.b16 %v293, %v291
  %v302 = vpack.c.b16 %v294, %v292
  %v312 = vsel %vm70, %v261, 0
  %314 = vmatpush.bf16.msra.mxu0 0
  %315 = vmatpush.bf16.msra.mxu0 0
  %316 = vmatpush.bf16.msra.mxu0 0
  %317 = vmatpush.bf16.msra.mxu0 0
  %318 = vmatpush.bf16.msra.mxu0 %v301
  %319 = vmatpush.bf16.msra.mxu0 %v299
  %320 = vmatpush.bf16.msra.mxu0 %v297
  %321 = vmatpush.bf16.msra.mxu0 %v295
  %322 = vmatmul.bf16.gmra.mxu0 %v312
  %v323 = vpop.f32.mrf.mxu0
  %v324 = vadd.f32 %v28, %v323
  %v325 = vpop.f32.mrf.mxu0
  %326 = vdwg.mxu0
  %327 = vmatpush.bf16.msra.mxu0 0
  %328 = vmatpush.bf16.msra.mxu0 0
  %329 = vmatpush.bf16.msra.mxu0 0
  %330 = vmatpush.bf16.msra.mxu0 0
  %331 = vmatpush.bf16.msra.mxu0 %v302
  %332 = vmatpush.bf16.msra.mxu0 %v300
  %333 = vmatpush.bf16.msra.mxu0 %v298
  %334 = vmatpush.bf16.msra.mxu0 %v296
  %335 = vmatmul.bf16.gmra.mxu0 %v312
  %v336 = vpop.f32.mrf.mxu0
  %v337 = vadd.f32 %v28, %v336
  %v338 = vpop.f32.mrf.mxu0
  %339 = vdwg.mxu0
  %v342 = vrot.slane %v97, 4
  %vm343 = vcmask 1043456
  %v344 = vsel %vm343, %v84, %v342
  %346 = vst [vmem:[%s3] sm:$0x77] %v344
  %v349 = vrot.slane %v177, 4
  %v350 = vsel %vm343, %v164, %v349
  %s352 = scalar_lea.vmem %s3, 8
  %353 = vst [vmem:[%s352] sm:$0x77] %v350
  %v356 = vrot.slane %v257, 4
  %v357 = vsel %vm343, %v244, %v356
  %s359 = scalar_lea.vmem %s3, 16
  %360 = vst [vmem:[%s359] sm:$0x77] %v357
  %v363 = vrot.slane %v337, 4
  %v364 = vsel %vm343, %v324, %v363
  %s366 = scalar_lea.vmem %s3, 24
  %367 = vst [vmem:[%s366] sm:$0x77] %v364
  %v368 = vld [vmem:[%s0] sm:$0x3]
  %s369 = scalar_lea.vmem %s1, 64
  %v370 = vld [vmem:[%s369] sm:$0xff]
  %v371 = vld [vmem:[%s369 + $0x8] sm:$0xff]
  %v372 = vld [vmem:[%s369 + $0x10] sm:$0xff]
  %v373 = vld [vmem:[%s369 + $0x18] sm:$0xff]
  %v374 = vld [vmem:[%s369 + $0x20] sm:$0xff]
  %v375 = vld [vmem:[%s369 + $0x28] sm:$0xff]
  %v376 = vld [vmem:[%s369 + $0x30] sm:$0xff]
  %v377 = vld [vmem:[%s369 + $0x38] sm:$0xff]
  %v386 = vunpack.c.l.b16 %v370
  %v387 = vunpack.c.h.b16 %v370
  %v388 = vunpack.c.l.b16 %v371
  %v389 = vunpack.c.h.b16 %v371
  %v390 = vunpack.c.l.b16 %v372
  %v391 = vunpack.c.h.b16 %v372
  %v392 = vunpack.c.l.b16 %v373
  %v393 = vunpack.c.h.b16 %v373
  %v394 = vunpack.c.l.b16 %v374
  %v395 = vunpack.c.h.b16 %v374
  %v396 = vunpack.c.l.b16 %v375
  %v397 = vunpack.c.h.b16 %v375
  %v398 = vunpack.c.l.b16 %v376
  %v399 = vunpack.c.h.b16 %v376
  %v400 = vunpack.c.l.b16 %v377
  %v401 = vunpack.c.h.b16 %v377
  %v402 = vpack.c.b16 %v388, %v386
  %v403 = vpack.c.b16 %v389, %v387
  %v404 = vpack.c.b16 %v392, %v390
  %v405 = vpack.c.b16 %v393, %v391
  %v406 = vpack.c.b16 %v396, %v394
  %v407 = vpack.c.b16 %v397, %v395
  %v408 = vpack.c.b16 %v400, %v398
  %v409 = vpack.c.b16 %v401, %v399
  %v419 = vsel %vm70, %v368, 0
  %421 = vmatpush.bf16.msra.mxu0 0
  %422 = vmatpush.bf16.msra.mxu0 0
  %423 = vmatpush.bf16.msra.mxu0 0
  %424 = vmatpush.bf16.msra.mxu0 0
  %425 = vmatpush.bf16.msra.mxu0 %v408
  %426 = vmatpush.bf16.msra.mxu0 %v406
  %427 = vmatpush.bf16.msra.mxu0 %v404
  %428 = vmatpush.bf16.msra.mxu0 %v402
  %429 = vmatmul.bf16.gmra.mxu0 %v419
  %v430 = vpop.f32.mrf.mxu0
  %v431 = vadd.f32 %v28, %v430
  %v432 = vpop.f32.mrf.mxu0
  %433 = vdwg.mxu0
  %434 = vmatpush.bf16.msra.mxu0 0
  %435 = vmatpush.bf16.msra.mxu0 0
  %436 = vmatpush.bf16.msra.mxu0 0
  %437 = vmatpush.bf16.msra.mxu0 0
  %438 = vmatpush.bf16.msra.mxu0 %v409
  %439 = vmatpush.bf16.msra.mxu0 %v407
  %440 = vmatpush.bf16.msra.mxu0 %v405
  %441 = vmatpush.bf16.msra.mxu0 %v403
  %442 = vmatmul.bf16.gmra.mxu0 %v419
  %v443 = vpop.f32.mrf.mxu0
  %v444 = vadd.f32 %v28, %v443
  %v445 = vpop.f32.mrf.mxu0
  %446 = vdwg.mxu0
  %v447 = vld [vmem:[%s100] sm:$0x3]
  %s448 = scalar_lea.vmem %s1, 192
  %v449 = vld [vmem:[%s448] sm:$0xff]
  %v450 = vld [vmem:[%s448 + $0x8] sm:$0xff]
  %v451 = vld [vmem:[%s448 + $0x10] sm:$0xff]
  %v452 = vld [vmem:[%s448 + $0x18] sm:$0xff]
  %v453 = vld [vmem:[%s448 + $0x20] sm:$0xff]
  %v454 = vld [vmem:[%s448 + $0x28] sm:$0xff]
  %v455 = vld [vmem:[%s448 + $0x30] sm:$0xff]
  %v456 = vld [vmem:[%s448 + $0x38] sm:$0xff]
  %v465 = vunpack.c.l.b16 %v449
  %v466 = vunpack.c.h.b16 %v449
  %v467 = vunpack.c.l.b16 %v450
  %v468 = vunpack.c.h.b16 %v450
  %v469 = vunpack.c.l.b16 %v451
  %v470 = vunpack.c.h.b16 %v451
  %v471 = vunpack.c.l.b16 %v452
  %v472 = vunpack.c.h.b16 %v452
  %v473 = vunpack.c.l.b16 %v453
  %v474 = vunpack.c.h.b16 %v453
  %v475 = vunpack.c.l.b16 %v454
  %v476 = vunpack.c.h.b16 %v454
  %v477 = vunpack.c.l.b16 %v455
  %v478 = vunpack.c.h.b16 %v455
  %v479 = vunpack.c.l.b16 %v456
  %v480 = vunpack.c.h.b16 %v456
  %v481 = vpack.c.b16 %v467, %v465
  %v482 = vpack.c.b16 %v468, %v466
  %v483 = vpack.c.b16 %v471, %v469
  %v484 = vpack.c.b16 %v472, %v470
  %v485 = vpack.c.b16 %v475, %v473
  %v486 = vpack.c.b16 %v476, %v474
  %v487 = vpack.c.b16 %v479, %v477
  %v488 = vpack.c.b16 %v480, %v478
  %v498 = vsel %vm70, %v447, 0
  %500 = vmatpush.bf16.msra.mxu0 0
  %501 = vmatpush.bf16.msra.mxu0 0
  %502 = vmatpush.bf16.msra.mxu0 0
  %503 = vmatpush.bf16.msra.mxu0 0
  %504 = vmatpush.bf16.msra.mxu0 %v487
  %505 = vmatpush.bf16.msra.mxu0 %v485
  %506 = vmatpush.bf16.msra.mxu0 %v483
  %507 = vmatpush.bf16.msra.mxu0 %v481
  %508 = vmatmul.bf16.gmra.mxu0 %v498
  %v509 = vpop.f32.mrf.mxu0
  %v510 = vadd.f32 %v28, %v509
  %v511 = vpop.f32.mrf.mxu0
  %512 = vdwg.mxu0
  %513 = vmatpush.bf16.msra.mxu0 0
  %514 = vmatpush.bf16.msra.mxu0 0
  %515 = vmatpush.bf16.msra.mxu0 0
  %516 = vmatpush.bf16.msra.mxu0 0
  %517 = vmatpush.bf16.msra.mxu0 %v488
  %518 = vmatpush.bf16.msra.mxu0 %v486
  %519 = vmatpush.bf16.msra.mxu0 %v484
  %520 = vmatpush.bf16.msra.mxu0 %v482
  %521 = vmatmul.bf16.gmra.mxu0 %v498
  %v522 = vpop.f32.mrf.mxu0
  %v523 = vadd.f32 %v28, %v522
  %v524 = vpop.f32.mrf.mxu0
  %525 = vdwg.mxu0
  %v526 = vld [vmem:[%s180] sm:$0x3]
  %s527 = scalar_lea.vmem %s1, 320
  %v528 = vld [vmem:[%s527] sm:$0xff]
  %v529 = vld [vmem:[%s527 + $0x8] sm:$0xff]
  %v530 = vld [vmem:[%s527 + $0x10] sm:$0xff]
  %v531 = vld [vmem:[%s527 + $0x18] sm:$0xff]
  %v532 = vld [vmem:[%s527 + $0x20] sm:$0xff]
  %v533 = vld [vmem:[%s527 + $0x28] sm:$0xff]
  %v534 = vld [vmem:[%s527 + $0x30] sm:$0xff]
  %v535 = vld [vmem:[%s527 + $0x38] sm:$0xff]
  %v544 = vunpack.c.l.b16 %v528
  %v545 = vunpack.c.h.b16 %v528
  %v546 = vunpack.c.l.b16 %v529
  %v547 = vunpack.c.h.b16 %v529
  %v548 = vunpack.c.l.b16 %v530
  %v549 = vunpack.c.h.b16 %v530
  %v550 = vunpack.c.l.b16 %v531
  %v551 = vunpack.c.h.b16 %v531
  %v552 = vunpack.c.l.b16 %v532
  %v553 = vunpack.c.h.b16 %v532
  %v554 = vunpack.c.l.b16 %v533
  %v555 = vunpack.c.h.b16 %v533
  %v556 = vunpack.c.l.b16 %v534
  %v557 = vunpack.c.h.b16 %v534
  %v558 = vunpack.c.l.b16 %v535
  %v559 = vunpack.c.h.b16 %v535
  %v560 = vpack.c.b16 %v546, %v544
  %v561 = vpack.c.b16 %v547, %v545
  %v562 = vpack.c.b16 %v550, %v548
  %v563 = vpack.c.b16 %v551, %v549
  %v564 = vpack.c.b16 %v554, %v552
  %v565 = vpack.c.b16 %v555, %v553
  %v566 = vpack.c.b16 %v558, %v556
  %v567 = vpack.c.b16 %v559, %v557
  %v577 = vsel %vm70, %v526, 0
  %579 = vmatpush.bf16.msra.mxu0 0
  %580 = vmatpush.bf16.msra.mxu0 0
  %581 = vmatpush.bf16.msra.mxu0 0
  %582 = vmatpush.bf16.msra.mxu0 0
  %583 = vmatpush.bf16.msra.mxu0 %v566
  %584 = vmatpush.bf16.msra.mxu0 %v564
  %585 = vmatpush.bf16.msra.mxu0 %v562
  %586 = vmatpush.bf16.msra.mxu0 %v560
  %587 = vmatmul.bf16.gmra.mxu0 %v577
  %v588 = vpop.f32.mrf.mxu0
  %v589 = vadd.f32 %v28, %v588
  %v590 = vpop.f32.mrf.mxu0
  %591 = vdwg.mxu0
  %592 = vmatpush.bf16.msra.mxu0 0
  %593 = vmatpush.bf16.msra.mxu0 0
  %594 = vmatpush.bf16.msra.mxu0 0
  %595 = vmatpush.bf16.msra.mxu0 0
  %596 = vmatpush.bf16.msra.mxu0 %v567
  %597 = vmatpush.bf16.msra.mxu0 %v565
  %598 = vmatpush.bf16.msra.mxu0 %v563
  %599 = vmatpush.bf16.msra.mxu0 %v561
  %600 = vmatmul.bf16.gmra.mxu0 %v577
  %v601 = vpop.f32.mrf.mxu0
  %v602 = vadd.f32 %v28, %v601
  %v603 = vpop.f32.mrf.mxu0
  %604 = vdwg.mxu0
  %v605 = vld [vmem:[%s260] sm:$0x3]
  %s606 = scalar_lea.vmem %s1, 448
  %v607 = vld [vmem:[%s606] sm:$0xff]
  %v608 = vld [vmem:[%s606 + $0x8] sm:$0xff]
  %v609 = vld [vmem:[%s606 + $0x10] sm:$0xff]
  %v610 = vld [vmem:[%s606 + $0x18] sm:$0xff]
  %v611 = vld [vmem:[%s606 + $0x20] sm:$0xff]
  %v612 = vld [vmem:[%s606 + $0x28] sm:$0xff]
  %v613 = vld [vmem:[%s606 + $0x30] sm:$0xff]
  %v614 = vld [vmem:[%s606 + $0x38] sm:$0xff]
  %v623 = vunpack.c.l.b16 %v607
  %v624 = vunpack.c.h.b16 %v607
  %v625 = vunpack.c.l.b16 %v608
  %v626 = vunpack.c.h.b16 %v608
  %v627 = vunpack.c.l.b16 %v609
  %v628 = vunpack.c.h.b16 %v609
  %v629 = vunpack.c.l.b16 %v610
  %v630 = vunpack.c.h.b16 %v610
  %v631 = vunpack.c.l.b16 %v611
  %v632 = vunpack.c.h.b16 %v611
  %v633 = vunpack.c.l.b16 %v612
  %v634 = vunpack.c.h.b16 %v612
  %v635 = vunpack.c.l.b16 %v613
  %v636 = vunpack.c.h.b16 %v613
  %v637 = vunpack.c.l.b16 %v614
  %v638 = vunpack.c.h.b16 %v614
  %v639 = vpack.c.b16 %v625, %v623
  %v640 = vpack.c.b16 %v626, %v624
  %v641 = vpack.c.b16 %v629, %v627
  %v642 = vpack.c.b16 %v630, %v628
  %v643 = vpack.c.b16 %v633, %v631
  %v644 = vpack.c.b16 %v634, %v632
  %v645 = vpack.c.b16 %v637, %v635
  %v646 = vpack.c.b16 %v638, %v636
  %v656 = vsel %vm70, %v605, 0
  %658 = vmatpush.bf16.msra.mxu0 0
  %659 = vmatpush.bf16.msra.mxu0 0
  %660 = vmatpush.bf16.msra.mxu0 0
  %661 = vmatpush.bf16.msra.mxu0 0
  %662 = vmatpush.bf16.msra.mxu0 %v645
  %663 = vmatpush.bf16.msra.mxu0 %v643
  %664 = vmatpush.bf16.msra.mxu0 %v641
  %665 = vmatpush.bf16.msra.mxu0 %v639
  %666 = vmatmul.bf16.gmra.mxu0 %v656
  %v667 = vpop.f32.mrf.mxu0
  %v668 = vadd.f32 %v28, %v667
  %v669 = vpop.f32.mrf.mxu0
  %670 = vdwg.mxu0
  %671 = vmatpush.bf16.msra.mxu0 0
  %672 = vmatpush.bf16.msra.mxu0 0
  %673 = vmatpush.bf16.msra.mxu0 0
  %674 = vmatpush.bf16.msra.mxu0 0
  %675 = vmatpush.bf16.msra.mxu0 %v646
  %676 = vmatpush.bf16.msra.mxu0 %v644
  %677 = vmatpush.bf16.msra.mxu0 %v642
  %678 = vmatpush.bf16.msra.mxu0 %v640
  %679 = vmatmul.bf16.gmra.mxu0 %v656
  %v680 = vpop.f32.mrf.mxu0
  %v681 = vadd.f32 %v28, %v680
  %v682 = vpop.f32.mrf.mxu0
  %683 = vdwg.mxu0
  %v686 = vrot.slane %v444, 4
  %v687 = vsel %vm343, %v431, %v686
  %s689 = scalar_lea.vmem %s3, 32
  %690 = vst [vmem:[%s689] sm:$0x77] %v687
  %v693 = vrot.slane %v523, 4
  %v694 = vsel %vm343, %v510, %v693
  %s696 = scalar_lea.vmem %s3, 40
  %697 = vst [vmem:[%s696] sm:$0x77] %v694
  %v700 = vrot.slane %v602, 4
  %v701 = vsel %vm343, %v589, %v700
  %s703 = scalar_lea.vmem %s3, 48
  %704 = vst [vmem:[%s703] sm:$0x77] %v701
  %v707 = vrot.slane %v681, 4
  %v708 = vsel %vm343, %v668, %v707
  %s710 = scalar_lea.vmem %s3, 56
  %711 = vst [vmem:[%s710] sm:$0x77] %v708
  // Predicated region
  $region14: #{_lambda_.7} parent=0 // pred_check
    _
  $region15: #{_lambda_.7} parent=0 // pred_check_branch
    %713 = sbr.rel (0) target = $region17
  $region16: #{_lambda_.7} parent=0 // pred_region
    _
  $region17: #{_lambda_.7} parent=0 // pred_fallthru
    _
  // Predicated region
  $region18: #{_lambda_.7} parent=0 // pred_check
    _
  $region19: #{_lambda_.7} parent=0 // pred_check_branch
    %715 = sbr.rel (0) target = $region21
  $region20: #{_lambda_.7} parent=0 // pred_region
    _
  $region21: #{_lambda_.7} parent=0 // pred_fallthru
    _

</llo_original>
